<compile_context>
chip_gen: v6e
topology: v6e:2x2x1
jax: 0.10.0
libtpu: 0.0.40
codegen_flags: <defaults>
</compile_context>

<pallas_src>
import functools
import numpy as np
import jax
import jax.numpy as jnp
from jax.experimental import pallas as pl
from jax.experimental.pallas import tpu as pltpu

EPS = 1e-5            # PyTorch nn.LayerNorm default eps
INV_SQRT2 = 0.7071067811865476


# ----------------------------------------------------------------------------- helpers
def _ln(x, gamma, beta):
    mean = jnp.mean(x, axis=-1, keepdims=True)
    var = jnp.mean((x - mean) ** 2, axis=-1, keepdims=True)
    return (x - mean) * jax.lax.rsqrt(var + EPS) * gamma + beta


def _gelu_exact(x):
    # PyTorch nn.GELU default (erf-based, exact)
    return 0.5 * x * (1.0 + jax.lax.erf(x * INV_SQRT2))


def _num_tensorcores():
    # 2 TensorCores per chip: v7x (and v4 / v5p megacore); 1 on v5e / v6e.
    try:
        kind = jax.devices()[0].device_kind.lower()
        if ("v7" in kind) or ("v5p" in kind) or ("v4" in kind):
            return 2
    except Exception:
        pass
    return 1


def _pick_window_batch(bw, n, c, num_tc, vmem_cap_bytes=20 * (1 << 20)):
    """Windows per grid step: one step per TensorCore, bounded by a VMEM cap
    (2 input blocks + 1 output block, double-buffered, f32)."""
    per_win = 6 * n * c * 4
    cap = max(1, vmem_cap_bytes // per_win)
    target = bw // num_tc if (bw >= num_tc and bw % num_tc == 0) else bw
    target = min(target, cap)
    wb = 1
    for d in range(1, bw + 1):
        if bw % d == 0 and d <= target:
            wb = d
    return wb


def _pick_window_chunk(wb, n, target_rows=128):
    """Windows per in-kernel sub-chunk: keep the live row tile near 128 rows so the
    (rows, hidden) GELU intermediate and residual stay inside the vreg file."""
    best = 1
    for d in range(1, wb + 1):
        if wb % d == 0 and d * n <= max(n, target_rows):
            best = d
    return best


# ----------------------------------------------------------------------------- kernel
def fused_block_kernel(xw_ref, yw_ref, g1_ref, bt1_ref, wq_ref, bq_ref, wkv_ref, bkv_ref,
                       wp_ref, bp_ref, bias_ref, g2_ref, bt2_ref, w1_ref, b1_ref,
                       w2_ref, b2_ref, o_ref, *, num_heads, wc):
    WB, N, C = xw_ref.shape
    hd = C // num_heads
    M = wc * N
    n_chunks = WB // wc

    def process_chunk(ci):
        w0 = ci * wc
        if not isinstance(w0, int):
            w0 = pl.multiple_of(w0, wc)
        win = pl.ds(w0, wc)

        gamma1 = g1_ref[...]
        beta1 = bt1_ref[...]
        xln = _ln(xw_ref[win, :, :].astype(jnp.float32).reshape(M, C),
                  gamma1, beta1).astype(jnp.bfloat16)
        yln = _ln(yw_ref[win, :, :].astype(jnp.float32).reshape(M, C),
                  gamma1, beta1).astype(jnp.bfloat16)

        # Split-QKV projection (qk scale pre-folded into wq / bq in the wrapper).
        q = (jnp.dot(yln, wq_ref[...], preferred_element_type=jnp.float32)
             + bq_ref[...]).astype(jnp.bfloat16)                           # (M, C)
        kv = (jnp.dot(xln, wkv_ref[...], preferred_element_type=jnp.float32)
              + bkv_ref[...]).astype(jnp.bfloat16)                         # (M, 2C)
        q3 = q.reshape(wc, N, C)
        k3 = kv[:, 0:C].reshape(wc, N, C)
        v3 = kv[:, C:2 * C].reshape(wc, N, C)

        # Per-head attention.  The output projection is folded into the head loop as a
        # per-head rank-hd update, so no VMEM ctx scratch / masked slice stores are needed.
        attn_out = jnp.zeros((M, C), jnp.float32)
        for h in range(num_heads):
            sl = slice(h * hd, (h + 1) * hd)
            s = jnp.einsum("wnd,wmd->wnm", q3[:, :, sl], k3[:, :, sl],
                           preferred_element_type=jnp.float32)            # (wc, N, N)
            s = s + bias_ref[h]                                           # rel-pos bias
            m = jnp.max(s, axis=-1, keepdims=True)
            e = jnp.exp(s - m)
            p = (e * pl.reciprocal(jnp.sum(e, axis=-1, keepdims=True),
                                   approx=True)).astype(jnp.bfloat16)
            ctx = jnp.einsum("wnm,wmd->wnd", p, v3[:, :, sl],
                             preferred_element_type=jnp.float32)          # (wc, N, hd)
            attn_out = attn_out + jnp.dot(ctx.reshape(M, hd).astype(jnp.bfloat16),
                                          wp_ref[sl, :],
                                          preferred_element_type=jnp.float32)
        attn_out = attn_out + bp_ref[...]

        # Residual 1 (drop_path = identity): re-read the raw x chunk from the resident block
        # instead of carrying it live across the attention computation.
        res1 = xw_ref[win, :, :].astype(jnp.float32).reshape(M, C) + attn_out

        # MLP: norm2 + fc1 + exact GELU + fc2, then residual 2.
        ln2 = _ln(res1, g2_ref[...], bt2_ref[...])
        hmid = jnp.dot(ln2.astype(jnp.bfloat16), w1_ref[...],
                       preferred_element_type=jnp.float32) + b1_ref[...]
        hmid = _gelu_exact(hmid)
        mlp = jnp.dot(hmid.astype(jnp.bfloat16), w2_ref[...],
                      preferred_element_type=jnp.float32) + b2_ref[...]

        o_ref[win, :, :] = (res1 + mlp).reshape(wc, N, C).astype(o_ref.dtype)

    if n_chunks == 1:
        process_chunk(0)
    else:
        @pl.loop(0, n_chunks)
        def _(ci):
            process_chunk(ci)


# ----------------------------------------------------------------------------- wrapper
def fused_block(xw, yw, prep, num_heads):
    Bw, N, C = xw.shape
    Hd = prep["w_fc1"].shape[1]

    num_tc = _num_tensorcores()
    wb = _pick_window_batch(Bw, N, C, num_tc)     # windows per grid step (VMEM-capped)
    wc = _pick_window_chunk(wb, N)                # windows per in-kernel chunk (~128 rows)
    grid = (Bw // wb,)

    # VMEM budget: blocks (double-buffered) + weights/bias, with headroom.
    block_bytes = 6 * wb * N * C * 4
    weight_bytes = (2 * C * C + C * 2 * C + 2 * C * Hd) * 2 + num_heads * N * N * 4 + 8 * C * 4
    vmem_limit = int(min(48 * (1 << 20), max(16 * (1 << 20), 2 * (block_bytes + weight_bytes))))

    rep2 = lambda i: (0, 0)
    kern = functools.partial(fused_block_kernel, num_heads=num_heads, wc=wc)
    return pl.pallas_call(
        kern,
        out_shape=jax.ShapeDtypeStruct((Bw, N, C), xw.dtype),
        grid=grid,
        in_specs=[
            pl.BlockSpec((wb, N, C), lambda i: (i, 0, 0)),           # x windows (raw)
            pl.BlockSpec((wb, N, C), lambda i: (i, 0, 0)),           # y windows (raw)
            pl.BlockSpec((1, C), rep2),                              # norm1 gamma
            pl.BlockSpec((1, C), rep2),                              # norm1 beta
            pl.BlockSpec((C, C), rep2),                              # w_q (scale folded, bf16)
            pl.BlockSpec((1, C), rep2),                              # b_q (scale folded)
            pl.BlockSpec((C, 2 * C), rep2),                          # w_kv (bf16)
            pl.BlockSpec((1, 2 * C), rep2),                          # b_kv
            pl.BlockSpec((C, C), rep2),                              # w_proj (bf16)
            pl.BlockSpec((1, C), rep2),                              # b_proj
            pl.BlockSpec((num_heads, N, N), lambda i: (0, 0, 0)),    # relative position bias
            pl.BlockSpec((1, C), rep2),                              # norm2 gamma
            pl.BlockSpec((1, C), rep2),                              # norm2 beta
            pl.BlockSpec((C, Hd), rep2),                             # w_fc1 (bf16)
            pl.BlockSpec((1, Hd), rep2),                             # b_fc1
            pl.BlockSpec((Hd, C), rep2),                             # w_fc2 (bf16)
            pl.BlockSpec((1, C), rep2),                              # b_fc2
        ],
        out_specs=pl.BlockSpec((wb, N, C), lambda i: (i, 0, 0)),
        compiler_params=pltpu.CompilerParams(
            dimension_semantics=("parallel",),
            vmem_limit_bytes=vmem_limit),
    )(xw, yw, prep["norm1_g"], prep["norm1_b"], prep["w_q"], prep["b_q"],
      prep["w_kv"], prep["b_kv"], prep["w_p"], prep["b_p"], prep["rel_bias"],
      prep["norm2_g"], prep["norm2_b"], prep["w_fc1"], prep["b_fc1"],
      prep["w_fc2"], prep["b_fc2"])


# ----------------------------------------------------------------------------- glue
def window_partition(x, ws):
    B, D, H, W, C = x.shape
    x = x.reshape(B, D // ws[0], ws[0], H // ws[1], ws[1], W // ws[2], ws[2], C)
    x = x.transpose(0, 1, 3, 5, 2, 4, 6, 7)
    return x.reshape(-1, ws[0] * ws[1] * ws[2], C)


def window_reverse(windows, ws, B, D, H, W):
    C = windows.shape[-1]
    x = windows.reshape(B, D // ws[0], H // ws[1], W // ws[2], ws[0], ws[1], ws[2], C)
    x = x.transpose(0, 1, 4, 2, 5, 3, 6, 7)
    return x.reshape(B, D, H, W, C)


def relative_position_index(ws):
    coords = np.stack(np.meshgrid(np.arange(ws[0]), np.arange(ws[1]),
                                  np.arange(ws[2]), indexing="ij"))       # (3, wd, wh, ww)
    cf = coords.reshape(3, -1)
    rel = cf[:, :, None] - cf[:, None, :]                                 # (3, N, N)
    rel = rel.transpose(1, 2, 0).astype(np.int64)
    rel[..., 0] += ws[0] - 1
    rel[..., 1] += ws[1] - 1
    rel[..., 2] += ws[2] - 1
    rel[..., 0] *= (2 * ws[1] - 1) * (2 * ws[2] - 1)
    rel[..., 1] *= (2 * ws[2] - 1)
    return rel.sum(-1)                                                    # (N, N)


def gather_rel_bias(table, rpi, num_heads):
    N = rpi.shape[0]
    bias = jnp.take(table, jnp.asarray(rpi.reshape(-1)), axis=0)          # (N*N, H)
    return bias.reshape(N, N, num_heads).transpose(2, 0, 1)               # (H, N, N)


def prepare_block_params(params, window_size, num_heads):
    """One-time parameter preprocessing (hoisted out of the per-forward path):
    rel-pos-bias gather, qk-scale folding, q/kv split, bf16 weight casts, bias reshapes."""
    C = params["w_proj"].shape[0]
    Hd = params["w_fc1"].shape[1]
    hd = C // num_heads
    scale = hd ** (-0.5)
    rpi = relative_position_index(window_size)
    rel_bias = gather_rel_bias(params["rpb_table"], rpi, num_heads)       # (H, N, N)
    prep = {
        "norm1_g": params["norm1_g"].reshape(1, C).astype(jnp.float32),
        "norm1_b": params["norm1_b"].reshape(1, C).astype(jnp.float32),
        "norm2_g": params["norm2_g"].reshape(1, C).astype(jnp.float32),
        "norm2_b": params["norm2_b"].reshape(1, C).astype(jnp.float32),
        "w_q":  (params["w_qkv"][:, 0:C] * scale).astype(jnp.bfloat16),
        "b_q":  (params["b_qkv"][0:C] * scale).reshape(1, C).astype(jnp.float32),
        "w_kv": params["w_qkv"][:, C:3 * C].astype(jnp.bfloat16),
        "b_kv": params["b_qkv"][C:3 * C].reshape(1, 2 * C).astype(jnp.float32),
        "w_p":  params["w_proj"].astype(jnp.bfloat16),
        "b_p":  params["b_proj"].reshape(1, C).astype(jnp.float32),
        "rel_bias": rel_bias.astype(jnp.float32),
        "w_fc1": params["w_fc1"].astype(jnp.bfloat16),
        "b_fc1": params["b_fc1"].reshape(1, Hd).astype(jnp.float32),
        "w_fc2": params["w_fc2"].astype(jnp.bfloat16),
        "b_fc2": params["b_fc2"].reshape(1, C).astype(jnp.float32),
    }
    return jax.tree_util.tree_map(jnp.asarray, prep)


@functools.partial(jax.jit, static_argnames=("window_size", "num_heads"))
def cross_transformer_block_forward(prep, x, y, mask_matrix=None,
                                    window_size=(4, 4, 4), num_heads=4):
    # shift_size = (0, 0, 0): mask_matrix unused (attn_mask is None in the reference module).
    # TODO(synk): shifted-window path (cyclic roll + additive attn mask) and the F.pad path
    #             for non-divisible D/H/W are not exercised by the default config.
    B, D, H, W, C = x.shape
    assert D % window_size[0] == 0 and H % window_size[1] == 0 and W % window_size[2] == 0

    # Window-partition the RAW tensors: norm1, attention, both residuals and the MLP are
    # all fused into the single Pallas call; window_reverse runs once at the very end.
    xw = window_partition(x, window_size)                                 # (Bw, N, C)
    yw = window_partition(y, window_size)
    out_w = fused_block(xw, yw, prep, num_heads)
    return window_reverse(out_w, window_size, B, D, H, W)


# ----------------------------------------------------------------------------- pure-JAX reference
def reference_forward(params, x, y, window_size=(4, 4, 4), num_heads=4):
    B, D, H, W, C = x.shape
    hd = C // num_heads
    scale = hd ** (-0.5)
    shortcut = x
    xn = _ln(x, params["norm1_g"], params["norm1_b"])
    yn = _ln(y, params["norm1_g"], params["norm1_b"])
    xw = window_partition(xn, window_size)
    yw = window_partition(yn, window_size)
    Bw, N, _ = xw.shape
    qkv_x = xw @ params["w_qkv"] + params["b_qkv"]
    qkv_y = yw @ params["w_qkv"] + params["b_qkv"]
    q = qkv_y[..., 0:C].reshape(Bw, N, num_heads, hd).transpose(0, 2, 1, 3) * scale
    k = qkv_x[..., C:2 * C].reshape(Bw, N, num_heads, hd).transpose(0, 2, 1, 3)
    v = qkv_x[..., 2 * C:3 * C].reshape(Bw, N, num_heads, hd).transpose(0, 2, 1, 3)
    attn = jnp.einsum("bhnd,bhmd->bhnm", q, k)
    rpi = relative_position_index(window_size)
    attn = attn + gather_rel_bias(params["rpb_table"], rpi, num_heads)[None]
    attn = jax.nn.softmax(attn, axis=-1)
    out = jnp.einsum("bhnm,bhmd->bhnd", attn, v).transpose(0, 2, 1, 3).reshape(Bw, N, C)
    out = out @ params["w_proj"] + params["b_proj"]
    out = window_reverse(out, window_size, B, D, H, W)
    x = shortcut + out
    ln2 = _ln(x, params["norm2_g"], params["norm2_b"])
    h = _gelu_exact(ln2 @ params["w_fc1"] + params["b_fc1"])
    return x + (h @ params["w_fc2"] + params["b_fc2"])


# ----------------------------------------------------------------------------- main
if __name__ == "__main__":
    B, D, H, W = 2, 8, 8, 8
    C, num_heads = 32, 4
    window_size = (4, 4, 4)
    hidden = int(C * 4.0)
    n_rpb = (2 * window_size[0] - 1) * (2 * window_size[1] - 1) * (2 * window_size[2] - 1)

    key = jax.random.PRNGKey(0)
    ks = jax.random.split(key, 16)
    f32 = jnp.float32
    params = {
        "norm1_g": 1.0 + 0.1 * jax.random.normal(ks[0], (C,), f32),
        "norm1_b": 0.1 * jax.random.normal(ks[1], (C,), f32),
        "norm2_g": 1.0 + 0.1 * jax.random.normal(ks[2], (C,), f32),
        "norm2_b": 0.1 * jax.random.normal(ks[3], (C,), f32),
        "w_qkv":  0.02 * jax.random.normal(ks[4], (C, 3 * C), f32),
        "b_qkv":  0.02 * jax.random.normal(ks[5], (3 * C,), f32),
        "w_proj": 0.02 * jax.random.normal(ks[6], (C, C), f32),
        "b_proj": 0.02 * jax.random.normal(ks[7], (C,), f32),
        "rpb_table": 0.02 * jax.random.normal(ks[8], (n_rpb, num_heads), f32),
        "w_fc1": 0.02 * jax.random.normal(ks[9], (C, hidden), f32),
        "b_fc1": 0.02 * jax.random.normal(ks[10], (hidden,), f32),
        "w_fc2": 0.02 * jax.random.normal(ks[11], (hidden, C), f32),
        "b_fc2": 0.02 * jax.random.normal(ks[12], (C,), f32),
    }

    x = jax.random.normal(ks[13], (B, D, H, W, C), f32)
    y = jax.random.normal(ks[14], (B, D, H, W, C), f32)

    # One-time parameter prep (gather + scale fold + bf16 casts), hoisted out of the forward.
    prep = jax.tree_util.tree_map(jax.block_until_ready, prepare_block_params(params, window_size, num_heads))

    out = cross_transformer_block_forward(prep, x, y, mask_matrix=None,
                                          window_size=window_size, num_heads=num_heads)
    out = jax.block_until_ready(out)

    ref = jax.block_until_ready(reference_forward(params, x, y, window_size, num_heads))
    # bf16 MXU operands and approx reciprocal inside the kernel; LN / softmax / GELU and all
    # accumulation stay f32 — hence the relaxed tolerance vs the f32 reference.
    np.testing.assert_allclose(np.asarray(out), np.asarray(ref), rtol=1e-2, atol=2e-3)

    print("KERNEL_OK")
</pallas_src>

<mosaic_0001>
module attributes {stable_mosaic.version = 11 : i64} {
  func.func @fused_block_kernel(%arg0: i32, %arg1: memref<16x64x32xf32, #tpu.memory_space<vmem>>, %arg2: memref<16x64x32xf32, #tpu.memory_space<vmem>>, %arg3: memref<1x32xf32, #tpu.memory_space<vmem>>, %arg4: memref<1x32xf32, #tpu.memory_space<vmem>>, %arg5: memref<32x32xbf16, #tpu.memory_space<vmem>>, %arg6: memref<1x32xf32, #tpu.memory_space<vmem>>, %arg7: memref<32x64xbf16, #tpu.memory_space<vmem>>, %arg8: memref<1x64xf32, #tpu.memory_space<vmem>>, %arg9: memref<32x32xbf16, #tpu.memory_space<vmem>>, %arg10: memref<1x32xf32, #tpu.memory_space<vmem>>, %arg11: memref<4x64x64xf32, #tpu.memory_space<vmem>>, %arg12: memref<1x32xf32, #tpu.memory_space<vmem>>, %arg13: memref<1x32xf32, #tpu.memory_space<vmem>>, %arg14: memref<32x128xbf16, #tpu.memory_space<vmem>>, %arg15: memref<1x128xf32, #tpu.memory_space<vmem>>, %arg16: memref<128x32xbf16, #tpu.memory_space<vmem>>, %arg17: memref<1x32xf32, #tpu.memory_space<vmem>>, %arg18: memref<16x64x32xf32, #tpu.memory_space<vmem>>) attributes {dimension_semantics = [#tpu.dimension_semantics<parallel>], iteration_bounds = array<i64: 1>, scalar_prefetch = 0 : i64, scratch_operands = 0 : i64, tpu.core_type = #tpu.core_type<tc>, window_params = [{transform_indices = @transform_0, window_bounds = array<i64: 16, 64, 32>}, {transform_indices = @transform_1, window_bounds = array<i64: 16, 64, 32>}, {pipeline_mode = #tpu.pipeline_mode<synchronous>, transform_indices = @transform_2, window_bounds = array<i64: 1, 32>}, {pipeline_mode = #tpu.pipeline_mode<synchronous>, transform_indices = @transform_3, window_bounds = array<i64: 1, 32>}, {pipeline_mode = #tpu.pipeline_mode<synchronous>, transform_indices = @transform_4, window_bounds = array<i64: 32, 32>}, {pipeline_mode = #tpu.pipeline_mode<synchronous>, transform_indices = @transform_5, window_bounds = array<i64: 1, 32>}, {pipeline_mode = #tpu.pipeline_mode<synchronous>, transform_indices = @transform_6, window_bounds = array<i64: 32, 64>}, {pipeline_mode = #tpu.pipeline_mode<synchronous>, transform_indices = @transform_7, window_bounds = array<i64: 1, 64>}, {pipeline_mode = #tpu.pipeline_mode<synchronous>, transform_indices = @transform_8, window_bounds = array<i64: 32, 32>}, {pipeline_mode = #tpu.pipeline_mode<synchronous>, transform_indices = @transform_9, window_bounds = array<i64: 1, 32>}, {pipeline_mode = #tpu.pipeline_mode<synchronous>, transform_indices = @transform_10, window_bounds = array<i64: 4, 64, 64>}, {pipeline_mode = #tpu.pipeline_mode<synchronous>, transform_indices = @transform_11, window_bounds = array<i64: 1, 32>}, {pipeline_mode = #tpu.pipeline_mode<synchronous>, transform_indices = @transform_12, window_bounds = array<i64: 1, 32>}, {pipeline_mode = #tpu.pipeline_mode<synchronous>, transform_indices = @transform_13, window_bounds = array<i64: 32, 128>}, {pipeline_mode = #tpu.pipeline_mode<synchronous>, transform_indices = @transform_14, window_bounds = array<i64: 1, 128>}, {pipeline_mode = #tpu.pipeline_mode<synchronous>, transform_indices = @transform_15, window_bounds = array<i64: 128, 32>}, {pipeline_mode = #tpu.pipeline_mode<synchronous>, transform_indices = @transform_16, window_bounds = array<i64: 1, 32>}, {transform_indices = @transform_17, window_bounds = array<i64: 16, 64, 32>}]} {
    %c0_i32 = arith.constant 0 : i32
    %c8_i32 = arith.constant 8 : i32
    %0 = arith.addi %c0_i32, %c8_i32 : i32
    %c1_i32 = arith.constant 1 : i32
    scf.for %arg19 = %c0_i32 to %0 step %c1_i32  : i32 {
      %c1_i32_1 = arith.constant 1 : i32
      %1 = arith.muli %arg19, %c1_i32_1 : i32
      %c0_i32_2 = arith.constant 0 : i32
      %2 = arith.addi %c0_i32_2, %1 : i32
      %c2_i32 = arith.constant 2 : i32
      %3 = arith.muli %2, %c2_i32 : i32
      %4 = tpu.assume_multiple %3, 2 : i32
      %c0 = arith.constant 0 : index
      %c0_3 = arith.constant 0 : index
      %5 = vector.load %arg3[%c0, %c0_3] : memref<1x32xf32, #tpu.memory_space<vmem>>, vector<1x32xf32>
      %c0_4 = arith.constant 0 : index
      %c0_5 = arith.constant 0 : index
      %6 = vector.load %arg4[%c0_4, %c0_5] : memref<1x32xf32, #tpu.memory_space<vmem>>, vector<1x32xf32>
      %7 = arith.index_cast %4 : i32 to index
      %c0_6 = arith.constant 0 : index
      %c0_7 = arith.constant 0 : index
      %8 = vector.load %arg1[%7, %c0_6, %c0_7] : memref<16x64x32xf32, #tpu.memory_space<vmem>>, vector<2x64x32xf32>
      %9 = vector.shape_cast %8 : vector<2x64x32xf32> to vector<128x32xf32>
      %cst = arith.constant dense<0.000000e+00> : vector<128xf32>
      %10 = vector.multi_reduction <add>, %9, %cst [1] : vector<128x32xf32> to vector<128xf32>
      %11 = vector.shape_cast %10 : vector<128xf32> to vector<128x1xf32>
      %cst_8 = arith.constant 3.200000e+01 : f32
      %12 = vector.broadcast %cst_8 : f32 to vector<128x1xf32>
      %13 = arith.divf %11, %12 : vector<128x1xf32>
      %14 = vector.broadcast %13 : vector<128x1xf32> to vector<128x32xf32>
      %15 = arith.subf %9, %14 : vector<128x32xf32>
      %16 = arith.mulf %15, %15 : vector<128x32xf32>
      %cst_9 = arith.constant dense<0.000000e+00> : vector<128xf32>
      %17 = vector.multi_reduction <add>, %16, %cst_9 [1] : vector<128x32xf32> to vector<128xf32>
      %18 = vector.shape_cast %17 : vector<128xf32> to vector<128x1xf32>
      %cst_10 = arith.constant 3.200000e+01 : f32
      %19 = vector.broadcast %cst_10 : f32 to vector<128x1xf32>
      %20 = arith.divf %18, %19 : vector<128x1xf32>
      %21 = vector.broadcast %13 : vector<128x1xf32> to vector<128x32xf32>
      %22 = arith.subf %9, %21 : vector<128x32xf32>
      %cst_11 = arith.constant 9.99999974E-6 : f32
      %23 = vector.broadcast %cst_11 : f32 to vector<128x1xf32>
      %24 = arith.addf %20, %23 : vector<128x1xf32>
      %25 = math.rsqrt %24 : vector<128x1xf32>
      %26 = vector.broadcast %25 : vector<128x1xf32> to vector<128x32xf32>
      %27 = arith.mulf %22, %26 : vector<128x32xf32>
      %28 = vector.broadcast %5 : vector<1x32xf32> to vector<128x32xf32>
      %29 = arith.mulf %27, %28 : vector<128x32xf32>
      %30 = vector.broadcast %6 : vector<1x32xf32> to vector<128x32xf32>
      %31 = arith.addf %29, %30 : vector<128x32xf32>
      %32 = arith.truncf %31 : vector<128x32xf32> to vector<128x32xbf16>
      %33 = arith.index_cast %4 : i32 to index
      %c0_12 = arith.constant 0 : index
      %c0_13 = arith.constant 0 : index
      %34 = vector.load %arg2[%33, %c0_12, %c0_13] : memref<16x64x32xf32, #tpu.memory_space<vmem>>, vector<2x64x32xf32>
      %35 = vector.shape_cast %34 : vector<2x64x32xf32> to vector<128x32xf32>
      %cst_14 = arith.constant dense<0.000000e+00> : vector<128xf32>
      %36 = vector.multi_reduction <add>, %35, %cst_14 [1] : vector<128x32xf32> to vector<128xf32>
      %37 = vector.shape_cast %36 : vector<128xf32> to vector<128x1xf32>
      %cst_15 = arith.constant 3.200000e+01 : f32
      %38 = vector.broadcast %cst_15 : f32 to vector<128x1xf32>
      %39 = arith.divf %37, %38 : vector<128x1xf32>
      %40 = vector.broadcast %39 : vector<128x1xf32> to vector<128x32xf32>
      %41 = arith.subf %35, %40 : vector<128x32xf32>
      %42 = arith.mulf %41, %41 : vector<128x32xf32>
      %cst_16 = arith.constant dense<0.000000e+00> : vector<128xf32>
      %43 = vector.multi_reduction <add>, %42, %cst_16 [1] : vector<128x32xf32> to vector<128xf32>
      %44 = vector.shape_cast %43 : vector<128xf32> to vector<128x1xf32>
      %cst_17 = arith.constant 3.200000e+01 : f32
      %45 = vector.broadcast %cst_17 : f32 to vector<128x1xf32>
      %46 = arith.divf %44, %45 : vector<128x1xf32>
      %47 = vector.broadcast %39 : vector<128x1xf32> to vector<128x32xf32>
      %48 = arith.subf %35, %47 : vector<128x32xf32>
      %cst_18 = arith.constant 9.99999974E-6 : f32
      %49 = vector.broadcast %cst_18 : f32 to vector<128x1xf32>
      %50 = arith.addf %46, %49 : vector<128x1xf32>
      %51 = math.rsqrt %50 : vector<128x1xf32>
      %52 = vector.broadcast %51 : vector<128x1xf32> to vector<128x32xf32>
      %53 = arith.mulf %48, %52 : vector<128x32xf32>
      %54 = vector.broadcast %5 : vector<1x32xf32> to vector<128x32xf32>
      %55 = arith.mulf %53, %54 : vector<128x32xf32>
      %56 = vector.broadcast %6 : vector<1x32xf32> to vector<128x32xf32>
      %57 = arith.addf %55, %56 : vector<128x32xf32>
      %58 = arith.truncf %57 : vector<128x32xf32> to vector<128x32xbf16>
      %c0_19 = arith.constant 0 : index
      %c0_20 = arith.constant 0 : index
      %59 = vector.load %arg5[%c0_19, %c0_20] : memref<32x32xbf16, #tpu.memory_space<vmem>>, vector<32x32xbf16>
      %cst_21 = arith.constant dense<0.000000e+00> : vector<128x32xf32>
      %60 = tpu.matmul %58, %59, %cst_21 {dimension_numbers = #tpu.dot_dimension_numbers<[1], [0], [0], [1], [0, 0, 1, 1], [], []>} : vector<128x32xbf16>, vector<32x32xbf16>, vector<128x32xf32> -> vector<128x32xf32>
      %c0_22 = arith.constant 0 : index
      %c0_23 = arith.constant 0 : index
      %61 = vector.load %arg6[%c0_22, %c0_23] : memref<1x32xf32, #tpu.memory_space<vmem>>, vector<1x32xf32>
      %62 = vector.broadcast %61 : vector<1x32xf32> to vector<128x32xf32>
      %63 = arith.addf %60, %62 : vector<128x32xf32>
      %64 = arith.truncf %63 : vector<128x32xf32> to vector<128x32xbf16>
      %c0_24 = arith.constant 0 : index
      %c0_25 = arith.constant 0 : index
      %65 = vector.load %arg7[%c0_24, %c0_25] : memref<32x64xbf16, #tpu.memory_space<vmem>>, vector<32x64xbf16>
      %cst_26 = arith.constant dense<0.000000e+00> : vector<128x64xf32>
      %66 = tpu.matmul %32, %65, %cst_26 {dimension_numbers = #tpu.dot_dimension_numbers<[1], [0], [0], [1], [0, 0, 1, 1], [], []>} : vector<128x32xbf16>, vector<32x64xbf16>, vector<128x64xf32> -> vector<128x64xf32>
      %c0_27 = arith.constant 0 : index
      %c0_28 = arith.constant 0 : index
      %67 = vector.load %arg8[%c0_27, %c0_28] : memref<1x64xf32, #tpu.memory_space<vmem>>, vector<1x64xf32>
      %68 = vector.broadcast %67 : vector<1x64xf32> to vector<128x64xf32>
      %69 = arith.addf %66, %68 : vector<128x64xf32>
      %70 = arith.truncf %69 : vector<128x64xf32> to vector<128x64xbf16>
      %71 = vector.shape_cast %64 : vector<128x32xbf16> to vector<2x64x32xbf16>
      %72 = vector.extract_strided_slice %70 {offsets = [0, 0], sizes = [128, 32], strides = [1, 1]} : vector<128x64xbf16> to vector<128x32xbf16>
      %73 = vector.shape_cast %72 : vector<128x32xbf16> to vector<2x64x32xbf16>
      %74 = vector.extract_strided_slice %70 {offsets = [0, 32], sizes = [128, 32], strides = [1, 1]} : vector<128x64xbf16> to vector<128x32xbf16>
      %75 = vector.shape_cast %74 : vector<128x32xbf16> to vector<2x64x32xbf16>
      %cst_29 = arith.constant 0.000000e+00 : f32
      %76 = vector.broadcast %cst_29 : f32 to vector<128x32xf32>
      %77 = vector.extract_strided_slice %71 {offsets = [0, 0, 0], sizes = [2, 64, 8], strides = [1, 1, 1]} : vector<2x64x32xbf16> to vector<2x64x8xbf16>
      %78 = vector.extract_strided_slice %73 {offsets = [0, 0, 0], sizes = [2, 64, 8], strides = [1, 1, 1]} : vector<2x64x32xbf16> to vector<2x64x8xbf16>
      "tpu.trace_start"() <{level = 10 : i32, message = "wnd,wmd->wnm"}> : () -> ()
      %cst_30 = arith.constant dense<0.000000e+00> : vector<2x64x64xf32>
      %79 = tpu.matmul %77, %78, %cst_30 {dimension_numbers = #tpu.dot_dimension_numbers<[2], [2], [1], [1], [0, 0, 0, 1, 1, 1], [0], [0]>} : vector<2x64x8xbf16>, vector<2x64x8xbf16>, vector<2x64x64xf32> -> vector<2x64x64xf32>
      "tpu.trace_stop"() : () -> ()
      %c0_31 = arith.constant 0 : index
      %c0_32 = arith.constant 0 : index
      %c0_33 = arith.constant 0 : index
      %80 = vector.load %arg11[%c0_31, %c0_32, %c0_33] : memref<4x64x64xf32, #tpu.memory_space<vmem>>, vector<1x64x64xf32>
      %81 = vector.shape_cast %80 : vector<1x64x64xf32> to vector<64x64xf32>
      %82 = vector.shape_cast %81 : vector<64x64xf32> to vector<1x64x64xf32>
      %83 = vector.broadcast %82 : vector<1x64x64xf32> to vector<2x64x64xf32>
      %84 = arith.addf %79, %83 : vector<2x64x64xf32>
      %cst_34 = arith.constant dense<0xFF800000> : vector<2x64xf32>
      %85 = vector.multi_reduction <maximumf>, %84, %cst_34 [2] : vector<2x64x64xf32> to vector<2x64xf32>
      %86 = vector.shape_cast %85 : vector<2x64xf32> to vector<2x64x1xf32>
      %87 = vector.broadcast %86 : vector<2x64x1xf32> to vector<2x64x64xf32>
      %88 = arith.subf %84, %87 : vector<2x64x64xf32>
      %89 = math.exp %88 : vector<2x64x64xf32>
      %cst_35 = arith.constant dense<0.000000e+00> : vector<2x64xf32>
      %90 = vector.multi_reduction <add>, %89, %cst_35 [2] : vector<2x64x64xf32> to vector<2x64xf32>
      %91 = vector.shape_cast %90 : vector<2x64xf32> to vector<2x64x1xf32>
      %92 = tpu.reciprocal %91 {approx = true} : vector<2x64x1xf32> -> vector<2x64x1xf32>
      %93 = vector.broadcast %92 : vector<2x64x1xf32> to vector<2x64x64xf32>
      %94 = arith.mulf %89, %93 : vector<2x64x64xf32>
      %95 = arith.truncf %94 : vector<2x64x64xf32> to vector<2x64x64xbf16>
      %96 = vector.extract_strided_slice %75 {offsets = [0, 0, 0], sizes = [2, 64, 8], strides = [1, 1, 1]} : vector<2x64x32xbf16> to vector<2x64x8xbf16>
      "tpu.trace_start"() <{level = 10 : i32, message = "wnm,wmd->wnd"}> : () -> ()
      %cst_36 = arith.constant dense<0.000000e+00> : vector<2x64x8xf32>
      %97 = tpu.matmul %95, %96, %cst_36 {dimension_numbers = #tpu.dot_dimension_numbers<[2], [1], [1], [2], [0, 0, 0, 1, 1, 2], [0], [0]>} : vector<2x64x64xbf16>, vector<2x64x8xbf16>, vector<2x64x8xf32> -> vector<2x64x8xf32>
      "tpu.trace_stop"() : () -> ()
      %98 = vector.shape_cast %97 : vector<2x64x8xf32> to vector<128x8xf32>
      %99 = arith.truncf %98 : vector<128x8xf32> to vector<128x8xbf16>
      %c0_37 = arith.constant 0 : index
      %c0_38 = arith.constant 0 : index
      %100 = vector.load %arg9[%c0_37, %c0_38] : memref<32x32xbf16, #tpu.memory_space<vmem>>, vector<8x32xbf16>
      %cst_39 = arith.constant dense<0.000000e+00> : vector<128x32xf32>
      %101 = tpu.matmul %99, %100, %cst_39 {dimension_numbers = #tpu.dot_dimension_numbers<[1], [0], [0], [1], [0, 0, 1, 1], [], []>} : vector<128x8xbf16>, vector<8x32xbf16>, vector<128x32xf32> -> vector<128x32xf32>
      %102 = arith.addf %76, %101 : vector<128x32xf32>
      %103 = vector.extract_strided_slice %71 {offsets = [0, 0, 8], sizes = [2, 64, 8], strides = [1, 1, 1]} : vector<2x64x32xbf16> to vector<2x64x8xbf16>
      %104 = vector.extract_strided_slice %73 {offsets = [0, 0, 8], sizes = [2, 64, 8], strides = [1, 1, 1]} : vector<2x64x32xbf16> to vector<2x64x8xbf16>
      "tpu.trace_start"() <{level = 10 : i32, message = "wnd,wmd->wnm"}> : () -> ()
      %cst_40 = arith.constant dense<0.000000e+00> : vector<2x64x64xf32>
      %105 = tpu.matmul %103, %104, %cst_40 {dimension_numbers = #tpu.dot_dimension_numbers<[2], [2], [1], [1], [0, 0, 0, 1, 1, 1], [0], [0]>} : vector<2x64x8xbf16>, vector<2x64x8xbf16>, vector<2x64x64xf32> -> vector<2x64x64xf32>
      "tpu.trace_stop"() : () -> ()
      %c1 = arith.constant 1 : index
      %c0_41 = arith.constant 0 : index
      %c0_42 = arith.constant 0 : index
      %106 = vector.load %arg11[%c1, %c0_41, %c0_42] : memref<4x64x64xf32, #tpu.memory_space<vmem>>, vector<1x64x64xf32>
      %107 = vector.shape_cast %106 : vector<1x64x64xf32> to vector<64x64xf32>
      %108 = vector.shape_cast %107 : vector<64x64xf32> to vector<1x64x64xf32>
      %109 = vector.broadcast %108 : vector<1x64x64xf32> to vector<2x64x64xf32>
      %110 = arith.addf %105, %109 : vector<2x64x64xf32>
      %cst_43 = arith.constant dense<0xFF800000> : vector<2x64xf32>
      %111 = vector.multi_reduction <maximumf>, %110, %cst_43 [2] : vector<2x64x64xf32> to vector<2x64xf32>
      %112 = vector.shape_cast %111 : vector<2x64xf32> to vector<2x64x1xf32>
      %113 = vector.broadcast %112 : vector<2x64x1xf32> to vector<2x64x64xf32>
      %114 = arith.subf %110, %113 : vector<2x64x64xf32>
      %115 = math.exp %114 : vector<2x64x64xf32>
      %cst_44 = arith.constant dense<0.000000e+00> : vector<2x64xf32>
      %116 = vector.multi_reduction <add>, %115, %cst_44 [2] : vector<2x64x64xf32> to vector<2x64xf32>
      %117 = vector.shape_cast %116 : vector<2x64xf32> to vector<2x64x1xf32>
      %118 = tpu.reciprocal %117 {approx = true} : vector<2x64x1xf32> -> vector<2x64x1xf32>
      %119 = vector.broadcast %118 : vector<2x64x1xf32> to vector<2x64x64xf32>
      %120 = arith.mulf %115, %119 : vector<2x64x64xf32>
      %121 = arith.truncf %120 : vector<2x64x64xf32> to vector<2x64x64xbf16>
      %122 = vector.extract_strided_slice %75 {offsets = [0, 0, 8], sizes = [2, 64, 8], strides = [1, 1, 1]} : vector<2x64x32xbf16> to vector<2x64x8xbf16>
      "tpu.trace_start"() <{level = 10 : i32, message = "wnm,wmd->wnd"}> : () -> ()
      %cst_45 = arith.constant dense<0.000000e+00> : vector<2x64x8xf32>
      %123 = tpu.matmul %121, %122, %cst_45 {dimension_numbers = #tpu.dot_dimension_numbers<[2], [1], [1], [2], [0, 0, 0, 1, 1, 2], [0], [0]>} : vector<2x64x64xbf16>, vector<2x64x8xbf16>, vector<2x64x8xf32> -> vector<2x64x8xf32>
      "tpu.trace_stop"() : () -> ()
      %124 = vector.shape_cast %123 : vector<2x64x8xf32> to vector<128x8xf32>
      %125 = arith.truncf %124 : vector<128x8xf32> to vector<128x8xbf16>
      %c8 = arith.constant 8 : index
      %c0_46 = arith.constant 0 : index
      %126 = vector.load %arg9[%c8, %c0_46] : memref<32x32xbf16, #tpu.memory_space<vmem>>, vector<8x32xbf16>
      %cst_47 = arith.constant dense<0.000000e+00> : vector<128x32xf32>
      %127 = tpu.matmul %125, %126, %cst_47 {dimension_numbers = #tpu.dot_dimension_numbers<[1], [0], [0], [1], [0, 0, 1, 1], [], []>} : vector<128x8xbf16>, vector<8x32xbf16>, vector<128x32xf32> -> vector<128x32xf32>
      %128 = arith.addf %102, %127 : vector<128x32xf32>
      %129 = vector.extract_strided_slice %71 {offsets = [0, 0, 16], sizes = [2, 64, 8], strides = [1, 1, 1]} : vector<2x64x32xbf16> to vector<2x64x8xbf16>
      %130 = vector.extract_strided_slice %73 {offsets = [0, 0, 16], sizes = [2, 64, 8], strides = [1, 1, 1]} : vector<2x64x32xbf16> to vector<2x64x8xbf16>
      "tpu.trace_start"() <{level = 10 : i32, message = "wnd,wmd->wnm"}> : () -> ()
      %cst_48 = arith.constant dense<0.000000e+00> : vector<2x64x64xf32>
      %131 = tpu.matmul %129, %130, %cst_48 {dimension_numbers = #tpu.dot_dimension_numbers<[2], [2], [1], [1], [0, 0, 0, 1, 1, 1], [0], [0]>} : vector<2x64x8xbf16>, vector<2x64x8xbf16>, vector<2x64x64xf32> -> vector<2x64x64xf32>
      "tpu.trace_stop"() : () -> ()
      %c2 = arith.constant 2 : index
      %c0_49 = arith.constant 0 : index
      %c0_50 = arith.constant 0 : index
      %132 = vector.load %arg11[%c2, %c0_49, %c0_50] : memref<4x64x64xf32, #tpu.memory_space<vmem>>, vector<1x64x64xf32>
      %133 = vector.shape_cast %132 : vector<1x64x64xf32> to vector<64x64xf32>
      %134 = vector.shape_cast %133 : vector<64x64xf32> to vector<1x64x64xf32>
      %135 = vector.broadcast %134 : vector<1x64x64xf32> to vector<2x64x64xf32>
      %136 = arith.addf %131, %135 : vector<2x64x64xf32>
      %cst_51 = arith.constant dense<0xFF800000> : vector<2x64xf32>
      %137 = vector.multi_reduction <maximumf>, %136, %cst_51 [2] : vector<2x64x64xf32> to vector<2x64xf32>
      %138 = vector.shape_cast %137 : vector<2x64xf32> to vector<2x64x1xf32>
      %139 = vector.broadcast %138 : vector<2x64x1xf32> to vector<2x64x64xf32>
      %140 = arith.subf %136, %139 : vector<2x64x64xf32>
      %141 = math.exp %140 : vector<2x64x64xf32>
      %cst_52 = arith.constant dense<0.000000e+00> : vector<2x64xf32>
      %142 = vector.multi_reduction <add>, %141, %cst_52 [2] : vector<2x64x64xf32> to vector<2x64xf32>
      %143 = vector.shape_cast %142 : vector<2x64xf32> to vector<2x64x1xf32>
      %144 = tpu.reciprocal %143 {approx = true} : vector<2x64x1xf32> -> vector<2x64x1xf32>
      %145 = vector.broadcast %144 : vector<2x64x1xf32> to vector<2x64x64xf32>
      %146 = arith.mulf %141, %145 : vector<2x64x64xf32>
      %147 = arith.truncf %146 : vector<2x64x64xf32> to vector<2x64x64xbf16>
      %148 = vector.extract_strided_slice %75 {offsets = [0, 0, 16], sizes = [2, 64, 8], strides = [1, 1, 1]} : vector<2x64x32xbf16> to vector<2x64x8xbf16>
      "tpu.trace_start"() <{level = 10 : i32, message = "wnm,wmd->wnd"}> : () -> ()
      %cst_53 = arith.constant dense<0.000000e+00> : vector<2x64x8xf32>
      %149 = tpu.matmul %147, %148, %cst_53 {dimension_numbers = #tpu.dot_dimension_numbers<[2], [1], [1], [2], [0, 0, 0, 1, 1, 2], [0], [0]>} : vector<2x64x64xbf16>, vector<2x64x8xbf16>, vector<2x64x8xf32> -> vector<2x64x8xf32>
      "tpu.trace_stop"() : () -> ()
      %150 = vector.shape_cast %149 : vector<2x64x8xf32> to vector<128x8xf32>
      %151 = arith.truncf %150 : vector<128x8xf32> to vector<128x8xbf16>
      %c16 = arith.constant 16 : index
      %c0_54 = arith.constant 0 : index
      %152 = vector.load %arg9[%c16, %c0_54] : memref<32x32xbf16, #tpu.memory_space<vmem>>, vector<8x32xbf16>
      %cst_55 = arith.constant dense<0.000000e+00> : vector<128x32xf32>
      %153 = tpu.matmul %151, %152, %cst_55 {dimension_numbers = #tpu.dot_dimension_numbers<[1], [0], [0], [1], [0, 0, 1, 1], [], []>} : vector<128x8xbf16>, vector<8x32xbf16>, vector<128x32xf32> -> vector<128x32xf32>
      %154 = arith.addf %128, %153 : vector<128x32xf32>
      %155 = vector.extract_strided_slice %71 {offsets = [0, 0, 24], sizes = [2, 64, 8], strides = [1, 1, 1]} : vector<2x64x32xbf16> to vector<2x64x8xbf16>
      %156 = vector.extract_strided_slice %73 {offsets = [0, 0, 24], sizes = [2, 64, 8], strides = [1, 1, 1]} : vector<2x64x32xbf16> to vector<2x64x8xbf16>
      "tpu.trace_start"() <{level = 10 : i32, message = "wnd,wmd->wnm"}> : () -> ()
      %cst_56 = arith.constant dense<0.000000e+00> : vector<2x64x64xf32>
      %157 = tpu.matmul %155, %156, %cst_56 {dimension_numbers = #tpu.dot_dimension_numbers<[2], [2], [1], [1], [0, 0, 0, 1, 1, 1], [0], [0]>} : vector<2x64x8xbf16>, vector<2x64x8xbf16>, vector<2x64x64xf32> -> vector<2x64x64xf32>
      "tpu.trace_stop"() : () -> ()
      %c3 = arith.constant 3 : index
      %c0_57 = arith.constant 0 : index
      %c0_58 = arith.constant 0 : index
      %158 = vector.load %arg11[%c3, %c0_57, %c0_58] : memref<4x64x64xf32, #tpu.memory_space<vmem>>, vector<1x64x64xf32>
      %159 = vector.shape_cast %158 : vector<1x64x64xf32> to vector<64x64xf32>
      %160 = vector.shape_cast %159 : vector<64x64xf32> to vector<1x64x64xf32>
      %161 = vector.broadcast %160 : vector<1x64x64xf32> to vector<2x64x64xf32>
      %162 = arith.addf %157, %161 : vector<2x64x64xf32>
      %cst_59 = arith.constant dense<0xFF800000> : vector<2x64xf32>
      %163 = vector.multi_reduction <maximumf>, %162, %cst_59 [2] : vector<2x64x64xf32> to vector<2x64xf32>
      %164 = vector.shape_cast %163 : vector<2x64xf32> to vector<2x64x1xf32>
      %165 = vector.broadcast %164 : vector<2x64x1xf32> to vector<2x64x64xf32>
      %166 = arith.subf %162, %165 : vector<2x64x64xf32>
      %167 = math.exp %166 : vector<2x64x64xf32>
      %cst_60 = arith.constant dense<0.000000e+00> : vector<2x64xf32>
      %168 = vector.multi_reduction <add>, %167, %cst_60 [2] : vector<2x64x64xf32> to vector<2x64xf32>
      %169 = vector.shape_cast %168 : vector<2x64xf32> to vector<2x64x1xf32>
      %170 = tpu.reciprocal %169 {approx = true} : vector<2x64x1xf32> -> vector<2x64x1xf32>
      %171 = vector.broadcast %170 : vector<2x64x1xf32> to vector<2x64x64xf32>
      %172 = arith.mulf %167, %171 : vector<2x64x64xf32>
      %173 = arith.truncf %172 : vector<2x64x64xf32> to vector<2x64x64xbf16>
      %174 = vector.extract_strided_slice %75 {offsets = [0, 0, 24], sizes = [2, 64, 8], strides = [1, 1, 1]} : vector<2x64x32xbf16> to vector<2x64x8xbf16>
      "tpu.trace_start"() <{level = 10 : i32, message = "wnm,wmd->wnd"}> : () -> ()
      %cst_61 = arith.constant dense<0.000000e+00> : vector<2x64x8xf32>
      %175 = tpu.matmul %173, %174, %cst_61 {dimension_numbers = #tpu.dot_dimension_numbers<[2], [1], [1], [2], [0, 0, 0, 1, 1, 2], [0], [0]>} : vector<2x64x64xbf16>, vector<2x64x8xbf16>, vector<2x64x8xf32> -> vector<2x64x8xf32>
      "tpu.trace_stop"() : () -> ()
      %176 = vector.shape_cast %175 : vector<2x64x8xf32> to vector<128x8xf32>
      %177 = arith.truncf %176 : vector<128x8xf32> to vector<128x8xbf16>
      %c24 = arith.constant 24 : index
      %c0_62 = arith.constant 0 : index
      %178 = vector.load %arg9[%c24, %c0_62] : memref<32x32xbf16, #tpu.memory_space<vmem>>, vector<8x32xbf16>
      %cst_63 = arith.constant dense<0.000000e+00> : vector<128x32xf32>
      %179 = tpu.matmul %177, %178, %cst_63 {dimension_numbers = #tpu.dot_dimension_numbers<[1], [0], [0], [1], [0, 0, 1, 1], [], []>} : vector<128x8xbf16>, vector<8x32xbf16>, vector<128x32xf32> -> vector<128x32xf32>
      %180 = arith.addf %154, %179 : vector<128x32xf32>
      %c0_64 = arith.constant 0 : index
      %c0_65 = arith.constant 0 : index
      %181 = vector.load %arg10[%c0_64, %c0_65] : memref<1x32xf32, #tpu.memory_space<vmem>>, vector<1x32xf32>
      %182 = vector.broadcast %181 : vector<1x32xf32> to vector<128x32xf32>
      %183 = arith.addf %180, %182 : vector<128x32xf32>
      %184 = arith.index_cast %4 : i32 to index
      %c0_66 = arith.constant 0 : index
      %c0_67 = arith.constant 0 : index
      %185 = vector.load %arg1[%184, %c0_66, %c0_67] : memref<16x64x32xf32, #tpu.memory_space<vmem>>, vector<2x64x32xf32>
      %186 = vector.shape_cast %185 : vector<2x64x32xf32> to vector<128x32xf32>
      %187 = arith.addf %186, %183 : vector<128x32xf32>
      %c0_68 = arith.constant 0 : index
      %c0_69 = arith.constant 0 : index
      %188 = vector.load %arg12[%c0_68, %c0_69] : memref<1x32xf32, #tpu.memory_space<vmem>>, vector<1x32xf32>
      %c0_70 = arith.constant 0 : index
      %c0_71 = arith.constant 0 : index
      %189 = vector.load %arg13[%c0_70, %c0_71] : memref<1x32xf32, #tpu.memory_space<vmem>>, vector<1x32xf32>
      %cst_72 = arith.constant dense<0.000000e+00> : vector<128xf32>
      %190 = vector.multi_reduction <add>, %187, %cst_72 [1] : vector<128x32xf32> to vector<128xf32>
      %191 = vector.shape_cast %190 : vector<128xf32> to vector<128x1xf32>
      %cst_73 = arith.constant 3.200000e+01 : f32
      %192 = vector.broadcast %cst_73 : f32 to vector<128x1xf32>
      %193 = arith.divf %191, %192 : vector<128x1xf32>
      %194 = vector.broadcast %193 : vector<128x1xf32> to vector<128x32xf32>
      %195 = arith.subf %187, %194 : vector<128x32xf32>
      %196 = arith.mulf %195, %195 : vector<128x32xf32>
      %cst_74 = arith.constant dense<0.000000e+00> : vector<128xf32>
      %197 = vector.multi_reduction <add>, %196, %cst_74 [1] : vector<128x32xf32> to vector<128xf32>
      %198 = vector.shape_cast %197 : vector<128xf32> to vector<128x1xf32>
      %cst_75 = arith.constant 3.200000e+01 : f32
      %199 = vector.broadcast %cst_75 : f32 to vector<128x1xf32>
      %200 = arith.divf %198, %199 : vector<128x1xf32>
      %201 = vector.broadcast %193 : vector<128x1xf32> to vector<128x32xf32>
      %202 = arith.subf %187, %201 : vector<128x32xf32>
      %cst_76 = arith.constant 9.99999974E-6 : f32
      %203 = vector.broadcast %cst_76 : f32 to vector<128x1xf32>
      %204 = arith.addf %200, %203 : vector<128x1xf32>
      %205 = math.rsqrt %204 : vector<128x1xf32>
      %206 = vector.broadcast %205 : vector<128x1xf32> to vector<128x32xf32>
      %207 = arith.mulf %202, %206 : vector<128x32xf32>
      %208 = vector.broadcast %188 : vector<1x32xf32> to vector<128x32xf32>
      %209 = arith.mulf %207, %208 : vector<128x32xf32>
      %210 = vector.broadcast %189 : vector<1x32xf32> to vector<128x32xf32>
      %211 = arith.addf %209, %210 : vector<128x32xf32>
      %212 = arith.truncf %211 : vector<128x32xf32> to vector<128x32xbf16>
      %c0_77 = arith.constant 0 : index
      %c0_78 = arith.constant 0 : index
      %213 = vector.load %arg14[%c0_77, %c0_78] : memref<32x128xbf16, #tpu.memory_space<vmem>>, vector<32x128xbf16>
      %cst_79 = arith.constant dense<0.000000e+00> : vector<128x128xf32>
      %214 = tpu.matmul %212, %213, %cst_79 {dimension_numbers = #tpu.dot_dimension_numbers<[1], [0], [0], [1], [0, 0, 1, 1], [], []>} : vector<128x32xbf16>, vector<32x128xbf16>, vector<128x128xf32> -> vector<128x128xf32>
      %c0_80 = arith.constant 0 : index
      %c0_81 = arith.constant 0 : index
      %215 = vector.load %arg15[%c0_80, %c0_81] : memref<1x128xf32, #tpu.memory_space<vmem>>, vector<1x128xf32>
      %216 = vector.broadcast %215 : vector<1x128xf32> to vector<128x128xf32>
      %217 = arith.addf %214, %216 : vector<128x128xf32>
      %cst_82 = arith.constant 5.000000e-01 : f32
      %218 = vector.broadcast %cst_82 : f32 to vector<128x128xf32>
      %219 = arith.mulf %218, %217 : vector<128x128xf32>
      %cst_83 = arith.constant 0.707106769 : f32
      %220 = vector.broadcast %cst_83 : f32 to vector<128x128xf32>
      %221 = arith.mulf %217, %220 : vector<128x128xf32>
      %222 = math.erf %221 : vector<128x128xf32>
      %cst_84 = arith.constant 1.000000e+00 : f32
      %223 = vector.broadcast %cst_84 : f32 to vector<128x128xf32>
      %224 = arith.addf %223, %222 : vector<128x128xf32>
      %225 = arith.mulf %219, %224 : vector<128x128xf32>
      %226 = arith.truncf %225 : vector<128x128xf32> to vector<128x128xbf16>
      %c0_85 = arith.constant 0 : index
      %c0_86 = arith.constant 0 : index
      %227 = vector.load %arg16[%c0_85, %c0_86] : memref<128x32xbf16, #tpu.memory_space<vmem>>, vector<128x32xbf16>
      %cst_87 = arith.constant dense<0.000000e+00> : vector<128x32xf32>
      %228 = tpu.matmul %226, %227, %cst_87 {dimension_numbers = #tpu.dot_dimension_numbers<[1], [0], [0], [1], [0, 0, 1, 1], [], []>} : vector<128x128xbf16>, vector<128x32xbf16>, vector<128x32xf32> -> vector<128x32xf32>
      %c0_88 = arith.constant 0 : index
      %c0_89 = arith.constant 0 : index
      %229 = vector.load %arg17[%c0_88, %c0_89] : memref<1x32xf32, #tpu.memory_space<vmem>>, vector<1x32xf32>
      %230 = vector.broadcast %229 : vector<1x32xf32> to vector<128x32xf32>
      %231 = arith.addf %228, %230 : vector<128x32xf32>
      %232 = arith.addf %187, %231 : vector<128x32xf32>
      %233 = vector.shape_cast %232 : vector<128x32xf32> to vector<2x64x32xf32>
      %234 = arith.index_cast %4 : i32 to index
      %c0_90 = arith.constant 0 : index
      %c0_91 = arith.constant 0 : index
      %235 = vector.load %arg18[%234, %c0_90, %c0_91] : memref<16x64x32xf32, #tpu.memory_space<vmem>>, vector<2x64x32xf32>
      tpu.vector_store %arg18[%234, %c0_90, %c0_91], %233 {strides = array<i32>} : memref<16x64x32xf32, #tpu.memory_space<vmem>>, vector<2x64x32xf32>,
    }
    %c8_i32_0 = arith.constant 8 : i32
    return
  }
  func.func @transform_0(%arg0: i32) -> (i32, i32, i32) {
    %c0_i32 = arith.constant 0 : i32
    %c0_i32_0 = arith.constant 0 : i32
    %c0_i32_1 = arith.constant 0 : i32
    return %arg0, %c0_i32, %c0_i32_0 : i32, i32, i32
  }
  func.func @transform_1(%arg0: i32) -> (i32, i32, i32) {
    %c0_i32 = arith.constant 0 : i32
    %c0_i32_0 = arith.constant 0 : i32
    %c0_i32_1 = arith.constant 0 : i32
    return %arg0, %c0_i32, %c0_i32_0 : i32, i32, i32
  }
  func.func @transform_2(%arg0: i32) -> (i32, i32) {
    %c0_i32 = arith.constant 0 : i32
    %c0_i32_0 = arith.constant 0 : i32
    %c0_i32_1 = arith.constant 0 : i32
    return %c0_i32, %c0_i32_0 : i32, i32
  }
  func.func @transform_3(%arg0: i32) -> (i32, i32) {
    %c0_i32 = arith.constant 0 : i32
    %c0_i32_0 = arith.constant 0 : i32
    %c0_i32_1 = arith.constant 0 : i32
    return %c0_i32, %c0_i32_0 : i32, i32
  }
  func.func @transform_4(%arg0: i32) -> (i32, i32) {
    %c0_i32 = arith.constant 0 : i32
    %c0_i32_0 = arith.constant 0 : i32
    %c0_i32_1 = arith.constant 0 : i32
    return %c0_i32, %c0_i32_0 : i32, i32
  }
  func.func @transform_5(%arg0: i32) -> (i32, i32) {
    %c0_i32 = arith.constant 0 : i32
    %c0_i32_0 = arith.constant 0 : i32
    %c0_i32_1 = arith.constant 0 : i32
    return %c0_i32, %c0_i32_0 : i32, i32
  }
  func.func @transform_6(%arg0: i32) -> (i32, i32) {
    %c0_i32 = arith.constant 0 : i32
    %c0_i32_0 = arith.constant 0 : i32
    %c0_i32_1 = arith.constant 0 : i32
    return %c0_i32, %c0_i32_0 : i32, i32
  }
  func.func @transform_7(%arg0: i32) -> (i32, i32) {
    %c0_i32 = arith.constant 0 : i32
    %c0_i32_0 = arith.constant 0 : i32
    %c0_i32_1 = arith.constant 0 : i32
    return %c0_i32, %c0_i32_0 : i32, i32
  }
  func.func @transform_8(%arg0: i32) -> (i32, i32) {
    %c0_i32 = arith.constant 0 : i32
    %c0_i32_0 = arith.constant 0 : i32
    %c0_i32_1 = arith.constant 0 : i32
    return %c0_i32, %c0_i32_0 : i32, i32
  }
  func.func @transform_9(%arg0: i32) -> (i32, i32) {
    %c0_i32 = arith.constant 0 : i32
    %c0_i32_0 = arith.constant 0 : i32
    %c0_i32_1 = arith.constant 0 : i32
    return %c0_i32, %c0_i32_0 : i32, i32
  }
  func.func @transform_10(%arg0: i32) -> (i32, i32, i32) {
    %c0_i32 = arith.constant 0 : i32
    %c0_i32_0 = arith.constant 0 : i32
    %c0_i32_1 = arith.constant 0 : i32
    %c0_i32_2 = arith.constant 0 : i32
    return %c0_i32, %c0_i32_0, %c0_i32_1 : i32, i32, i32
  }
  func.func @transform_11(%arg0: i32) -> (i32, i32) {
    %c0_i32 = arith.constant 0 : i32
    %c0_i32_0 = arith.constant 0 : i32
    %c0_i32_1 = arith.constant 0 : i32
    return %c0_i32, %c0_i32_0 : i32, i32
  }
  func.func @transform_12(%arg0: i32) -> (i32, i32) {
    %c0_i32 = arith.constant 0 : i32
    %c0_i32_0 = arith.constant 0 : i32
    %c0_i32_1 = arith.constant 0 : i32
    return %c0_i32, %c0_i32_0 : i32, i32
  }
  func.func @transform_13(%arg0: i32) -> (i32, i32) {
    %c0_i32 = arith.constant 0 : i32
    %c0_i32_0 = arith.constant 0 : i32
    %c0_i32_1 = arith.constant 0 : i32
    return %c0_i32, %c0_i32_0 : i32, i32
  }
  func.func @transform_14(%arg0: i32) -> (i32, i32) {
    %c0_i32 = arith.constant 0 : i32
    %c0_i32_0 = arith.constant 0 : i32
    %c0_i32_1 = arith.constant 0 : i32
    return %c0_i32, %c0_i32_0 : i32, i32
  }
  func.func @transform_15(%arg0: i32) -> (i32, i32) {
    %c0_i32 = arith.constant 0 : i32
    %c0_i32_0 = arith.constant 0 : i32
    %c0_i32_1 = arith.constant 0 : i32
    return %c0_i32, %c0_i32_0 : i32, i32
  }
  func.func @transform_16(%arg0: i32) -> (i32, i32) {
    %c0_i32 = arith.constant 0 : i32
    %c0_i32_0 = arith.constant 0 : i32
    %c0_i32_1 = arith.constant 0 : i32
    return %c0_i32, %c0_i32_0 : i32, i32
  }
  func.func @transform_17(%arg0: i32) -> (i32, i32, i32) {
    %c0_i32 = arith.constant 0 : i32
    %c0_i32_0 = arith.constant 0 : i32
    %c0_i32_1 = arith.constant 0 : i32
    return %arg0, %c0_i32, %c0_i32_0 : i32, i32, i32
  }
}

</mosaic_0001>

<llo_original>
// kernel: cross_transformer_block_forward.1
$region0: #{cross_transformer_block_forward.1}
  #allocation0 [shape = 'u32[]', space=smem, size = 0x4, offset = 0x4, fixed_abs, tag = 'smem constant byte address 0x4 - core index']
  #allocation1 [shape = 'u32[144,128]{1,0:T(1,128)}', space=vmem, size = 0x12000, scoped, tag = 'internal scratch']
  %s0 = inlined_call_operand.vmem [shape: f32[16,64,32], index: 0, kind: input, shape index: {}]
  %s1 = inlined_call_operand.vmem [shape: f32[16,64,32], index: 1, kind: input, shape index: {}]
  %s2 = inlined_call_operand.vmem [shape: f32[1,32], index: 2, kind: input, shape index: {}]
  %s3 = inlined_call_operand.vmem [shape: f32[1,32], index: 3, kind: input, shape index: {}]
  %s4 = inlined_call_operand.vmem [shape: bf16[32,32], index: 4, kind: input, shape index: {}]
  %s5 = inlined_call_operand.vmem [shape: f32[1,32], index: 5, kind: input, shape index: {}]
  %s6 = inlined_call_operand.vmem [shape: bf16[32,64], index: 6, kind: input, shape index: {}]
  %s7 = inlined_call_operand.vmem [shape: f32[1,64], index: 7, kind: input, shape index: {}]
  %s8 = inlined_call_operand.vmem [shape: bf16[32,32], index: 8, kind: input, shape index: {}]
  %s9 = inlined_call_operand.vmem [shape: f32[1,32], index: 9, kind: input, shape index: {}]
  %s10 = inlined_call_operand.vmem [shape: f32[4,64,64], index: 10, kind: input, shape index: {}]
  %s11 = inlined_call_operand.vmem [shape: f32[1,32], index: 11, kind: input, shape index: {}]
  %s12 = inlined_call_operand.vmem [shape: f32[1,32], index: 12, kind: input, shape index: {}]
  %s13 = inlined_call_operand.vmem [shape: bf16[32,128], index: 13, kind: input, shape index: {}]
  %s14 = inlined_call_operand.vmem [shape: f32[1,128], index: 14, kind: input, shape index: {}]
  %s15 = inlined_call_operand.vmem [shape: bf16[128,32], index: 15, kind: input, shape index: {}]
  %s16 = inlined_call_operand.vmem [shape: f32[1,32], index: 16, kind: input, shape index: {}]
  %s17 = inlined_call_operand.vmem [shape: f32[16,64,32], index: 17, kind: output, shape index: {}]
  %s18 = sld [smem:[#allocation0]]
  $region85: #{cross_transformer_block_forward.1} parent=0
    _
  %s20 = ssub.s32 1, %s18
  %s21 = scalar_select 0, %s20, %s18
  // Predicated region
  $region2: #{cross_transformer_block_forward.1} parent=0 // pred_check
    _
  $region3: #{cross_transformer_block_forward.1} parent=0 // pred_check_branch
    %23 = sbr.rel (0) target = $region5
  $region4: #{cross_transformer_block_forward.1} parent=0 // pred_region
    _
  $region5: #{cross_transformer_block_forward.1} parent=0 // pred_fallthru
    _
  // Predicated region
  $region6: #{cross_transformer_block_forward.1} parent=0 // pred_check
    _
  $region7: #{cross_transformer_block_forward.1} parent=0 // pred_check_branch
    %25 = sbr.rel (0) target = $region9
  $region8: #{cross_transformer_block_forward.1} parent=0 // pred_region
    _
  $region9: #{cross_transformer_block_forward.1} parent=0 // pred_fallthru
    _
  // Predicated region
  $region10: #{cross_transformer_block_forward.1} parent=0 // pred_check
    _
  $region11: #{cross_transformer_block_forward.1} parent=0 // pred_check_branch
    %27 = sbr.rel (0) target = $region13
  $region12: #{cross_transformer_block_forward.1} parent=0 // pred_region
    _
  $region13: #{cross_transformer_block_forward.1} parent=0 // pred_fallthru
    _
  // Predicated region
  $region14: #{cross_transformer_block_forward.1} parent=0 // pred_check
    _
  $region15: #{cross_transformer_block_forward.1} parent=0 // pred_check_branch
    %29 = sbr.rel (0) target = $region17
  $region16: #{cross_transformer_block_forward.1} parent=0 // pred_region
    _
  $region17: #{cross_transformer_block_forward.1} parent=0 // pred_fallthru
    _
  // Predicated region
  $region18: #{cross_transformer_block_forward.1} parent=0 // pred_check
    _
  $region19: #{cross_transformer_block_forward.1} parent=0 // pred_check_branch
    %31 = sbr.rel (0) target = $region21
  $region20: #{cross_transformer_block_forward.1} parent=0 // pred_region
    _
  $region21: #{cross_transformer_block_forward.1} parent=0 // pred_fallthru
    _
  // Predicated region
  $region22: #{cross_transformer_block_forward.1} parent=0 // pred_check
    _
  $region23: #{cross_transformer_block_forward.1} parent=0 // pred_check_branch
    %33 = sbr.rel (0) target = $region25
  $region24: #{cross_transformer_block_forward.1} parent=0 // pred_region
    _
  $region25: #{cross_transformer_block_forward.1} parent=0 // pred_fallthru
    _
  // Predicated region
  $region26: #{cross_transformer_block_forward.1} parent=0 // pred_check
    _
  $region27: #{cross_transformer_block_forward.1} parent=0 // pred_check_branch
    %35 = sbr.rel (0) target = $region29
  $region28: #{cross_transformer_block_forward.1} parent=0 // pred_region
    _
  $region29: #{cross_transformer_block_forward.1} parent=0 // pred_fallthru
    _
  // Predicated region
  $region30: #{cross_transformer_block_forward.1} parent=0 // pred_check
    _
  $region31: #{cross_transformer_block_forward.1} parent=0 // pred_check_branch
    %37 = sbr.rel (0) target = $region33
  $region32: #{cross_transformer_block_forward.1} parent=0 // pred_region
    _
  $region33: #{cross_transformer_block_forward.1} parent=0 // pred_fallthru
    _
  // Predicated region
  $region34: #{cross_transformer_block_forward.1} parent=0 // pred_check
    _
  $region35: #{cross_transformer_block_forward.1} parent=0 // pred_check_branch
    %39 = sbr.rel (0) target = $region37
  $region36: #{cross_transformer_block_forward.1} parent=0 // pred_region
    _
  $region37: #{cross_transformer_block_forward.1} parent=0 // pred_fallthru
    _
  // Predicated region
  $region38: #{cross_transformer_block_forward.1} parent=0 // pred_check
    _
  $region39: #{cross_transformer_block_forward.1} parent=0 // pred_check_branch
    %41 = sbr.rel (0) target = $region41
  $region40: #{cross_transformer_block_forward.1} parent=0 // pred_region
    _
  $region41: #{cross_transformer_block_forward.1} parent=0 // pred_fallthru
    _
  // Predicated region
  $region42: #{cross_transformer_block_forward.1} parent=0 // pred_check
    _
  $region43: #{cross_transformer_block_forward.1} parent=0 // pred_check_branch
    %43 = sbr.rel (0) target = $region45
  $region44: #{cross_transformer_block_forward.1} parent=0 // pred_region
    _
  $region45: #{cross_transformer_block_forward.1} parent=0 // pred_fallthru
    _
  // Predicated region
  $region46: #{cross_transformer_block_forward.1} parent=0 // pred_check
    _
  $region47: #{cross_transformer_block_forward.1} parent=0 // pred_check_branch
    %45 = sbr.rel (0) target = $region49
  $region48: #{cross_transformer_block_forward.1} parent=0 // pred_region
    _
  $region49: #{cross_transformer_block_forward.1} parent=0 // pred_fallthru
    _
  // Predicated region
  $region50: #{cross_transformer_block_forward.1} parent=0 // pred_check
    _
  $region51: #{cross_transformer_block_forward.1} parent=0 // pred_check_branch
    %47 = sbr.rel (0) target = $region53
  $region52: #{cross_transformer_block_forward.1} parent=0 // pred_region
    _
  $region53: #{cross_transformer_block_forward.1} parent=0 // pred_fallthru
    _
  // Predicated region
  $region54: #{cross_transformer_block_forward.1} parent=0 // pred_check
    _
  $region55: #{cross_transformer_block_forward.1} parent=0 // pred_check_branch
    %49 = sbr.rel (0) target = $region57
  $region56: #{cross_transformer_block_forward.1} parent=0 // pred_region
    _
  $region57: #{cross_transformer_block_forward.1} parent=0 // pred_fallthru
    _
  // Predicated region
  $region58: #{cross_transformer_block_forward.1} parent=0 // pred_check
    _
  $region59: #{cross_transformer_block_forward.1} parent=0 // pred_check_branch
    %51 = sbr.rel (0) target = $region61
  $region60: #{cross_transformer_block_forward.1} parent=0 // pred_region
    _
  $region61: #{cross_transformer_block_forward.1} parent=0 // pred_fallthru
    _
  // Predicated region
  $region62: #{cross_transformer_block_forward.1} parent=0 // pred_check
    _
  $region63: #{cross_transformer_block_forward.1} parent=0 // pred_check_branch
    %53 = sbr.rel (0) target = $region65
  $region64: #{cross_transformer_block_forward.1} parent=0 // pred_region
    _
  $region65: #{cross_transformer_block_forward.1} parent=0 // pred_fallthru
    _
  // Predicated region
  $region66: #{cross_transformer_block_forward.1} parent=0 // pred_check
    _
  $region67: #{cross_transformer_block_forward.1} parent=0 // pred_check_branch
    %55 = sbr.rel (0) target = $region69
  $region68: #{cross_transformer_block_forward.1} parent=0 // pred_region
    _
  $region69: #{cross_transformer_block_forward.1} parent=0 // pred_fallthru
    _
  loop: start=0, step=1, limit=8
  $region70: #{cross_transformer_block_forward.1} parent=0 // loop_pre_header
    _
  $region71: #{cross_transformer_block_forward.1} parent=0 // loop_header
    %s58 = sphi 0, %s62
    %p59 = scmp.ge.s32.totalorder %s58, 8
  $region72: #{cross_transformer_block_forward.1} parent=0 // loop_header_branch
    %61 = sbr.rel (%p59) target = $region76
  $region73: #{cross_transformer_block_forward.1} parent=0 // loop_body
    %s63 = smul.u32 %s58, 2
    %v64 = vld [vmem:[%s2] sm:$0x1]
    %v65 = vld [vmem:[%s3] sm:$0x1]
    %s66 = smul.u32 %s63, 64
    %s67 = scalar_lea.vmem %s0, %s66
    %v68 = vld [vmem:[%s67] sm:$0xff]
    %v69 = vld [vmem:[%s67 + $0x8] sm:$0xff]
    %v70 = vld [vmem:[%s67 + $0x10] sm:$0xff]
    %v71 = vld [vmem:[%s67 + $0x18] sm:$0xff]
    %v72 = vld [vmem:[%s67 + $0x20] sm:$0xff]
    %v73 = vld [vmem:[%s67 + $0x28] sm:$0xff]
    %v74 = vld [vmem:[%s67 + $0x30] sm:$0xff]
    %v75 = vld [vmem:[%s67 + $0x38] sm:$0xff]
    %v76 = vld [vmem:[%s67 + $0x40] sm:$0xff]
    %v77 = vld [vmem:[%s67 + $0x48] sm:$0xff]
    %v78 = vld [vmem:[%s67 + $0x50] sm:$0xff]
    %v79 = vld [vmem:[%s67 + $0x58] sm:$0xff]
    %v80 = vld [vmem:[%s67 + $0x60] sm:$0xff]
    %v81 = vld [vmem:[%s67 + $0x68] sm:$0xff]
    %v82 = vld [vmem:[%s67 + $0x70] sm:$0xff]
    %v83 = vld [vmem:[%s67 + $0x78] sm:$0xff]
    %vm84 = vcmask 261120
    %v85 = vsel %vm84, %v68, 0.0
    %86 = vadd.xlane.f32.xlu0 %v85
    %v87 = vpop.xlane.xlu0 %86
    %v88 = vsel %vm84, %v69, 0.0
    %89 = vadd.xlane.f32.xlu0 %v88
    %v90 = vpop.xlane.xlu0 %89
    %v91 = vsel %vm84, %v70, 0.0
    %92 = vadd.xlane.f32.xlu0 %v91
    %v93 = vpop.xlane.xlu0 %92
    %v94 = vsel %vm84, %v71, 0.0
    %95 = vadd.xlane.f32.xlu0 %v94
    %v96 = vpop.xlane.xlu0 %95
    %v97 = vsel %vm84, %v72, 0.0
    %98 = vadd.xlane.f32.xlu0 %v97
    %v99 = vpop.xlane.xlu0 %98
    %v100 = vsel %vm84, %v73, 0.0
    %101 = vadd.xlane.f32.xlu0 %v100
    %v102 = vpop.xlane.xlu0 %101
    %v103 = vsel %vm84, %v74, 0.0
    %104 = vadd.xlane.f32.xlu0 %v103
    %v105 = vpop.xlane.xlu0 %104
    %v106 = vsel %vm84, %v75, 0.0
    %107 = vadd.xlane.f32.xlu0 %v106
    %v108 = vpop.xlane.xlu0 %107
    %v109 = vsel %vm84, %v76, 0.0
    %110 = vadd.xlane.f32.xlu0 %v109
    %v111 = vpop.xlane.xlu0 %110
    %v112 = vsel %vm84, %v77, 0.0
    %113 = vadd.xlane.f32.xlu0 %v112
    %v114 = vpop.xlane.xlu0 %113
    %v115 = vsel %vm84, %v78, 0.0
    %116 = vadd.xlane.f32.xlu0 %v115
    %v117 = vpop.xlane.xlu0 %116
    %v118 = vsel %vm84, %v79, 0.0
    %119 = vadd.xlane.f32.xlu0 %v118
    %v120 = vpop.xlane.xlu0 %119
    %v121 = vsel %vm84, %v80, 0.0
    %122 = vadd.xlane.f32.xlu0 %v121
    %v123 = vpop.xlane.xlu0 %122
    %v124 = vsel %vm84, %v81, 0.0
    %125 = vadd.xlane.f32.xlu0 %v124
    %v126 = vpop.xlane.xlu0 %125
    %v127 = vsel %vm84, %v82, 0.0
    %128 = vadd.xlane.f32.xlu0 %v127
    %v129 = vpop.xlane.xlu0 %128
    %v130 = vsel %vm84, %v83, 0.0
    %131 = vadd.xlane.f32.xlu0 %v130
    %v132 = vpop.xlane.xlu0 %131
    %v133 = vrcp.pop 32.0
    %v134 = vmul.f32 %v87, %v133
    %v135 = vmul.f32 %v90, %v133
    %v136 = vmul.f32 %v93, %v133
    %v137 = vmul.f32 %v96, %v133
    %v138 = vmul.f32 %v99, %v133
    %v139 = vmul.f32 %v102, %v133
    %v140 = vmul.f32 %v105, %v133
    %v141 = vmul.f32 %v108, %v133
    %v142 = vmul.f32 %v111, %v133
    %v143 = vmul.f32 %v114, %v133
    %v144 = vmul.f32 %v117, %v133
    %v145 = vmul.f32 %v120, %v133
    %v146 = vmul.f32 %v123, %v133
    %v147 = vmul.f32 %v126, %v133
    %v148 = vmul.f32 %v129, %v133
    %v149 = vmul.f32 %v132, %v133
    %v150 = vsub.f32 %v68, %v134
    %v151 = vsub.f32 %v69, %v135
    %v152 = vsub.f32 %v70, %v136
    %v153 = vsub.f32 %v71, %v137
    %v154 = vsub.f32 %v72, %v138
    %v155 = vsub.f32 %v73, %v139
    %v156 = vsub.f32 %v74, %v140
    %v157 = vsub.f32 %v75, %v141
    %v158 = vsub.f32 %v76, %v142
    %v159 = vsub.f32 %v77, %v143
    %v160 = vsub.f32 %v78, %v144
    %v161 = vsub.f32 %v79, %v145
    %v162 = vsub.f32 %v80, %v146
    %v163 = vsub.f32 %v81, %v147
    %v164 = vsub.f32 %v82, %v148
    %v165 = vsub.f32 %v83, %v149
    %v166 = vmul.f32 %v150, %v150
    %v167 = vmul.f32 %v151, %v151
    %v168 = vmul.f32 %v152, %v152
    %v169 = vmul.f32 %v153, %v153
    %v170 = vmul.f32 %v154, %v154
    %v171 = vmul.f32 %v155, %v155
    %v172 = vmul.f32 %v156, %v156
    %v173 = vmul.f32 %v157, %v157
    %v174 = vmul.f32 %v158, %v158
    %v175 = vmul.f32 %v159, %v159
    %v176 = vmul.f32 %v160, %v160
    %v177 = vmul.f32 %v161, %v161
    %v178 = vmul.f32 %v162, %v162
    %v179 = vmul.f32 %v163, %v163
    %v180 = vmul.f32 %v164, %v164
    %v181 = vmul.f32 %v165, %v165
    %v182 = vsel %vm84, %v166, 0.0
    %183 = vadd.xlane.f32.xlu0 %v182
    %v184 = vpop.xlane.xlu0 %183
    %v185 = vsel %vm84, %v167, 0.0
    %186 = vadd.xlane.f32.xlu0 %v185
    %v187 = vpop.xlane.xlu0 %186
    %v188 = vsel %vm84, %v168, 0.0
    %189 = vadd.xlane.f32.xlu0 %v188
    %v190 = vpop.xlane.xlu0 %189
    %v191 = vsel %vm84, %v169, 0.0
    %192 = vadd.xlane.f32.xlu0 %v191
    %v193 = vpop.xlane.xlu0 %192
    %v194 = vsel %vm84, %v170, 0.0
    %195 = vadd.xlane.f32.xlu0 %v194
    %v196 = vpop.xlane.xlu0 %195
    %v197 = vsel %vm84, %v171, 0.0
    %198 = vadd.xlane.f32.xlu0 %v197
    %v199 = vpop.xlane.xlu0 %198
    %v200 = vsel %vm84, %v172, 0.0
    %201 = vadd.xlane.f32.xlu0 %v200
    %v202 = vpop.xlane.xlu0 %201
    %v203 = vsel %vm84, %v173, 0.0
    %204 = vadd.xlane.f32.xlu0 %v203
    %v205 = vpop.xlane.xlu0 %204
    %v206 = vsel %vm84, %v174, 0.0
    %207 = vadd.xlane.f32.xlu0 %v206
    %v208 = vpop.xlane.xlu0 %207
    %v209 = vsel %vm84, %v175, 0.0
    %210 = vadd.xlane.f32.xlu0 %v209
    %v211 = vpop.xlane.xlu0 %210
    %v212 = vsel %vm84, %v176, 0.0
    %213 = vadd.xlane.f32.xlu0 %v212
    %v214 = vpop.xlane.xlu0 %213
    %v215 = vsel %vm84, %v177, 0.0
    %216 = vadd.xlane.f32.xlu0 %v215
    %v217 = vpop.xlane.xlu0 %216
    %v218 = vsel %vm84, %v178, 0.0
    %219 = vadd.xlane.f32.xlu0 %v218
    %v220 = vpop.xlane.xlu0 %219
    %v221 = vsel %vm84, %v179, 0.0
    %222 = vadd.xlane.f32.xlu0 %v221
    %v223 = vpop.xlane.xlu0 %222
    %v224 = vsel %vm84, %v180, 0.0
    %225 = vadd.xlane.f32.xlu0 %v224
    %v226 = vpop.xlane.xlu0 %225
    %v227 = vsel %vm84, %v181, 0.0
    %228 = vadd.xlane.f32.xlu0 %v227
    %v229 = vpop.xlane.xlu0 %228
    %v230 = vmul.f32 %v184, %v133
    %v231 = vmul.f32 %v187, %v133
    %v232 = vmul.f32 %v190, %v133
    %v233 = vmul.f32 %v193, %v133
    %v234 = vmul.f32 %v196, %v133
    %v235 = vmul.f32 %v199, %v133
    %v236 = vmul.f32 %v202, %v133
    %v237 = vmul.f32 %v205, %v133
    %v238 = vmul.f32 %v208, %v133
    %v239 = vmul.f32 %v211, %v133
    %v240 = vmul.f32 %v214, %v133
    %v241 = vmul.f32 %v217, %v133
    %v242 = vmul.f32 %v220, %v133
    %v243 = vmul.f32 %v223, %v133
    %v244 = vmul.f32 %v226, %v133
    %v245 = vmul.f32 %v229, %v133
    %v246 = vadd.f32 %v230, 1e-05
    %v247 = vadd.f32 %v231, 1e-05
    %v248 = vadd.f32 %v232, 1e-05
    %v249 = vadd.f32 %v233, 1e-05
    %v250 = vadd.f32 %v234, 1e-05
    %v251 = vadd.f32 %v235, 1e-05
    %v252 = vadd.f32 %v236, 1e-05
    %v253 = vadd.f32 %v237, 1e-05
    %v254 = vadd.f32 %v238, 1e-05
    %v255 = vadd.f32 %v239, 1e-05
    %v256 = vadd.f32 %v240, 1e-05
    %v257 = vadd.f32 %v241, 1e-05
    %v258 = vadd.f32 %v242, 1e-05
    %v259 = vadd.f32 %v243, 1e-05
    %v260 = vadd.f32 %v244, 1e-05
    %v261 = vadd.f32 %v245, 1e-05
    %v262 = vrsqrt.pop %v246
    %v263 = vrsqrt.pop %v247
    %v264 = vrsqrt.pop %v248
    %v265 = vrsqrt.pop %v249
    %v266 = vrsqrt.pop %v250
    %v267 = vrsqrt.pop %v251
    %v268 = vrsqrt.pop %v252
    %v269 = vrsqrt.pop %v253
    %v270 = vrsqrt.pop %v254
    %v271 = vrsqrt.pop %v255
    %v272 = vrsqrt.pop %v256
    %v273 = vrsqrt.pop %v257
    %v274 = vrsqrt.pop %v258
    %v275 = vrsqrt.pop %v259
    %v276 = vrsqrt.pop %v260
    %v277 = vrsqrt.pop %v261
    %v278 = vmul.f32 %v150, %v262
    %v279 = vmul.f32 %v151, %v263
    %v280 = vmul.f32 %v152, %v264
    %v281 = vmul.f32 %v153, %v265
    %v282 = vmul.f32 %v154, %v266
    %v283 = vmul.f32 %v155, %v267
    %v284 = vmul.f32 %v156, %v268
    %v285 = vmul.f32 %v157, %v269
    %v286 = vmul.f32 %v158, %v270
    %v287 = vmul.f32 %v159, %v271
    %v288 = vmul.f32 %v160, %v272
    %v289 = vmul.f32 %v161, %v273
    %v290 = vmul.f32 %v162, %v274
    %v291 = vmul.f32 %v163, %v275
    %v292 = vmul.f32 %v164, %v276
    %v293 = vmul.f32 %v165, %v277
    %v295 = vlaneseq
    %v296 = vshrl.u32 %v295, 7
    %v297 = vsub.s32 0, %v296
    %v298 = vrot.slane %v64, %v297
    %v300 = vmul.f32 %v278, %v298
    %v301 = vmul.f32 %v279, %v298
    %v302 = vmul.f32 %v280, %v298
    %v303 = vmul.f32 %v281, %v298
    %v304 = vmul.f32 %v282, %v298
    %v305 = vmul.f32 %v283, %v298
    %v306 = vmul.f32 %v284, %v298
    %v307 = vmul.f32 %v285, %v298
    %v308 = vmul.f32 %v286, %v298
    %v309 = vmul.f32 %v287, %v298
    %v310 = vmul.f32 %v288, %v298
    %v311 = vmul.f32 %v289, %v298
    %v312 = vmul.f32 %v290, %v298
    %v313 = vmul.f32 %v291, %v298
    %v314 = vmul.f32 %v292, %v298
    %v315 = vmul.f32 %v293, %v298
    %v317 = vlaneseq
    %v318 = vshrl.u32 %v317, 7
    %v319 = vsub.s32 0, %v318
    %v320 = vrot.slane %v65, %v319
    %v322 = vadd.f32 %v300, %v320
    %v323 = vadd.f32 %v301, %v320
    %v324 = vadd.f32 %v302, %v320
    %v325 = vadd.f32 %v303, %v320
    %v326 = vadd.f32 %v304, %v320
    %v327 = vadd.f32 %v305, %v320
    %v328 = vadd.f32 %v306, %v320
    %v329 = vadd.f32 %v307, %v320
    %v330 = vadd.f32 %v308, %v320
    %v331 = vadd.f32 %v309, %v320
    %v332 = vadd.f32 %v310, %v320
    %v333 = vadd.f32 %v311, %v320
    %v334 = vadd.f32 %v312, %v320
    %v335 = vadd.f32 %v313, %v320
    %v336 = vadd.f32 %v314, %v320
    %v337 = vadd.f32 %v315, %v320
    %v338 = vpack.c.bf16 %v323, %v322
    %v339 = vpack.c.bf16 %v325, %v324
    %v340 = vpack.c.bf16 %v327, %v326
    %v341 = vpack.c.bf16 %v329, %v328
    %v342 = vpack.c.bf16 %v331, %v330
    %v343 = vpack.c.bf16 %v333, %v332
    %v344 = vpack.c.bf16 %v335, %v334
    %v345 = vpack.c.bf16 %v337, %v336
    %s346 = scalar_lea.vmem %s1, %s66
    %v347 = vld [vmem:[%s346] sm:$0xff]
    %v348 = vld [vmem:[%s346 + $0x8] sm:$0xff]
    %v349 = vld [vmem:[%s346 + $0x10] sm:$0xff]
    %v350 = vld [vmem:[%s346 + $0x18] sm:$0xff]
    %v351 = vld [vmem:[%s346 + $0x20] sm:$0xff]
    %v352 = vld [vmem:[%s346 + $0x28] sm:$0xff]
    %v353 = vld [vmem:[%s346 + $0x30] sm:$0xff]
    %v354 = vld [vmem:[%s346 + $0x38] sm:$0xff]
    %v355 = vld [vmem:[%s346 + $0x40] sm:$0xff]
    %v356 = vld [vmem:[%s346 + $0x48] sm:$0xff]
    %v357 = vld [vmem:[%s346 + $0x50] sm:$0xff]
    %v358 = vld [vmem:[%s346 + $0x58] sm:$0xff]
    %v359 = vld [vmem:[%s346 + $0x60] sm:$0xff]
    %v360 = vld [vmem:[%s346 + $0x68] sm:$0xff]
    %v361 = vld [vmem:[%s346 + $0x70] sm:$0xff]
    %v362 = vld [vmem:[%s346 + $0x78] sm:$0xff]
    %v363 = vsel %vm84, %v347, 0.0
    %364 = vadd.xlane.f32.xlu0 %v363
    %v365 = vpop.xlane.xlu0 %364
    %v366 = vsel %vm84, %v348, 0.0
    %367 = vadd.xlane.f32.xlu0 %v366
    %v368 = vpop.xlane.xlu0 %367
    %v369 = vsel %vm84, %v349, 0.0
    %370 = vadd.xlane.f32.xlu0 %v369
    %v371 = vpop.xlane.xlu0 %370
    %v372 = vsel %vm84, %v350, 0.0
    %373 = vadd.xlane.f32.xlu0 %v372
    %v374 = vpop.xlane.xlu0 %373
    %v375 = vsel %vm84, %v351, 0.0
    %376 = vadd.xlane.f32.xlu0 %v375
    %v377 = vpop.xlane.xlu0 %376
    %v378 = vsel %vm84, %v352, 0.0
    %379 = vadd.xlane.f32.xlu0 %v378
    %v380 = vpop.xlane.xlu0 %379
    %v381 = vsel %vm84, %v353, 0.0
    %382 = vadd.xlane.f32.xlu0 %v381
    %v383 = vpop.xlane.xlu0 %382
    %v384 = vsel %vm84, %v354, 0.0
    %385 = vadd.xlane.f32.xlu0 %v384
    %v386 = vpop.xlane.xlu0 %385
    %v387 = vsel %vm84, %v355, 0.0
    %388 = vadd.xlane.f32.xlu0 %v387
    %v389 = vpop.xlane.xlu0 %388
    %v390 = vsel %vm84, %v356, 0.0
    %391 = vadd.xlane.f32.xlu0 %v390
    %v392 = vpop.xlane.xlu0 %391
    %v393 = vsel %vm84, %v357, 0.0
    %394 = vadd.xlane.f32.xlu0 %v393
    %v395 = vpop.xlane.xlu0 %394
    %v396 = vsel %vm84, %v358, 0.0
    %397 = vadd.xlane.f32.xlu0 %v396
    %v398 = vpop.xlane.xlu0 %397
    %v399 = vsel %vm84, %v359, 0.0
    %400 = vadd.xlane.f32.xlu0 %v399
    %v401 = vpop.xlane.xlu0 %400
    %v402 = vsel %vm84, %v360, 0.0
    %403 = vadd.xlane.f32.xlu0 %v402
    %v404 = vpop.xlane.xlu0 %403
    %v405 = vsel %vm84, %v361, 0.0
    %406 = vadd.xlane.f32.xlu0 %v405
    %v407 = vpop.xlane.xlu0 %406
    %v408 = vsel %vm84, %v362, 0.0
    %409 = vadd.xlane.f32.xlu0 %v408
    %v410 = vpop.xlane.xlu0 %409
    %v411 = vmul.f32 %v365, %v133
    %v412 = vmul.f32 %v368, %v133
    %v413 = vmul.f32 %v371, %v133
    %v414 = vmul.f32 %v374, %v133
    %v415 = vmul.f32 %v377, %v133
    %v416 = vmul.f32 %v380, %v133
    %v417 = vmul.f32 %v383, %v133
    %v418 = vmul.f32 %v386, %v133
    %v419 = vmul.f32 %v389, %v133
    %v420 = vmul.f32 %v392, %v133
    %v421 = vmul.f32 %v395, %v133
    %v422 = vmul.f32 %v398, %v133
    %v423 = vmul.f32 %v401, %v133
    %v424 = vmul.f32 %v404, %v133
    %v425 = vmul.f32 %v407, %v133
    %v426 = vmul.f32 %v410, %v133
    %v427 = vsub.f32 %v347, %v411
    %v428 = vsub.f32 %v348, %v412
    %v429 = vsub.f32 %v349, %v413
    %v430 = vsub.f32 %v350, %v414
    %v431 = vsub.f32 %v351, %v415
    %v432 = vsub.f32 %v352, %v416
    %v433 = vsub.f32 %v353, %v417
    %v434 = vsub.f32 %v354, %v418
    %v435 = vsub.f32 %v355, %v419
    %v436 = vsub.f32 %v356, %v420
    %v437 = vsub.f32 %v357, %v421
    %v438 = vsub.f32 %v358, %v422
    %v439 = vsub.f32 %v359, %v423
    %v440 = vsub.f32 %v360, %v424
    %v441 = vsub.f32 %v361, %v425
    %v442 = vsub.f32 %v362, %v426
    %v443 = vmul.f32 %v427, %v427
    %v444 = vmul.f32 %v428, %v428
    %v445 = vmul.f32 %v429, %v429
    %v446 = vmul.f32 %v430, %v430
    %v447 = vmul.f32 %v431, %v431
    %v448 = vmul.f32 %v432, %v432
    %v449 = vmul.f32 %v433, %v433
    %v450 = vmul.f32 %v434, %v434
    %v451 = vmul.f32 %v435, %v435
    %v452 = vmul.f32 %v436, %v436
    %v453 = vmul.f32 %v437, %v437
    %v454 = vmul.f32 %v438, %v438
    %v455 = vmul.f32 %v439, %v439
    %v456 = vmul.f32 %v440, %v440
    %v457 = vmul.f32 %v441, %v441
    %v458 = vmul.f32 %v442, %v442
    %v459 = vsel %vm84, %v443, 0.0
    %460 = vadd.xlane.f32.xlu0 %v459
    %v461 = vpop.xlane.xlu0 %460
    %v462 = vsel %vm84, %v444, 0.0
    %463 = vadd.xlane.f32.xlu0 %v462
    %v464 = vpop.xlane.xlu0 %463
    %v465 = vsel %vm84, %v445, 0.0
    %466 = vadd.xlane.f32.xlu0 %v465
    %v467 = vpop.xlane.xlu0 %466
    %v468 = vsel %vm84, %v446, 0.0
    %469 = vadd.xlane.f32.xlu0 %v468
    %v470 = vpop.xlane.xlu0 %469
    %v471 = vsel %vm84, %v447, 0.0
    %472 = vadd.xlane.f32.xlu0 %v471
    %v473 = vpop.xlane.xlu0 %472
    %v474 = vsel %vm84, %v448, 0.0
    %475 = vadd.xlane.f32.xlu0 %v474
    %v476 = vpop.xlane.xlu0 %475
    %v477 = vsel %vm84, %v449, 0.0
    %478 = vadd.xlane.f32.xlu0 %v477
    %v479 = vpop.xlane.xlu0 %478
    %v480 = vsel %vm84, %v450, 0.0
    %481 = vadd.xlane.f32.xlu0 %v480
    %v482 = vpop.xlane.xlu0 %481
    %v483 = vsel %vm84, %v451, 0.0
    %484 = vadd.xlane.f32.xlu0 %v483
    %v485 = vpop.xlane.xlu0 %484
    %v486 = vsel %vm84, %v452, 0.0
    %487 = vadd.xlane.f32.xlu0 %v486
    %v488 = vpop.xlane.xlu0 %487
    %v489 = vsel %vm84, %v453, 0.0
    %490 = vadd.xlane.f32.xlu0 %v489
    %v491 = vpop.xlane.xlu0 %490
    %v492 = vsel %vm84, %v454, 0.0
    %493 = vadd.xlane.f32.xlu0 %v492
    %v494 = vpop.xlane.xlu0 %493
    %v495 = vsel %vm84, %v455, 0.0
    %496 = vadd.xlane.f32.xlu0 %v495
    %v497 = vpop.xlane.xlu0 %496
    %v498 = vsel %vm84, %v456, 0.0
    %499 = vadd.xlane.f32.xlu0 %v498
    %v500 = vpop.xlane.xlu0 %499
    %v501 = vsel %vm84, %v457, 0.0
    %502 = vadd.xlane.f32.xlu0 %v501
    %v503 = vpop.xlane.xlu0 %502
    %v504 = vsel %vm84, %v458, 0.0
    %505 = vadd.xlane.f32.xlu0 %v504
    %v506 = vpop.xlane.xlu0 %505
    %v507 = vmul.f32 %v461, %v133
    %v508 = vmul.f32 %v464, %v133
    %v509 = vmul.f32 %v467, %v133
    %v510 = vmul.f32 %v470, %v133
    %v511 = vmul.f32 %v473, %v133
    %v512 = vmul.f32 %v476, %v133
    %v513 = vmul.f32 %v479, %v133
    %v514 = vmul.f32 %v482, %v133
    %v515 = vmul.f32 %v485, %v133
    %v516 = vmul.f32 %v488, %v133
    %v517 = vmul.f32 %v491, %v133
    %v518 = vmul.f32 %v494, %v133
    %v519 = vmul.f32 %v497, %v133
    %v520 = vmul.f32 %v500, %v133
    %v521 = vmul.f32 %v503, %v133
    %v522 = vmul.f32 %v506, %v133
    %v523 = vadd.f32 %v507, 1e-05
    %v524 = vadd.f32 %v508, 1e-05
    %v525 = vadd.f32 %v509, 1e-05
    %v526 = vadd.f32 %v510, 1e-05
    %v527 = vadd.f32 %v511, 1e-05
    %v528 = vadd.f32 %v512, 1e-05
    %v529 = vadd.f32 %v513, 1e-05
    %v530 = vadd.f32 %v514, 1e-05
    %v531 = vadd.f32 %v515, 1e-05
    %v532 = vadd.f32 %v516, 1e-05
    %v533 = vadd.f32 %v517, 1e-05
    %v534 = vadd.f32 %v518, 1e-05
    %v535 = vadd.f32 %v519, 1e-05
    %v536 = vadd.f32 %v520, 1e-05
    %v537 = vadd.f32 %v521, 1e-05
    %v538 = vadd.f32 %v522, 1e-05
    %v539 = vrsqrt.pop %v523
    %v540 = vrsqrt.pop %v524
    %v541 = vrsqrt.pop %v525
    %v542 = vrsqrt.pop %v526
    %v543 = vrsqrt.pop %v527
    %v544 = vrsqrt.pop %v528
    %v545 = vrsqrt.pop %v529
    %v546 = vrsqrt.pop %v530
    %v547 = vrsqrt.pop %v531
    %v548 = vrsqrt.pop %v532
    %v549 = vrsqrt.pop %v533
    %v550 = vrsqrt.pop %v534
    %v551 = vrsqrt.pop %v535
    %v552 = vrsqrt.pop %v536
    %v553 = vrsqrt.pop %v537
    %v554 = vrsqrt.pop %v538
    %v555 = vmul.f32 %v427, %v539
    %v556 = vmul.f32 %v428, %v540
    %v557 = vmul.f32 %v429, %v541
    %v558 = vmul.f32 %v430, %v542
    %v559 = vmul.f32 %v431, %v543
    %v560 = vmul.f32 %v432, %v544
    %v561 = vmul.f32 %v433, %v545
    %v562 = vmul.f32 %v434, %v546
    %v563 = vmul.f32 %v435, %v547
    %v564 = vmul.f32 %v436, %v548
    %v565 = vmul.f32 %v437, %v549
    %v566 = vmul.f32 %v438, %v550
    %v567 = vmul.f32 %v439, %v551
    %v568 = vmul.f32 %v440, %v552
    %v569 = vmul.f32 %v441, %v553
    %v570 = vmul.f32 %v442, %v554
    %v571 = vmul.f32 %v555, %v298
    %v572 = vmul.f32 %v556, %v298
    %v573 = vmul.f32 %v557, %v298
    %v574 = vmul.f32 %v558, %v298
    %v575 = vmul.f32 %v559, %v298
    %v576 = vmul.f32 %v560, %v298
    %v577 = vmul.f32 %v561, %v298
    %v578 = vmul.f32 %v562, %v298
    %v579 = vmul.f32 %v563, %v298
    %v580 = vmul.f32 %v564, %v298
    %v581 = vmul.f32 %v565, %v298
    %v582 = vmul.f32 %v566, %v298
    %v583 = vmul.f32 %v567, %v298
    %v584 = vmul.f32 %v568, %v298
    %v585 = vmul.f32 %v569, %v298
    %v586 = vmul.f32 %v570, %v298
    %v587 = vadd.f32 %v571, %v320
    %v588 = vadd.f32 %v572, %v320
    %v589 = vadd.f32 %v573, %v320
    %v590 = vadd.f32 %v574, %v320
    %v591 = vadd.f32 %v575, %v320
    %v592 = vadd.f32 %v576, %v320
    %v593 = vadd.f32 %v577, %v320
    %v594 = vadd.f32 %v578, %v320
    %v595 = vadd.f32 %v579, %v320
    %v596 = vadd.f32 %v580, %v320
    %v597 = vadd.f32 %v581, %v320
    %v598 = vadd.f32 %v582, %v320
    %v599 = vadd.f32 %v583, %v320
    %v600 = vadd.f32 %v584, %v320
    %v601 = vadd.f32 %v585, %v320
    %v602 = vadd.f32 %v586, %v320
    %v603 = vpack.c.bf16 %v588, %v587
    %v604 = vpack.c.bf16 %v590, %v589
    %v605 = vpack.c.bf16 %v592, %v591
    %v606 = vpack.c.bf16 %v594, %v593
    %v607 = vpack.c.bf16 %v596, %v595
    %v608 = vpack.c.bf16 %v598, %v597
    %v609 = vpack.c.bf16 %v600, %v599
    %v610 = vpack.c.bf16 %v602, %v601
    %v611 = vld [vmem:[%s4] sm:$0xf]
    %v612 = vld [vmem:[%s4 + $0x4] sm:$0xf]
    %v613 = vld [vmem:[%s4 + $0x8] sm:$0xf]
    %v614 = vld [vmem:[%s4 + $0xc] sm:$0xf]
    %v615 = vld [vmem:[%s5] sm:$0x1]
    %v617 = vlaneseq
    %v618 = vshrl.u32 %v617, 7
    %v619 = vsub.s32 0, %v618
    %v620 = vrot.slane %v615, %v619
    %v626 = vunpack.c.l.b16 %v611
    %v627 = vunpack.c.l.b16 %v612
    %v628 = vunpack.c.l.b16 %v613
    %v629 = vunpack.c.l.b16 %v614
    %v630 = vpack.c.b16 %v627, %v626
    %v631 = vpack.c.b16 %v629, %v628
    %v635 = vsel %vm84, %v603, 0
    %v638 = vsel %vm84, %v604, 0
    %v641 = vsel %vm84, %v605, 0
    %v644 = vsel %vm84, %v606, 0
    %v647 = vsel %vm84, %v607, 0
    %v650 = vsel %vm84, %v608, 0
    %v653 = vsel %vm84, %v609, 0
    %v656 = vsel %vm84, %v610, 0
    %658 = vmatprep.subr.bf16.mxu0 0
    %659 = vmatpush1.bf16.msra.mxu0 0
    %660 = vmatprep.subr.bf16.mxu0 0
    %661 = vmatpush1.bf16.msra.mxu0 0
    %662 = vmatprep.subr.bf16.mxu0 0
    %663 = vmatpush1.bf16.msra.mxu0 0
    %664 = vmatprep.subr.bf16.mxu0 0
    %665 = vmatpush1.bf16.msra.mxu0 0
    %666 = vmatprep.subr.bf16.mxu0 0
    %667 = vmatpush1.bf16.msra.mxu0 0
    %668 = vmatprep.subr.bf16.mxu0 0
    %669 = vmatpush1.bf16.msra.mxu0 0
    %670 = vmatprep.subr.bf16.mxu0 0
    %671 = vmatpush1.bf16.msra.mxu0 %v631
    %672 = vmatprep.subr.bf16.mxu0 0
    %673 = vmatpush1.bf16.msra.mxu0 %v630
    %674 = vmatprep.subr.bf16.mxu0 0
    %675 = vmatpush2.bf16.msra.mxu0 0
    %676 = vmatprep.subr.bf16.mxu0 0
    %677 = vmatpush2.bf16.msra.mxu0 0
    %678 = vmatprep.subr.bf16.mxu0 0
    %679 = vmatpush2.bf16.msra.mxu0 0
    %680 = vmatprep.subr.bf16.mxu0 0
    %681 = vmatpush2.bf16.msra.mxu0 0
    %682 = vmatprep.subr.bf16.mxu0 0
    %683 = vmatpush2.bf16.msra.mxu0 0
    %684 = vmatprep.subr.bf16.mxu0 0
    %685 = vmatpush2.bf16.msra.mxu0 0
    %686 = vmatprep.subr.bf16.mxu0 0
    %687 = vmatpush2.bf16.msra.mxu0 0
    %688 = vmatprep.subr.bf16.mxu0 0
    %689 = vmatpush2.bf16.msra.mxu0 0
    %690 = vmatprep.mubr.bf16.mxu0 0
    %691 = vmatmul.mubr.bf16.gmra.mxu0 %v635
    %v692 = vpop.f32.mrf.mxu0
    %v693 = vadd.f32 %v620, %v692
    %v694 = vpop.f32.mrf.mxu0
    %v695 = vpop.f32.mrf.mxu0
    %v696 = vadd.f32 %v620, %v695
    %v697 = vpop.f32.mrf.mxu0
    %698 = vmatprep.mubr.bf16.mxu0 0
    %699 = vmatmul.mubr.bf16.gmra.mxu0 %v638
    %v700 = vpop.f32.mrf.mxu0
    %v701 = vadd.f32 %v620, %v700
    %v702 = vpop.f32.mrf.mxu0
    %v703 = vpop.f32.mrf.mxu0
    %v704 = vadd.f32 %v620, %v703
    %v705 = vpop.f32.mrf.mxu0
    %706 = vmatprep.mubr.bf16.mxu0 0
    %707 = vmatmul.mubr.bf16.gmra.mxu0 %v641
    %v708 = vpop.f32.mrf.mxu0
    %v709 = vadd.f32 %v620, %v708
    %v710 = vpop.f32.mrf.mxu0
    %v711 = vpop.f32.mrf.mxu0
    %v712 = vadd.f32 %v620, %v711
    %v713 = vpop.f32.mrf.mxu0
    %714 = vmatprep.mubr.bf16.mxu0 0
    %715 = vmatmul.mubr.bf16.gmra.mxu0 %v644
    %v716 = vpop.f32.mrf.mxu0
    %v717 = vadd.f32 %v620, %v716
    %v718 = vpop.f32.mrf.mxu0
    %v719 = vpop.f32.mrf.mxu0
    %v720 = vadd.f32 %v620, %v719
    %v721 = vpop.f32.mrf.mxu0
    %722 = vmatprep.mubr.bf16.mxu0 0
    %723 = vmatmul.mubr.bf16.gmra.mxu0 %v647
    %v724 = vpop.f32.mrf.mxu0
    %v725 = vadd.f32 %v620, %v724
    %v726 = vpop.f32.mrf.mxu0
    %v727 = vpop.f32.mrf.mxu0
    %v728 = vadd.f32 %v620, %v727
    %v729 = vpop.f32.mrf.mxu0
    %730 = vmatprep.mubr.bf16.mxu0 0
    %731 = vmatmul.mubr.bf16.gmra.mxu0 %v650
    %v732 = vpop.f32.mrf.mxu0
    %v733 = vadd.f32 %v620, %v732
    %v734 = vpop.f32.mrf.mxu0
    %v735 = vpop.f32.mrf.mxu0
    %v736 = vadd.f32 %v620, %v735
    %v737 = vpop.f32.mrf.mxu0
    %738 = vmatprep.mubr.bf16.mxu0 0
    %739 = vmatmul.mubr.bf16.gmra.mxu0 %v653
    %v740 = vpop.f32.mrf.mxu0
    %v741 = vadd.f32 %v620, %v740
    %v742 = vpop.f32.mrf.mxu0
    %v743 = vpop.f32.mrf.mxu0
    %v744 = vadd.f32 %v620, %v743
    %v745 = vpop.f32.mrf.mxu0
    %746 = vmatprep.mubr.bf16.mxu0 0
    %747 = vmatmul.mubr.bf16.gmra.mxu0 %v656
    %v748 = vpop.f32.mrf.mxu0
    %v749 = vadd.f32 %v620, %v748
    %v750 = vpop.f32.mrf.mxu0
    %v751 = vpop.f32.mrf.mxu0
    %v752 = vadd.f32 %v620, %v751
    %v753 = vpop.f32.mrf.mxu0
    %754 = vdwg.mxu0
    %v755 = vpack.c.bf16 %v696, %v693
    %v756 = vpack.c.bf16 %v704, %v701
    %v757 = vpack.c.bf16 %v712, %v709
    %v758 = vpack.c.bf16 %v720, %v717
    %v759 = vpack.c.bf16 %v728, %v725
    %v760 = vpack.c.bf16 %v736, %v733
    %v761 = vpack.c.bf16 %v744, %v741
    %v762 = vpack.c.bf16 %v752, %v749
    %v763 = vld [vmem:[%s6] sm:$0xf]
    %v764 = vld [vmem:[%s6 + $0x4] sm:$0xf]
    %v765 = vld [vmem:[%s6 + $0x8] sm:$0xf]
    %v766 = vld [vmem:[%s6 + $0xc] sm:$0xf]
    %v767 = vld [vmem:[%s7] sm:$0x1]
    %v769 = vlaneseq
    %v770 = vshrl.u32 %v769, 7
    %v771 = vsub.s32 0, %v770
    %v772 = vrot.slane %v767, %v771
    %v778 = vunpack.c.l.b16 %v763
    %v779 = vunpack.c.l.b16 %v764
    %v780 = vunpack.c.l.b16 %v765
    %v781 = vunpack.c.l.b16 %v766
    %v782 = vpack.c.b16 %v779, %v778
    %v783 = vpack.c.b16 %v781, %v780
    %v787 = vsel %vm84, %v338, 0
    %v790 = vsel %vm84, %v339, 0
    %v793 = vsel %vm84, %v340, 0
    %v796 = vsel %vm84, %v341, 0
    %v799 = vsel %vm84, %v342, 0
    %v802 = vsel %vm84, %v343, 0
    %v805 = vsel %vm84, %v344, 0
    %v808 = vsel %vm84, %v345, 0
    %810 = vmatprep.subr.bf16.mxu0 0
    %811 = vmatpush1.bf16.msra.mxu0 0
    %812 = vmatprep.subr.bf16.mxu0 0
    %813 = vmatpush1.bf16.msra.mxu0 0
    %814 = vmatprep.subr.bf16.mxu0 0
    %815 = vmatpush1.bf16.msra.mxu0 0
    %816 = vmatprep.subr.bf16.mxu0 0
    %817 = vmatpush1.bf16.msra.mxu0 0
    %818 = vmatprep.subr.bf16.mxu0 0
    %819 = vmatpush1.bf16.msra.mxu0 0
    %820 = vmatprep.subr.bf16.mxu0 0
    %821 = vmatpush1.bf16.msra.mxu0 0
    %822 = vmatprep.subr.bf16.mxu0 0
    %823 = vmatpush1.bf16.msra.mxu0 %v783
    %824 = vmatprep.subr.bf16.mxu0 0
    %825 = vmatpush1.bf16.msra.mxu0 %v782
    %826 = vmatprep.subr.bf16.mxu0 0
    %827 = vmatpush2.bf16.msra.mxu0 0
    %828 = vmatprep.subr.bf16.mxu0 0
    %829 = vmatpush2.bf16.msra.mxu0 0
    %830 = vmatprep.subr.bf16.mxu0 0
    %831 = vmatpush2.bf16.msra.mxu0 0
    %832 = vmatprep.subr.bf16.mxu0 0
    %833 = vmatpush2.bf16.msra.mxu0 0
    %834 = vmatprep.subr.bf16.mxu0 0
    %835 = vmatpush2.bf16.msra.mxu0 0
    %836 = vmatprep.subr.bf16.mxu0 0
    %837 = vmatpush2.bf16.msra.mxu0 0
    %838 = vmatprep.subr.bf16.mxu0 0
    %839 = vmatpush2.bf16.msra.mxu0 0
    %840 = vmatprep.subr.bf16.mxu0 0
    %841 = vmatpush2.bf16.msra.mxu0 0
    %842 = vmatprep.mubr.bf16.mxu0 0
    %843 = vmatmul.mubr.bf16.gmra.mxu0 %v787
    %v844 = vpop.f32.mrf.mxu0
    %v845 = vadd.f32 %v772, %v844
    %v846 = vpop.f32.mrf.mxu0
    %v847 = vpop.f32.mrf.mxu0
    %v848 = vadd.f32 %v772, %v847
    %v849 = vpop.f32.mrf.mxu0
    %850 = vmatprep.mubr.bf16.mxu0 0
    %851 = vmatmul.mubr.bf16.gmra.mxu0 %v790
    %v852 = vpop.f32.mrf.mxu0
    %v853 = vadd.f32 %v772, %v852
    %v854 = vpop.f32.mrf.mxu0
    %v855 = vpop.f32.mrf.mxu0
    %v856 = vadd.f32 %v772, %v855
    %v857 = vpop.f32.mrf.mxu0
    %858 = vmatprep.mubr.bf16.mxu0 0
    %859 = vmatmul.mubr.bf16.gmra.mxu0 %v793
    %v860 = vpop.f32.mrf.mxu0
    %v861 = vadd.f32 %v772, %v860
    %v862 = vpop.f32.mrf.mxu0
    %v863 = vpop.f32.mrf.mxu0
    %v864 = vadd.f32 %v772, %v863
    %v865 = vpop.f32.mrf.mxu0
    %866 = vmatprep.mubr.bf16.mxu0 0
    %867 = vmatmul.mubr.bf16.gmra.mxu0 %v796
    %v868 = vpop.f32.mrf.mxu0
    %v869 = vadd.f32 %v772, %v868
    %v870 = vpop.f32.mrf.mxu0
    %v871 = vpop.f32.mrf.mxu0
    %v872 = vadd.f32 %v772, %v871
    %v873 = vpop.f32.mrf.mxu0
    %874 = vmatprep.mubr.bf16.mxu0 0
    %875 = vmatmul.mubr.bf16.gmra.mxu0 %v799
    %v876 = vpop.f32.mrf.mxu0
    %v877 = vadd.f32 %v772, %v876
    %v878 = vpop.f32.mrf.mxu0
    %v879 = vpop.f32.mrf.mxu0
    %v880 = vadd.f32 %v772, %v879
    %v881 = vpop.f32.mrf.mxu0
    %882 = vmatprep.mubr.bf16.mxu0 0
    %883 = vmatmul.mubr.bf16.gmra.mxu0 %v802
    %v884 = vpop.f32.mrf.mxu0
    %v885 = vadd.f32 %v772, %v884
    %v886 = vpop.f32.mrf.mxu0
    %v887 = vpop.f32.mrf.mxu0
    %v888 = vadd.f32 %v772, %v887
    %v889 = vpop.f32.mrf.mxu0
    %890 = vmatprep.mubr.bf16.mxu0 0
    %891 = vmatmul.mubr.bf16.gmra.mxu0 %v805
    %v892 = vpop.f32.mrf.mxu0
    %v893 = vadd.f32 %v772, %v892
    %v894 = vpop.f32.mrf.mxu0
    %v895 = vpop.f32.mrf.mxu0
    %v896 = vadd.f32 %v772, %v895
    %v897 = vpop.f32.mrf.mxu0
    %898 = vmatprep.mubr.bf16.mxu0 0
    %899 = vmatmul.mubr.bf16.gmra.mxu0 %v808
    %v900 = vpop.f32.mrf.mxu0
    %v901 = vadd.f32 %v772, %v900
    %v902 = vpop.f32.mrf.mxu0
    %v903 = vpop.f32.mrf.mxu0
    %v904 = vadd.f32 %v772, %v903
    %v905 = vpop.f32.mrf.mxu0
    %906 = vdwg.mxu0
    %v907 = vpack.c.bf16 %v848, %v845
    %v908 = vpack.c.bf16 %v856, %v853
    %v909 = vpack.c.bf16 %v864, %v861
    %v910 = vpack.c.bf16 %v872, %v869
    %v911 = vpack.c.bf16 %v880, %v877
    %v912 = vpack.c.bf16 %v888, %v885
    %v913 = vpack.c.bf16 %v896, %v893
    %v914 = vpack.c.bf16 %v904, %v901
    %v915 = vld [vmem:[%s10] sm:$0xff]
    %v916 = vld [vmem:[%s10 + $0x8] sm:$0xff]
    %v917 = vld [vmem:[%s10 + $0x10] sm:$0xff]
    %v918 = vld [vmem:[%s10 + $0x18] sm:$0xff]
    %v919 = vld [vmem:[%s10 + $0x20] sm:$0xff]
    %v920 = vld [vmem:[%s10 + $0x28] sm:$0xff]
    %v921 = vld [vmem:[%s10 + $0x30] sm:$0xff]
    %v922 = vld [vmem:[%s10 + $0x38] sm:$0xff]
    %vm923 = vcmask 64512
    %v925 = vsel %vm923, %v755, 0
    %v928 = vsel %vm923, %v756, 0
    %v931 = vsel %vm923, %v757, 0
    %v934 = vsel %vm923, %v758, 0
    %v937 = vsel %vm923, %v907, 0
    %v940 = vsel %vm923, %v908, 0
    %v943 = vsel %vm923, %v909, 0
    %v946 = vsel %vm923, %v910, 0
    %948 = vmatprep.subr.bf16.mxu0 0
    %949 = vmatpush1.bf16.xpose.msra.mxu0 0
    %950 = vmatprep.subr.bf16.mxu0 0
    %951 = vmatpush1.bf16.xpose.msra.mxu0 0
    %952 = vmatprep.subr.bf16.mxu0 0
    %953 = vmatpush1.bf16.xpose.msra.mxu0 0
    %954 = vmatprep.subr.bf16.mxu0 0
    %955 = vmatpush1.bf16.xpose.msra.mxu0 0
    %956 = vmatprep.subr.bf16.mxu0 0
    %957 = vmatpush1.bf16.xpose.msra.mxu0 %v946
    %958 = vmatprep.subr.bf16.mxu0 0
    %959 = vmatpush1.bf16.xpose.msra.mxu0 %v943
    %960 = vmatprep.subr.bf16.mxu0 0
    %961 = vmatpush1.bf16.xpose.msra.mxu0 %v940
    %962 = vmatprep.subr.bf16.mxu0 0
    %963 = vmatpush1.bf16.xpose.msra.mxu0 %v937
    %964 = vmatprep.subr.bf16.mxu0 0
    %965 = vmatpush2.bf16.xpose.msra.mxu0 0
    %966 = vmatprep.subr.bf16.mxu0 0
    %967 = vmatpush2.bf16.xpose.msra.mxu0 0
    %968 = vmatprep.subr.bf16.mxu0 0
    %969 = vmatpush2.bf16.xpose.msra.mxu0 0
    %970 = vmatprep.subr.bf16.mxu0 0
    %971 = vmatpush2.bf16.xpose.msra.mxu0 0
    %972 = vmatprep.subr.bf16.mxu0 0
    %973 = vmatpush2.bf16.xpose.msra.mxu0 0
    %974 = vmatprep.subr.bf16.mxu0 0
    %975 = vmatpush2.bf16.xpose.msra.mxu0 0
    %976 = vmatprep.subr.bf16.mxu0 0
    %977 = vmatpush2.bf16.xpose.msra.mxu0 0
    %978 = vmatprep.subr.bf16.mxu0 0
    %979 = vmatpush2.bf16.xpose.msra.mxu0 0
    %980 = vmatprep.mubr.bf16.mxu0 0
    %981 = vmatmul.mubr.bf16.gmra.mxu0 %v925
    %v982 = vpop.f32.mrf.mxu0
    %v983 = vadd.f32 %v915, %v982
    %v984 = vpop.f32.mrf.mxu0
    %v985 = vpop.f32.mrf.mxu0
    %v986 = vadd.f32 %v916, %v985
    %v987 = vpop.f32.mrf.mxu0
    %988 = vmatprep.mubr.bf16.mxu0 0
    %989 = vmatmul.mubr.bf16.gmra.mxu0 %v928
    %v990 = vpop.f32.mrf.mxu0
    %v991 = vadd.f32 %v917, %v990
    %v992 = vpop.f32.mrf.mxu0
    %v993 = vpop.f32.mrf.mxu0
    %v994 = vadd.f32 %v918, %v993
    %v995 = vpop.f32.mrf.mxu0
    %996 = vmatprep.mubr.bf16.mxu0 0
    %997 = vmatmul.mubr.bf16.gmra.mxu0 %v931
    %v998 = vpop.f32.mrf.mxu0
    %v999 = vadd.f32 %v919, %v998
    %v1000 = vpop.f32.mrf.mxu0
    %v1001 = vpop.f32.mrf.mxu0
    %v1002 = vadd.f32 %v920, %v1001
    %v1003 = vpop.f32.mrf.mxu0
    %1004 = vmatprep.mubr.bf16.mxu0 0
    %1005 = vmatmul.mubr.bf16.gmra.mxu0 %v934
    %v1006 = vpop.f32.mrf.mxu0
    %v1007 = vadd.f32 %v921, %v1006
    %v1008 = vpop.f32.mrf.mxu0
    %v1009 = vpop.f32.mrf.mxu0
    %v1010 = vadd.f32 %v922, %v1009
    %v1011 = vpop.f32.mrf.mxu0
    %1012 = vdwg.mxu0
    %v1014 = vsel %vm923, %v759, 0
    %v1017 = vsel %vm923, %v760, 0
    %v1020 = vsel %vm923, %v761, 0
    %v1023 = vsel %vm923, %v762, 0
    %v1026 = vsel %vm923, %v911, 0
    %v1029 = vsel %vm923, %v912, 0
    %v1032 = vsel %vm923, %v913, 0
    %v1035 = vsel %vm923, %v914, 0
    %1037 = vmatprep.subr.bf16.mxu0 0
    %1038 = vmatpush1.bf16.xpose.msra.mxu0 0
    %1039 = vmatprep.subr.bf16.mxu0 0
    %1040 = vmatpush1.bf16.xpose.msra.mxu0 0
    %1041 = vmatprep.subr.bf16.mxu0 0
    %1042 = vmatpush1.bf16.xpose.msra.mxu0 0
    %1043 = vmatprep.subr.bf16.mxu0 0
    %1044 = vmatpush1.bf16.xpose.msra.mxu0 0
    %1045 = vmatprep.subr.bf16.mxu0 0
    %1046 = vmatpush1.bf16.xpose.msra.mxu0 %v1035
    %1047 = vmatprep.subr.bf16.mxu0 0
    %1048 = vmatpush1.bf16.xpose.msra.mxu0 %v1032
    %1049 = vmatprep.subr.bf16.mxu0 0
    %1050 = vmatpush1.bf16.xpose.msra.mxu0 %v1029
    %1051 = vmatprep.subr.bf16.mxu0 0
    %1052 = vmatpush1.bf16.xpose.msra.mxu0 %v1026
    %1053 = vmatprep.subr.bf16.mxu0 0
    %1054 = vmatpush2.bf16.xpose.msra.mxu0 0
    %1055 = vmatprep.subr.bf16.mxu0 0
    %1056 = vmatpush2.bf16.xpose.msra.mxu0 0
    %1057 = vmatprep.subr.bf16.mxu0 0
    %1058 = vmatpush2.bf16.xpose.msra.mxu0 0
    %1059 = vmatprep.subr.bf16.mxu0 0
    %1060 = vmatpush2.bf16.xpose.msra.mxu0 0
    %1061 = vmatprep.subr.bf16.mxu0 0
    %1062 = vmatpush2.bf16.xpose.msra.mxu0 0
    %1063 = vmatprep.subr.bf16.mxu0 0
    %1064 = vmatpush2.bf16.xpose.msra.mxu0 0
    %1065 = vmatprep.subr.bf16.mxu0 0
    %1066 = vmatpush2.bf16.xpose.msra.mxu0 0
    %1067 = vmatprep.subr.bf16.mxu0 0
    %1068 = vmatpush2.bf16.xpose.msra.mxu0 0
    %1069 = vmatprep.mubr.bf16.mxu0 0
    %1070 = vmatmul.mubr.bf16.gmra.mxu0 %v1014
    %v1071 = vpop.f32.mrf.mxu0
    %v1072 = vadd.f32 %v915, %v1071
    %v1073 = vpop.f32.mrf.mxu0
    %v1074 = vpop.f32.mrf.mxu0
    %v1075 = vadd.f32 %v916, %v1074
    %v1076 = vpop.f32.mrf.mxu0
    %1077 = vmatprep.mubr.bf16.mxu0 0
    %1078 = vmatmul.mubr.bf16.gmra.mxu0 %v1017
    %v1079 = vpop.f32.mrf.mxu0
    %v1080 = vadd.f32 %v917, %v1079
    %v1081 = vpop.f32.mrf.mxu0
    %v1082 = vpop.f32.mrf.mxu0
    %v1083 = vadd.f32 %v918, %v1082
    %v1084 = vpop.f32.mrf.mxu0
    %1085 = vmatprep.mubr.bf16.mxu0 0
    %1086 = vmatmul.mubr.bf16.gmra.mxu0 %v1020
    %v1087 = vpop.f32.mrf.mxu0
    %v1088 = vadd.f32 %v919, %v1087
    %v1089 = vpop.f32.mrf.mxu0
    %v1090 = vpop.f32.mrf.mxu0
    %v1091 = vadd.f32 %v920, %v1090
    %v1092 = vpop.f32.mrf.mxu0
    %1093 = vmatprep.mubr.bf16.mxu0 0
    %1094 = vmatmul.mubr.bf16.gmra.mxu0 %v1023
    %v1095 = vpop.f32.mrf.mxu0
    %v1096 = vadd.f32 %v921, %v1095
    %v1097 = vpop.f32.mrf.mxu0
    %v1098 = vpop.f32.mrf.mxu0
    %v1099 = vadd.f32 %v922, %v1098
    %v1100 = vpop.f32.mrf.mxu0
    %1101 = vdwg.mxu0
    %vm1102 = vcmask 523264
    %v1103 = vsel %vm1102, %v983, -inf
    %1104 = vmax.xlane.f32.xlu0 %v1103
    %v1105 = vpop.xlane.xlu0 %1104
    %v1106 = vsel %vm1102, %v986, -inf
    %1107 = vmax.xlane.f32.xlu0 %v1106
    %v1108 = vpop.xlane.xlu0 %1107
    %v1109 = vsel %vm1102, %v991, -inf
    %1110 = vmax.xlane.f32.xlu0 %v1109
    %v1111 = vpop.xlane.xlu0 %1110
    %v1112 = vsel %vm1102, %v994, -inf
    %1113 = vmax.xlane.f32.xlu0 %v1112
    %v1114 = vpop.xlane.xlu0 %1113
    %v1115 = vsel %vm1102, %v999, -inf
    %1116 = vmax.xlane.f32.xlu0 %v1115
    %v1117 = vpop.xlane.xlu0 %1116
    %v1118 = vsel %vm1102, %v1002, -inf
    %1119 = vmax.xlane.f32.xlu0 %v1118
    %v1120 = vpop.xlane.xlu0 %1119
    %v1121 = vsel %vm1102, %v1007, -inf
    %1122 = vmax.xlane.f32.xlu0 %v1121
    %v1123 = vpop.xlane.xlu0 %1122
    %v1124 = vsel %vm1102, %v1010, -inf
    %1125 = vmax.xlane.f32.xlu0 %v1124
    %v1126 = vpop.xlane.xlu0 %1125
    %v1127 = vsel %vm1102, %v1072, -inf
    %1128 = vmax.xlane.f32.xlu0 %v1127
    %v1129 = vpop.xlane.xlu0 %1128
    %v1130 = vsel %vm1102, %v1075, -inf
    %1131 = vmax.xlane.f32.xlu0 %v1130
    %v1132 = vpop.xlane.xlu0 %1131
    %v1133 = vsel %vm1102, %v1080, -inf
    %1134 = vmax.xlane.f32.xlu0 %v1133
    %v1135 = vpop.xlane.xlu0 %1134
    %v1136 = vsel %vm1102, %v1083, -inf
    %1137 = vmax.xlane.f32.xlu0 %v1136
    %v1138 = vpop.xlane.xlu0 %1137
    %v1139 = vsel %vm1102, %v1088, -inf
    %1140 = vmax.xlane.f32.xlu0 %v1139
    %v1141 = vpop.xlane.xlu0 %1140
    %v1142 = vsel %vm1102, %v1091, -inf
    %1143 = vmax.xlane.f32.xlu0 %v1142
    %v1144 = vpop.xlane.xlu0 %1143
    %v1145 = vsel %vm1102, %v1096, -inf
    %1146 = vmax.xlane.f32.xlu0 %v1145
    %v1147 = vpop.xlane.xlu0 %1146
    %v1148 = vsel %vm1102, %v1099, -inf
    %1149 = vmax.xlane.f32.xlu0 %v1148
    %v1150 = vpop.xlane.xlu0 %1149
    %v1151 = vsub.f32 %v983, %v1105
    %v1152 = vsub.f32 %v986, %v1108
    %v1153 = vsub.f32 %v991, %v1111
    %v1154 = vsub.f32 %v994, %v1114
    %v1155 = vsub.f32 %v999, %v1117
    %v1156 = vsub.f32 %v1002, %v1120
    %v1157 = vsub.f32 %v1007, %v1123
    %v1158 = vsub.f32 %v1010, %v1126
    %v1159 = vsub.f32 %v1072, %v1129
    %v1160 = vsub.f32 %v1075, %v1132
    %v1161 = vsub.f32 %v1080, %v1135
    %v1162 = vsub.f32 %v1083, %v1138
    %v1163 = vsub.f32 %v1088, %v1141
    %v1164 = vsub.f32 %v1091, %v1144
    %v1165 = vsub.f32 %v1096, %v1147
    %v1166 = vsub.f32 %v1099, %v1150
    %v1167 = vmul.f32 %v1151, 1.442695
    %v1168 = vpow.pop %v1167
    %v1169 = vmul.f32 %v1152, 1.442695
    %v1170 = vpow.pop %v1169
    %v1171 = vmul.f32 %v1153, 1.442695
    %v1172 = vpow.pop %v1171
    %v1173 = vmul.f32 %v1154, 1.442695
    %v1174 = vpow.pop %v1173
    %v1175 = vmul.f32 %v1155, 1.442695
    %v1176 = vpow.pop %v1175
    %v1177 = vmul.f32 %v1156, 1.442695
    %v1178 = vpow.pop %v1177
    %v1179 = vmul.f32 %v1157, 1.442695
    %v1180 = vpow.pop %v1179
    %v1181 = vmul.f32 %v1158, 1.442695
    %v1182 = vpow.pop %v1181
    %v1183 = vmul.f32 %v1159, 1.442695
    %v1184 = vpow.pop %v1183
    %v1185 = vmul.f32 %v1160, 1.442695
    %v1186 = vpow.pop %v1185
    %v1187 = vmul.f32 %v1161, 1.442695
    %v1188 = vpow.pop %v1187
    %v1189 = vmul.f32 %v1162, 1.442695
    %v1190 = vpow.pop %v1189
    %v1191 = vmul.f32 %v1163, 1.442695
    %v1192 = vpow.pop %v1191
    %v1193 = vmul.f32 %v1164, 1.442695
    %v1194 = vpow.pop %v1193
    %v1195 = vmul.f32 %v1165, 1.442695
    %v1196 = vpow.pop %v1195
    %v1197 = vmul.f32 %v1166, 1.442695
    %v1198 = vpow.pop %v1197
    %v1199 = vsel %vm1102, %v1168, 0.0
    %1200 = vadd.xlane.f32.xlu0 %v1199
    %v1201 = vpop.xlane.xlu0 %1200
    %v1202 = vsel %vm1102, %v1170, 0.0
    %1203 = vadd.xlane.f32.xlu0 %v1202
    %v1204 = vpop.xlane.xlu0 %1203
    %v1205 = vsel %vm1102, %v1172, 0.0
    %1206 = vadd.xlane.f32.xlu0 %v1205
    %v1207 = vpop.xlane.xlu0 %1206
    %v1208 = vsel %vm1102, %v1174, 0.0
    %1209 = vadd.xlane.f32.xlu0 %v1208
    %v1210 = vpop.xlane.xlu0 %1209
    %v1211 = vsel %vm1102, %v1176, 0.0
    %1212 = vadd.xlane.f32.xlu0 %v1211
    %v1213 = vpop.xlane.xlu0 %1212
    %v1214 = vsel %vm1102, %v1178, 0.0
    %1215 = vadd.xlane.f32.xlu0 %v1214
    %v1216 = vpop.xlane.xlu0 %1215
    %v1217 = vsel %vm1102, %v1180, 0.0
    %1218 = vadd.xlane.f32.xlu0 %v1217
    %v1219 = vpop.xlane.xlu0 %1218
    %v1220 = vsel %vm1102, %v1182, 0.0
    %1221 = vadd.xlane.f32.xlu0 %v1220
    %v1222 = vpop.xlane.xlu0 %1221
    %v1223 = vsel %vm1102, %v1184, 0.0
    %1224 = vadd.xlane.f32.xlu0 %v1223
    %v1225 = vpop.xlane.xlu0 %1224
    %v1226 = vsel %vm1102, %v1186, 0.0
    %1227 = vadd.xlane.f32.xlu0 %v1226
    %v1228 = vpop.xlane.xlu0 %1227
    %v1229 = vsel %vm1102, %v1188, 0.0
    %1230 = vadd.xlane.f32.xlu0 %v1229
    %v1231 = vpop.xlane.xlu0 %1230
    %v1232 = vsel %vm1102, %v1190, 0.0
    %1233 = vadd.xlane.f32.xlu0 %v1232
    %v1234 = vpop.xlane.xlu0 %1233
    %v1235 = vsel %vm1102, %v1192, 0.0
    %1236 = vadd.xlane.f32.xlu0 %v1235
    %v1237 = vpop.xlane.xlu0 %1236
    %v1238 = vsel %vm1102, %v1194, 0.0
    %1239 = vadd.xlane.f32.xlu0 %v1238
    %v1240 = vpop.xlane.xlu0 %1239
    %v1241 = vsel %vm1102, %v1196, 0.0
    %1242 = vadd.xlane.f32.xlu0 %v1241
    %v1243 = vpop.xlane.xlu0 %1242
    %v1244 = vsel %vm1102, %v1198, 0.0
    %1245 = vadd.xlane.f32.xlu0 %v1244
    %v1246 = vpop.xlane.xlu0 %1245
    %v1247 = vrcp.pop %v1201
    %v1248 = vrcp.pop %v1204
    %v1249 = vrcp.pop %v1207
    %v1250 = vrcp.pop %v1210
    %v1251 = vrcp.pop %v1213
    %v1252 = vrcp.pop %v1216
    %v1253 = vrcp.pop %v1219
    %v1254 = vrcp.pop %v1222
    %v1255 = vrcp.pop %v1225
    %v1256 = vrcp.pop %v1228
    %v1257 = vrcp.pop %v1231
    %v1258 = vrcp.pop %v1234
    %v1259 = vrcp.pop %v1237
    %v1260 = vrcp.pop %v1240
    %v1261 = vrcp.pop %v1243
    %v1262 = vrcp.pop %v1246
    %v1263 = vmul.f32 %v1168, %v1247
    %v1264 = vmul.f32 %v1170, %v1248
    %v1265 = vmul.f32 %v1172, %v1249
    %v1266 = vmul.f32 %v1174, %v1250
    %v1267 = vmul.f32 %v1176, %v1251
    %v1268 = vmul.f32 %v1178, %v1252
    %v1269 = vmul.f32 %v1180, %v1253
    %v1270 = vmul.f32 %v1182, %v1254
    %v1271 = vmul.f32 %v1184, %v1255
    %v1272 = vmul.f32 %v1186, %v1256
    %v1273 = vmul.f32 %v1188, %v1257
    %v1274 = vmul.f32 %v1190, %v1258
    %v1275 = vmul.f32 %v1192, %v1259
    %v1276 = vmul.f32 %v1194, %v1260
    %v1277 = vmul.f32 %v1196, %v1261
    %v1278 = vmul.f32 %v1198, %v1262
    %v1279 = vpack.c.bf16 %v1264, %v1263
    %v1280 = vpack.c.bf16 %v1266, %v1265
    %v1281 = vpack.c.bf16 %v1268, %v1267
    %v1282 = vpack.c.bf16 %v1270, %v1269
    %v1283 = vpack.c.bf16 %v1272, %v1271
    %v1284 = vpack.c.bf16 %v1274, %v1273
    %v1285 = vpack.c.bf16 %v1276, %v1275
    %v1286 = vpack.c.bf16 %v1278, %v1277
    %1291 = vrot.lane.b32.xlu0 %v907, 96
    %v1292 = vpop.permute.xlu0 %1291
    %1293 = vrot.lane.b32.xlu0 %v908, 96
    %v1294 = vpop.permute.xlu0 %1293
    %1295 = vrot.lane.b32.xlu0 %v909, 96
    %v1296 = vpop.permute.xlu0 %1295
    %1297 = vrot.lane.b32.xlu0 %v910, 96
    %v1298 = vpop.permute.xlu0 %1297
    %v1304 = vsel %vm1102, %v1279, 0
    %v1307 = vsel %vm1102, %v1280, 0
    %v1310 = vsel %vm1102, %v1281, 0
    %v1313 = vsel %vm1102, %v1282, 0
    %1315 = vmatprep.subr.bf16.mxu0 0
    %1316 = vmatpush1.bf16.msra.mxu0 0
    %1317 = vmatprep.subr.bf16.mxu0 0
    %1318 = vmatpush1.bf16.msra.mxu0 0
    %1319 = vmatprep.subr.bf16.mxu0 0
    %1320 = vmatpush1.bf16.msra.mxu0 0
    %1321 = vmatprep.subr.bf16.mxu0 0
    %1322 = vmatpush1.bf16.msra.mxu0 0
    %1323 = vmatprep.subr.bf16.mxu0 0
    %1324 = vmatpush1.bf16.msra.mxu0 %v1298
    %1325 = vmatprep.subr.bf16.mxu0 0
    %1326 = vmatpush1.bf16.msra.mxu0 %v1296
    %1327 = vmatprep.subr.bf16.mxu0 0
    %1328 = vmatpush1.bf16.msra.mxu0 %v1294
    %1329 = vmatprep.subr.bf16.mxu0 0
    %1330 = vmatpush1.bf16.msra.mxu0 %v1292
    %1331 = vmatprep.subr.bf16.mxu0 0
    %1332 = vmatpush2.bf16.msra.mxu0 0
    %1333 = vmatprep.subr.bf16.mxu0 0
    %1334 = vmatpush2.bf16.msra.mxu0 0
    %1335 = vmatprep.subr.bf16.mxu0 0
    %1336 = vmatpush2.bf16.msra.mxu0 0
    %1337 = vmatprep.subr.bf16.mxu0 0
    %1338 = vmatpush2.bf16.msra.mxu0 0
    %1339 = vmatprep.subr.bf16.mxu0 0
    %1340 = vmatpush2.bf16.msra.mxu0 0
    %1341 = vmatprep.subr.bf16.mxu0 0
    %1342 = vmatpush2.bf16.msra.mxu0 0
    %1343 = vmatprep.subr.bf16.mxu0 0
    %1344 = vmatpush2.bf16.msra.mxu0 0
    %1345 = vmatprep.subr.bf16.mxu0 0
    %1346 = vmatpush2.bf16.msra.mxu0 0
    %1347 = vmatprep.mubr.bf16.mxu0 0
    %1348 = vmatmul.mubr.bf16.gmra.mxu0 %v1304
    %v1349 = vpop.f32.mrf.mxu0
    %v1350 = vadd.f32 0.0, %v1349
    %v1351 = vpop.f32.mrf.mxu0
    %v1352 = vpop.f32.mrf.mxu0
    %v1353 = vadd.f32 0.0, %v1352
    %v1354 = vpop.f32.mrf.mxu0
    %1355 = vmatprep.mubr.bf16.mxu0 0
    %1356 = vmatmul.mubr.bf16.gmra.mxu0 %v1307
    %v1357 = vpop.f32.mrf.mxu0
    %v1358 = vadd.f32 0.0, %v1357
    %v1359 = vpop.f32.mrf.mxu0
    %v1360 = vpop.f32.mrf.mxu0
    %v1361 = vadd.f32 0.0, %v1360
    %v1362 = vpop.f32.mrf.mxu0
    %1363 = vmatprep.mubr.bf16.mxu0 0
    %1364 = vmatmul.mubr.bf16.gmra.mxu0 %v1310
    %v1365 = vpop.f32.mrf.mxu0
    %v1366 = vadd.f32 0.0, %v1365
    %v1367 = vpop.f32.mrf.mxu0
    %v1368 = vpop.f32.mrf.mxu0
    %v1369 = vadd.f32 0.0, %v1368
    %v1370 = vpop.f32.mrf.mxu0
    %1371 = vmatprep.mubr.bf16.mxu0 0
    %1372 = vmatmul.mubr.bf16.gmra.mxu0 %v1313
    %v1373 = vpop.f32.mrf.mxu0
    %v1374 = vadd.f32 0.0, %v1373
    %v1375 = vpop.f32.mrf.mxu0
    %v1376 = vpop.f32.mrf.mxu0
    %v1377 = vadd.f32 0.0, %v1376
    %v1378 = vpop.f32.mrf.mxu0
    %1379 = vdwg.mxu0
    %1384 = vrot.lane.b32.xlu0 %v911, 96
    %v1385 = vpop.permute.xlu0 %1384
    %1386 = vrot.lane.b32.xlu0 %v912, 96
    %v1387 = vpop.permute.xlu0 %1386
    %1388 = vrot.lane.b32.xlu0 %v913, 96
    %v1389 = vpop.permute.xlu0 %1388
    %1390 = vrot.lane.b32.xlu0 %v914, 96
    %v1391 = vpop.permute.xlu0 %1390
    %v1397 = vsel %vm1102, %v1283, 0
    %v1400 = vsel %vm1102, %v1284, 0
    %v1403 = vsel %vm1102, %v1285, 0
    %v1406 = vsel %vm1102, %v1286, 0
    %1408 = vmatprep.subr.bf16.mxu0 0
    %1409 = vmatpush1.bf16.msra.mxu0 0
    %1410 = vmatprep.subr.bf16.mxu0 0
    %1411 = vmatpush1.bf16.msra.mxu0 0
    %1412 = vmatprep.subr.bf16.mxu0 0
    %1413 = vmatpush1.bf16.msra.mxu0 0
    %1414 = vmatprep.subr.bf16.mxu0 0
    %1415 = vmatpush1.bf16.msra.mxu0 0
    %1416 = vmatprep.subr.bf16.mxu0 0
    %1417 = vmatpush1.bf16.msra.mxu0 %v1391
    %1418 = vmatprep.subr.bf16.mxu0 0
    %1419 = vmatpush1.bf16.msra.mxu0 %v1389
    %1420 = vmatprep.subr.bf16.mxu0 0
    %1421 = vmatpush1.bf16.msra.mxu0 %v1387
    %1422 = vmatprep.subr.bf16.mxu0 0
    %1423 = vmatpush1.bf16.msra.mxu0 %v1385
    %1424 = vmatprep.subr.bf16.mxu0 0
    %1425 = vmatpush2.bf16.msra.mxu0 0
    %1426 = vmatprep.subr.bf16.mxu0 0
    %1427 = vmatpush2.bf16.msra.mxu0 0
    %1428 = vmatprep.subr.bf16.mxu0 0
    %1429 = vmatpush2.bf16.msra.mxu0 0
    %1430 = vmatprep.subr.bf16.mxu0 0
    %1431 = vmatpush2.bf16.msra.mxu0 0
    %1432 = vmatprep.subr.bf16.mxu0 0
    %1433 = vmatpush2.bf16.msra.mxu0 0
    %1434 = vmatprep.subr.bf16.mxu0 0
    %1435 = vmatpush2.bf16.msra.mxu0 0
    %1436 = vmatprep.subr.bf16.mxu0 0
    %1437 = vmatpush2.bf16.msra.mxu0 0
    %1438 = vmatprep.subr.bf16.mxu0 0
    %1439 = vmatpush2.bf16.msra.mxu0 0
    %1440 = vmatprep.mubr.bf16.mxu0 0
    %1441 = vmatmul.mubr.bf16.gmra.mxu0 %v1397
    %v1442 = vpop.f32.mrf.mxu0
    %v1443 = vadd.f32 0.0, %v1442
    %v1444 = vpop.f32.mrf.mxu0
    %v1445 = vpop.f32.mrf.mxu0
    %v1446 = vadd.f32 0.0, %v1445
    %v1447 = vpop.f32.mrf.mxu0
    %1448 = vmatprep.mubr.bf16.mxu0 0
    %1449 = vmatmul.mubr.bf16.gmra.mxu0 %v1400
    %v1450 = vpop.f32.mrf.mxu0
    %v1451 = vadd.f32 0.0, %v1450
    %v1452 = vpop.f32.mrf.mxu0
    %v1453 = vpop.f32.mrf.mxu0
    %v1454 = vadd.f32 0.0, %v1453
    %v1455 = vpop.f32.mrf.mxu0
    %1456 = vmatprep.mubr.bf16.mxu0 0
    %1457 = vmatmul.mubr.bf16.gmra.mxu0 %v1403
    %v1458 = vpop.f32.mrf.mxu0
    %v1459 = vadd.f32 0.0, %v1458
    %v1460 = vpop.f32.mrf.mxu0
    %v1461 = vpop.f32.mrf.mxu0
    %v1462 = vadd.f32 0.0, %v1461
    %v1463 = vpop.f32.mrf.mxu0
    %1464 = vmatprep.mubr.bf16.mxu0 0
    %1465 = vmatmul.mubr.bf16.gmra.mxu0 %v1406
    %v1466 = vpop.f32.mrf.mxu0
    %v1467 = vadd.f32 0.0, %v1466
    %v1468 = vpop.f32.mrf.mxu0
    %v1469 = vpop.f32.mrf.mxu0
    %v1470 = vadd.f32 0.0, %v1469
    %v1471 = vpop.f32.mrf.mxu0
    %1472 = vdwg.mxu0
    %v1473 = vpack.c.bf16 %v1353, %v1350
    %v1474 = vpack.c.bf16 %v1361, %v1358
    %v1475 = vpack.c.bf16 %v1369, %v1366
    %v1476 = vpack.c.bf16 %v1377, %v1374
    %v1477 = vpack.c.bf16 %v1446, %v1443
    %v1478 = vpack.c.bf16 %v1454, %v1451
    %v1479 = vpack.c.bf16 %v1462, %v1459
    %v1480 = vpack.c.bf16 %v1470, %v1467
    %v1481 = vld [vmem:[%s8] sm:$0xf]
    %s1482 = scalar_lea.vmem %s10, 64
    %v1483 = vld [vmem:[%s1482] sm:$0xff]
    %v1484 = vld [vmem:[%s1482 + $0x8] sm:$0xff]
    %v1485 = vld [vmem:[%s1482 + $0x10] sm:$0xff]
    %v1486 = vld [vmem:[%s1482 + $0x18] sm:$0xff]
    %v1487 = vld [vmem:[%s1482 + $0x20] sm:$0xff]
    %v1488 = vld [vmem:[%s1482 + $0x28] sm:$0xff]
    %v1489 = vld [vmem:[%s1482 + $0x30] sm:$0xff]
    %v1490 = vld [vmem:[%s1482 + $0x38] sm:$0xff]
    %1495 = vrot.lane.b32.xlu0 %v755, 120
    %v1496 = vpop.permute.xlu0 %1495
    %1497 = vrot.lane.b32.xlu0 %v756, 120
    %v1498 = vpop.permute.xlu0 %1497
    %1499 = vrot.lane.b32.xlu0 %v757, 120
    %v1500 = vpop.permute.xlu0 %1499
    %1501 = vrot.lane.b32.xlu0 %v758, 120
    %v1502 = vpop.permute.xlu0 %1501
    %1503 = vrot.lane.b32.xlu0 %v907, 120
    %v1504 = vpop.permute.xlu0 %1503
    %1505 = vrot.lane.b32.xlu0 %v908, 120
    %v1506 = vpop.permute.xlu0 %1505
    %1507 = vrot.lane.b32.xlu0 %v909, 120
    %v1508 = vpop.permute.xlu0 %1507
    %1509 = vrot.lane.b32.xlu0 %v910, 120
    %v1510 = vpop.permute.xlu0 %1509
    %v1512 = vsel %vm923, %v1496, 0
    %v1515 = vsel %vm923, %v1498, 0
    %v1518 = vsel %vm923, %v1500, 0
    %v1521 = vsel %vm923, %v1502, 0
    %v1524 = vsel %vm923, %v1504, 0
    %v1527 = vsel %vm923, %v1506, 0
    %v1530 = vsel %vm923, %v1508, 0
    %v1533 = vsel %vm923, %v1510, 0
    %1535 = vmatprep.subr.bf16.mxu0 0
    %1536 = vmatpush1.bf16.xpose.msra.mxu0 0
    %1537 = vmatprep.subr.bf16.mxu0 0
    %1538 = vmatpush1.bf16.xpose.msra.mxu0 0
    %1539 = vmatprep.subr.bf16.mxu0 0
    %1540 = vmatpush1.bf16.xpose.msra.mxu0 0
    %1541 = vmatprep.subr.bf16.mxu0 0
    %1542 = vmatpush1.bf16.xpose.msra.mxu0 0
    %1543 = vmatprep.subr.bf16.mxu0 0
    %1544 = vmatpush1.bf16.xpose.msra.mxu0 %v1533
    %1545 = vmatprep.subr.bf16.mxu0 0
    %1546 = vmatpush1.bf16.xpose.msra.mxu0 %v1530
    %1547 = vmatprep.subr.bf16.mxu0 0
    %1548 = vmatpush1.bf16.xpose.msra.mxu0 %v1527
    %1549 = vmatprep.subr.bf16.mxu0 0
    %1550 = vmatpush1.bf16.xpose.msra.mxu0 %v1524
    %1551 = vmatprep.subr.bf16.mxu0 0
    %1552 = vmatpush2.bf16.xpose.msra.mxu0 0
    %1553 = vmatprep.subr.bf16.mxu0 0
    %1554 = vmatpush2.bf16.xpose.msra.mxu0 0
    %1555 = vmatprep.subr.bf16.mxu0 0
    %1556 = vmatpush2.bf16.xpose.msra.mxu0 0
    %1557 = vmatprep.subr.bf16.mxu0 0
    %1558 = vmatpush2.bf16.xpose.msra.mxu0 0
    %1559 = vmatprep.subr.bf16.mxu0 0
    %1560 = vmatpush2.bf16.xpose.msra.mxu0 0
    %1561 = vmatprep.subr.bf16.mxu0 0
    %1562 = vmatpush2.bf16.xpose.msra.mxu0 0
    %1563 = vmatprep.subr.bf16.mxu0 0
    %1564 = vmatpush2.bf16.xpose.msra.mxu0 0
    %1565 = vmatprep.subr.bf16.mxu0 0
    %1566 = vmatpush2.bf16.xpose.msra.mxu0 0
    %1567 = vmatprep.mubr.bf16.mxu0 0
    %1568 = vmatmul.mubr.bf16.gmra.mxu0 %v1512
    %v1569 = vpop.f32.mrf.mxu0
    %v1570 = vadd.f32 %v1483, %v1569
    %v1571 = vpop.f32.mrf.mxu0
    %v1572 = vpop.f32.mrf.mxu0
    %v1573 = vadd.f32 %v1484, %v1572
    %v1574 = vpop.f32.mrf.mxu0
    %1575 = vmatprep.mubr.bf16.mxu0 0
    %1576 = vmatmul.mubr.bf16.gmra.mxu0 %v1515
    %v1577 = vpop.f32.mrf.mxu0
    %v1578 = vadd.f32 %v1485, %v1577
    %v1579 = vpop.f32.mrf.mxu0
    %v1580 = vpop.f32.mrf.mxu0
    %v1581 = vadd.f32 %v1486, %v1580
    %v1582 = vpop.f32.mrf.mxu0
    %1583 = vmatprep.mubr.bf16.mxu0 0
    %1584 = vmatmul.mubr.bf16.gmra.mxu0 %v1518
    %v1585 = vpop.f32.mrf.mxu0
    %v1586 = vadd.f32 %v1487, %v1585
    %v1587 = vpop.f32.mrf.mxu0
    %v1588 = vpop.f32.mrf.mxu0
    %v1589 = vadd.f32 %v1488, %v1588
    %v1590 = vpop.f32.mrf.mxu0
    %1591 = vmatprep.mubr.bf16.mxu0 0
    %1592 = vmatmul.mubr.bf16.gmra.mxu0 %v1521
    %v1593 = vpop.f32.mrf.mxu0
    %v1594 = vadd.f32 %v1489, %v1593
    %v1595 = vpop.f32.mrf.mxu0
    %v1596 = vpop.f32.mrf.mxu0
    %v1597 = vadd.f32 %v1490, %v1596
    %v1598 = vpop.f32.mrf.mxu0
    %1599 = vdwg.mxu0
    %1604 = vrot.lane.b32.xlu0 %v759, 120
    %v1605 = vpop.permute.xlu0 %1604
    %1606 = vrot.lane.b32.xlu0 %v760, 120
    %v1607 = vpop.permute.xlu0 %1606
    %1608 = vrot.lane.b32.xlu0 %v761, 120
    %v1609 = vpop.permute.xlu0 %1608
    %1610 = vrot.lane.b32.xlu0 %v762, 120
    %v1611 = vpop.permute.xlu0 %1610
    %1612 = vrot.lane.b32.xlu0 %v911, 120
    %v1613 = vpop.permute.xlu0 %1612
    %1614 = vrot.lane.b32.xlu0 %v912, 120
    %v1615 = vpop.permute.xlu0 %1614
    %1616 = vrot.lane.b32.xlu0 %v913, 120
    %v1617 = vpop.permute.xlu0 %1616
    %1618 = vrot.lane.b32.xlu0 %v914, 120
    %v1619 = vpop.permute.xlu0 %1618
    %v1621 = vsel %vm923, %v1605, 0
    %v1624 = vsel %vm923, %v1607, 0
    %v1627 = vsel %vm923, %v1609, 0
    %v1630 = vsel %vm923, %v1611, 0
    %v1633 = vsel %vm923, %v1613, 0
    %v1636 = vsel %vm923, %v1615, 0
    %v1639 = vsel %vm923, %v1617, 0
    %v1642 = vsel %vm923, %v1619, 0
    %1644 = vmatprep.subr.bf16.mxu0 0
    %1645 = vmatpush1.bf16.xpose.msra.mxu0 0
    %1646 = vmatprep.subr.bf16.mxu0 0
    %1647 = vmatpush1.bf16.xpose.msra.mxu0 0
    %1648 = vmatprep.subr.bf16.mxu0 0
    %1649 = vmatpush1.bf16.xpose.msra.mxu0 0
    %1650 = vmatprep.subr.bf16.mxu0 0
    %1651 = vmatpush1.bf16.xpose.msra.mxu0 0
    %1652 = vmatprep.subr.bf16.mxu0 0
    %1653 = vmatpush1.bf16.xpose.msra.mxu0 %v1642
    %1654 = vmatprep.subr.bf16.mxu0 0
    %1655 = vmatpush1.bf16.xpose.msra.mxu0 %v1639
    %1656 = vmatprep.subr.bf16.mxu0 0
    %1657 = vmatpush1.bf16.xpose.msra.mxu0 %v1636
    %1658 = vmatprep.subr.bf16.mxu0 0
    %1659 = vmatpush1.bf16.xpose.msra.mxu0 %v1633
    %1660 = vmatprep.subr.bf16.mxu0 0
    %1661 = vmatpush2.bf16.xpose.msra.mxu0 0
    %1662 = vmatprep.subr.bf16.mxu0 0
    %1663 = vmatpush2.bf16.xpose.msra.mxu0 0
    %1664 = vmatprep.subr.bf16.mxu0 0
    %1665 = vmatpush2.bf16.xpose.msra.mxu0 0
    %1666 = vmatprep.subr.bf16.mxu0 0
    %1667 = vmatpush2.bf16.xpose.msra.mxu0 0
    %1668 = vmatprep.subr.bf16.mxu0 0
    %1669 = vmatpush2.bf16.xpose.msra.mxu0 0
    %1670 = vmatprep.subr.bf16.mxu0 0
    %1671 = vmatpush2.bf16.xpose.msra.mxu0 0
    %1672 = vmatprep.subr.bf16.mxu0 0
    %1673 = vmatpush2.bf16.xpose.msra.mxu0 0
    %1674 = vmatprep.subr.bf16.mxu0 0
    %1675 = vmatpush2.bf16.xpose.msra.mxu0 0
    %1676 = vmatprep.mubr.bf16.mxu0 0
    %1677 = vmatmul.mubr.bf16.gmra.mxu0 %v1621
    %v1678 = vpop.f32.mrf.mxu0
    %v1679 = vadd.f32 %v1483, %v1678
    %v1680 = vpop.f32.mrf.mxu0
    %v1681 = vpop.f32.mrf.mxu0
    %v1682 = vadd.f32 %v1484, %v1681
    %v1683 = vpop.f32.mrf.mxu0
    %1684 = vmatprep.mubr.bf16.mxu0 0
    %1685 = vmatmul.mubr.bf16.gmra.mxu0 %v1624
    %v1686 = vpop.f32.mrf.mxu0
    %v1687 = vadd.f32 %v1485, %v1686
    %v1688 = vpop.f32.mrf.mxu0
    %v1689 = vpop.f32.mrf.mxu0
    %v1690 = vadd.f32 %v1486, %v1689
    %v1691 = vpop.f32.mrf.mxu0
    %1692 = vmatprep.mubr.bf16.mxu0 0
    %1693 = vmatmul.mubr.bf16.gmra.mxu0 %v1627
    %v1694 = vpop.f32.mrf.mxu0
    %v1695 = vadd.f32 %v1487, %v1694
    %v1696 = vpop.f32.mrf.mxu0
    %v1697 = vpop.f32.mrf.mxu0
    %v1698 = vadd.f32 %v1488, %v1697
    %v1699 = vpop.f32.mrf.mxu0
    %1700 = vmatprep.mubr.bf16.mxu0 0
    %1701 = vmatmul.mubr.bf16.gmra.mxu0 %v1630
    %v1702 = vpop.f32.mrf.mxu0
    %v1703 = vadd.f32 %v1489, %v1702
    %v1704 = vpop.f32.mrf.mxu0
    %v1705 = vpop.f32.mrf.mxu0
    %v1706 = vadd.f32 %v1490, %v1705
    %v1707 = vpop.f32.mrf.mxu0
    %1708 = vdwg.mxu0
    %v1709 = vsel %vm1102, %v1570, -inf
    %1710 = vmax.xlane.f32.xlu0 %v1709
    %v1711 = vpop.xlane.xlu0 %1710
    %v1712 = vsel %vm1102, %v1573, -inf
    %1713 = vmax.xlane.f32.xlu0 %v1712
    %v1714 = vpop.xlane.xlu0 %1713
    %v1715 = vsel %vm1102, %v1578, -inf
    %1716 = vmax.xlane.f32.xlu0 %v1715
    %v1717 = vpop.xlane.xlu0 %1716
    %v1718 = vsel %vm1102, %v1581, -inf
    %1719 = vmax.xlane.f32.xlu0 %v1718
    %v1720 = vpop.xlane.xlu0 %1719
    %v1721 = vsel %vm1102, %v1586, -inf
    %1722 = vmax.xlane.f32.xlu0 %v1721
    %v1723 = vpop.xlane.xlu0 %1722
    %v1724 = vsel %vm1102, %v1589, -inf
    %1725 = vmax.xlane.f32.xlu0 %v1724
    %v1726 = vpop.xlane.xlu0 %1725
    %v1727 = vsel %vm1102, %v1594, -inf
    %1728 = vmax.xlane.f32.xlu0 %v1727
    %v1729 = vpop.xlane.xlu0 %1728
    %v1730 = vsel %vm1102, %v1597, -inf
    %1731 = vmax.xlane.f32.xlu0 %v1730
    %v1732 = vpop.xlane.xlu0 %1731
    %v1733 = vsel %vm1102, %v1679, -inf
    %1734 = vmax.xlane.f32.xlu0 %v1733
    %v1735 = vpop.xlane.xlu0 %1734
    %v1736 = vsel %vm1102, %v1682, -inf
    %1737 = vmax.xlane.f32.xlu0 %v1736
    %v1738 = vpop.xlane.xlu0 %1737
    %v1739 = vsel %vm1102, %v1687, -inf
    %1740 = vmax.xlane.f32.xlu0 %v1739
    %v1741 = vpop.xlane.xlu0 %1740
    %v1742 = vsel %vm1102, %v1690, -inf
    %1743 = vmax.xlane.f32.xlu0 %v1742
    %v1744 = vpop.xlane.xlu0 %1743
    %v1745 = vsel %vm1102, %v1695, -inf
    %1746 = vmax.xlane.f32.xlu0 %v1745
    %v1747 = vpop.xlane.xlu0 %1746
    %v1748 = vsel %vm1102, %v1698, -inf
    %1749 = vmax.xlane.f32.xlu0 %v1748
    %v1750 = vpop.xlane.xlu0 %1749
    %v1751 = vsel %vm1102, %v1703, -inf
    %1752 = vmax.xlane.f32.xlu0 %v1751
    %v1753 = vpop.xlane.xlu0 %1752
    %v1754 = vsel %vm1102, %v1706, -inf
    %1755 = vmax.xlane.f32.xlu0 %v1754
    %v1756 = vpop.xlane.xlu0 %1755
    %v1757 = vsub.f32 %v1570, %v1711
    %v1758 = vsub.f32 %v1573, %v1714
    %v1759 = vsub.f32 %v1578, %v1717
    %v1760 = vsub.f32 %v1581, %v1720
    %v1761 = vsub.f32 %v1586, %v1723
    %v1762 = vsub.f32 %v1589, %v1726
    %v1763 = vsub.f32 %v1594, %v1729
    %v1764 = vsub.f32 %v1597, %v1732
    %v1765 = vsub.f32 %v1679, %v1735
    %v1766 = vsub.f32 %v1682, %v1738
    %v1767 = vsub.f32 %v1687, %v1741
    %v1768 = vsub.f32 %v1690, %v1744
    %v1769 = vsub.f32 %v1695, %v1747
    %v1770 = vsub.f32 %v1698, %v1750
    %v1771 = vsub.f32 %v1703, %v1753
    %v1772 = vsub.f32 %v1706, %v1756
    %v1773 = vmul.f32 %v1757, 1.442695
    %v1774 = vpow.pop %v1773
    %v1775 = vmul.f32 %v1758, 1.442695
    %v1776 = vpow.pop %v1775
    %v1777 = vmul.f32 %v1759, 1.442695
    %v1778 = vpow.pop %v1777
    %v1779 = vmul.f32 %v1760, 1.442695
    %v1780 = vpow.pop %v1779
    %v1781 = vmul.f32 %v1761, 1.442695
    %v1782 = vpow.pop %v1781
    %v1783 = vmul.f32 %v1762, 1.442695
    %v1784 = vpow.pop %v1783
    %v1785 = vmul.f32 %v1763, 1.442695
    %v1786 = vpow.pop %v1785
    %v1787 = vmul.f32 %v1764, 1.442695
    %v1788 = vpow.pop %v1787
    %v1789 = vmul.f32 %v1765, 1.442695
    %v1790 = vpow.pop %v1789
    %v1791 = vmul.f32 %v1766, 1.442695
    %v1792 = vpow.pop %v1791
    %v1793 = vmul.f32 %v1767, 1.442695
    %v1794 = vpow.pop %v1793
    %v1795 = vmul.f32 %v1768, 1.442695
    %v1796 = vpow.pop %v1795
    %v1797 = vmul.f32 %v1769, 1.442695
    %v1798 = vpow.pop %v1797
    %v1799 = vmul.f32 %v1770, 1.442695
    %v1800 = vpow.pop %v1799
    %v1801 = vmul.f32 %v1771, 1.442695
    %v1802 = vpow.pop %v1801
    %v1803 = vmul.f32 %v1772, 1.442695
    %v1804 = vpow.pop %v1803
    %v1805 = vsel %vm1102, %v1774, 0.0
    %1806 = vadd.xlane.f32.xlu0 %v1805
    %v1807 = vpop.xlane.xlu0 %1806
    %v1808 = vsel %vm1102, %v1776, 0.0
    %1809 = vadd.xlane.f32.xlu0 %v1808
    %v1810 = vpop.xlane.xlu0 %1809
    %v1811 = vsel %vm1102, %v1778, 0.0
    %1812 = vadd.xlane.f32.xlu0 %v1811
    %v1813 = vpop.xlane.xlu0 %1812
    %v1814 = vsel %vm1102, %v1780, 0.0
    %1815 = vadd.xlane.f32.xlu0 %v1814
    %v1816 = vpop.xlane.xlu0 %1815
    %v1817 = vsel %vm1102, %v1782, 0.0
    %1818 = vadd.xlane.f32.xlu0 %v1817
    %v1819 = vpop.xlane.xlu0 %1818
    %v1820 = vsel %vm1102, %v1784, 0.0
    %1821 = vadd.xlane.f32.xlu0 %v1820
    %v1822 = vpop.xlane.xlu0 %1821
    %v1823 = vsel %vm1102, %v1786, 0.0
    %1824 = vadd.xlane.f32.xlu0 %v1823
    %v1825 = vpop.xlane.xlu0 %1824
    %v1826 = vsel %vm1102, %v1788, 0.0
    %1827 = vadd.xlane.f32.xlu0 %v1826
    %v1828 = vpop.xlane.xlu0 %1827
    %v1829 = vsel %vm1102, %v1790, 0.0
    %1830 = vadd.xlane.f32.xlu0 %v1829
    %v1831 = vpop.xlane.xlu0 %1830
    %v1832 = vsel %vm1102, %v1792, 0.0
    %1833 = vadd.xlane.f32.xlu0 %v1832
    %v1834 = vpop.xlane.xlu0 %1833
    %v1835 = vsel %vm1102, %v1794, 0.0
    %1836 = vadd.xlane.f32.xlu0 %v1835
    %v1837 = vpop.xlane.xlu0 %1836
    %v1838 = vsel %vm1102, %v1796, 0.0
    %1839 = vadd.xlane.f32.xlu0 %v1838
    %v1840 = vpop.xlane.xlu0 %1839
    %v1841 = vsel %vm1102, %v1798, 0.0
    %1842 = vadd.xlane.f32.xlu0 %v1841
    %v1843 = vpop.xlane.xlu0 %1842
    %v1844 = vsel %vm1102, %v1800, 0.0
    %1845 = vadd.xlane.f32.xlu0 %v1844
    %v1846 = vpop.xlane.xlu0 %1845
    %v1847 = vsel %vm1102, %v1802, 0.0
    %1848 = vadd.xlane.f32.xlu0 %v1847
    %v1849 = vpop.xlane.xlu0 %1848
    %v1850 = vsel %vm1102, %v1804, 0.0
    %1851 = vadd.xlane.f32.xlu0 %v1850
    %v1852 = vpop.xlane.xlu0 %1851
    %v1853 = vrcp.pop %v1807
    %v1854 = vrcp.pop %v1810
    %v1855 = vrcp.pop %v1813
    %v1856 = vrcp.pop %v1816
    %v1857 = vrcp.pop %v1819
    %v1858 = vrcp.pop %v1822
    %v1859 = vrcp.pop %v1825
    %v1860 = vrcp.pop %v1828
    %v1861 = vrcp.pop %v1831
    %v1862 = vrcp.pop %v1834
    %v1863 = vrcp.pop %v1837
    %v1864 = vrcp.pop %v1840
    %v1865 = vrcp.pop %v1843
    %v1866 = vrcp.pop %v1846
    %v1867 = vrcp.pop %v1849
    %v1868 = vrcp.pop %v1852
    %v1869 = vmul.f32 %v1774, %v1853
    %v1870 = vmul.f32 %v1776, %v1854
    %v1871 = vmul.f32 %v1778, %v1855
    %v1872 = vmul.f32 %v1780, %v1856
    %v1873 = vmul.f32 %v1782, %v1857
    %v1874 = vmul.f32 %v1784, %v1858
    %v1875 = vmul.f32 %v1786, %v1859
    %v1876 = vmul.f32 %v1788, %v1860
    %v1877 = vmul.f32 %v1790, %v1861
    %v1878 = vmul.f32 %v1792, %v1862
    %v1879 = vmul.f32 %v1794, %v1863
    %v1880 = vmul.f32 %v1796, %v1864
    %v1881 = vmul.f32 %v1798, %v1865
    %v1882 = vmul.f32 %v1800, %v1866
    %v1883 = vmul.f32 %v1802, %v1867
    %v1884 = vmul.f32 %v1804, %v1868
    %v1885 = vpack.c.bf16 %v1870, %v1869
    %v1886 = vpack.c.bf16 %v1872, %v1871
    %v1887 = vpack.c.bf16 %v1874, %v1873
    %v1888 = vpack.c.bf16 %v1876, %v1875
    %v1889 = vpack.c.bf16 %v1878, %v1877
    %v1890 = vpack.c.bf16 %v1880, %v1879
    %v1891 = vpack.c.bf16 %v1882, %v1881
    %v1892 = vpack.c.bf16 %v1884, %v1883
    %1893 = vrot.lane.b32.xlu0 %v907, 88
    %v1894 = vpop.permute.xlu0 %1893
    %1895 = vrot.lane.b32.xlu0 %v908, 88
    %v1896 = vpop.permute.xlu0 %1895
    %1897 = vrot.lane.b32.xlu0 %v909, 88
    %v1898 = vpop.permute.xlu0 %1897
    %1899 = vrot.lane.b32.xlu0 %v910, 88
    %v1900 = vpop.permute.xlu0 %1899
    %v1906 = vsel %vm1102, %v1885, 0
    %v1909 = vsel %vm1102, %v1886, 0
    %v1912 = vsel %vm1102, %v1887, 0
    %v1915 = vsel %vm1102, %v1888, 0
    %1917 = vmatprep.subr.bf16.mxu0 0
    %1918 = vmatpush1.bf16.msra.mxu0 0
    %1919 = vmatprep.subr.bf16.mxu0 0
    %1920 = vmatpush1.bf16.msra.mxu0 0
    %1921 = vmatprep.subr.bf16.mxu0 0
    %1922 = vmatpush1.bf16.msra.mxu0 0
    %1923 = vmatprep.subr.bf16.mxu0 0
    %1924 = vmatpush1.bf16.msra.mxu0 0
    %1925 = vmatprep.subr.bf16.mxu0 0
    %1926 = vmatpush1.bf16.msra.mxu0 %v1900
    %1927 = vmatprep.subr.bf16.mxu0 0
    %1928 = vmatpush1.bf16.msra.mxu0 %v1898
    %1929 = vmatprep.subr.bf16.mxu0 0
    %1930 = vmatpush1.bf16.msra.mxu0 %v1896
    %1931 = vmatprep.subr.bf16.mxu0 0
    %1932 = vmatpush1.bf16.msra.mxu0 %v1894
    %1933 = vmatprep.subr.bf16.mxu0 0
    %1934 = vmatpush2.bf16.msra.mxu0 0
    %1935 = vmatprep.subr.bf16.mxu0 0
    %1936 = vmatpush2.bf16.msra.mxu0 0
    %1937 = vmatprep.subr.bf16.mxu0 0
    %1938 = vmatpush2.bf16.msra.mxu0 0
    %1939 = vmatprep.subr.bf16.mxu0 0
    %1940 = vmatpush2.bf16.msra.mxu0 0
    %1941 = vmatprep.subr.bf16.mxu0 0
    %1942 = vmatpush2.bf16.msra.mxu0 0
    %1943 = vmatprep.subr.bf16.mxu0 0
    %1944 = vmatpush2.bf16.msra.mxu0 0
    %1945 = vmatprep.subr.bf16.mxu0 0
    %1946 = vmatpush2.bf16.msra.mxu0 0
    %1947 = vmatprep.subr.bf16.mxu0 0
    %1948 = vmatpush2.bf16.msra.mxu0 0
    %1949 = vmatprep.mubr.bf16.mxu0 0
    %1950 = vmatmul.mubr.bf16.gmra.mxu0 %v1906
    %v1951 = vpop.f32.mrf.mxu0
    %v1952 = vadd.f32 0.0, %v1951
    %v1953 = vpop.f32.mrf.mxu0
    %v1954 = vpop.f32.mrf.mxu0
    %v1955 = vadd.f32 0.0, %v1954
    %v1956 = vpop.f32.mrf.mxu0
    %1957 = vmatprep.mubr.bf16.mxu0 0
    %1958 = vmatmul.mubr.bf16.gmra.mxu0 %v1909
    %v1959 = vpop.f32.mrf.mxu0
    %v1960 = vadd.f32 0.0, %v1959
    %v1961 = vpop.f32.mrf.mxu0
    %v1962 = vpop.f32.mrf.mxu0
    %v1963 = vadd.f32 0.0, %v1962
    %v1964 = vpop.f32.mrf.mxu0
    %1965 = vmatprep.mubr.bf16.mxu0 0
    %1966 = vmatmul.mubr.bf16.gmra.mxu0 %v1912
    %v1967 = vpop.f32.mrf.mxu0
    %v1968 = vadd.f32 0.0, %v1967
    %v1969 = vpop.f32.mrf.mxu0
    %v1970 = vpop.f32.mrf.mxu0
    %v1971 = vadd.f32 0.0, %v1970
    %v1972 = vpop.f32.mrf.mxu0
    %1973 = vmatprep.mubr.bf16.mxu0 0
    %1974 = vmatmul.mubr.bf16.gmra.mxu0 %v1915
    %v1975 = vpop.f32.mrf.mxu0
    %v1976 = vadd.f32 0.0, %v1975
    %v1977 = vpop.f32.mrf.mxu0
    %v1978 = vpop.f32.mrf.mxu0
    %v1979 = vadd.f32 0.0, %v1978
    %v1980 = vpop.f32.mrf.mxu0
    %1981 = vdwg.mxu0
    %1982 = vrot.lane.b32.xlu0 %v911, 88
    %v1983 = vpop.permute.xlu0 %1982
    %1984 = vrot.lane.b32.xlu0 %v912, 88
    %v1985 = vpop.permute.xlu0 %1984
    %1986 = vrot.lane.b32.xlu0 %v913, 88
    %v1987 = vpop.permute.xlu0 %1986
    %1988 = vrot.lane.b32.xlu0 %v914, 88
    %v1989 = vpop.permute.xlu0 %1988
    %v1995 = vsel %vm1102, %v1889, 0
    %v1998 = vsel %vm1102, %v1890, 0
    %v2001 = vsel %vm1102, %v1891, 0
    %v2004 = vsel %vm1102, %v1892, 0
    %2006 = vmatprep.subr.bf16.mxu0 0
    %2007 = vmatpush1.bf16.msra.mxu0 0
    %2008 = vmatprep.subr.bf16.mxu0 0
    %2009 = vmatpush1.bf16.msra.mxu0 0
    %2010 = vmatprep.subr.bf16.mxu0 0
    %2011 = vmatpush1.bf16.msra.mxu0 0
    %2012 = vmatprep.subr.bf16.mxu0 0
    %2013 = vmatpush1.bf16.msra.mxu0 0
    %2014 = vmatprep.subr.bf16.mxu0 0
    %2015 = vmatpush1.bf16.msra.mxu0 %v1989
    %2016 = vmatprep.subr.bf16.mxu0 0
    %2017 = vmatpush1.bf16.msra.mxu0 %v1987
    %2018 = vmatprep.subr.bf16.mxu0 0
    %2019 = vmatpush1.bf16.msra.mxu0 %v1985
    %2020 = vmatprep.subr.bf16.mxu0 0
    %2021 = vmatpush1.bf16.msra.mxu0 %v1983
    %2022 = vmatprep.subr.bf16.mxu0 0
    %2023 = vmatpush2.bf16.msra.mxu0 0
    %2024 = vmatprep.subr.bf16.mxu0 0
    %2025 = vmatpush2.bf16.msra.mxu0 0
    %2026 = vmatprep.subr.bf16.mxu0 0
    %2027 = vmatpush2.bf16.msra.mxu0 0
    %2028 = vmatprep.subr.bf16.mxu0 0
    %2029 = vmatpush2.bf16.msra.mxu0 0
    %2030 = vmatprep.subr.bf16.mxu0 0
    %2031 = vmatpush2.bf16.msra.mxu0 0
    %2032 = vmatprep.subr.bf16.mxu0 0
    %2033 = vmatpush2.bf16.msra.mxu0 0
    %2034 = vmatprep.subr.bf16.mxu0 0
    %2035 = vmatpush2.bf16.msra.mxu0 0
    %2036 = vmatprep.subr.bf16.mxu0 0
    %2037 = vmatpush2.bf16.msra.mxu0 0
    %2038 = vmatprep.mubr.bf16.mxu0 0
    %2039 = vmatmul.mubr.bf16.gmra.mxu0 %v1995
    %v2040 = vpop.f32.mrf.mxu0
    %v2041 = vadd.f32 0.0, %v2040
    %v2042 = vpop.f32.mrf.mxu0
    %v2043 = vpop.f32.mrf.mxu0
    %v2044 = vadd.f32 0.0, %v2043
    %v2045 = vpop.f32.mrf.mxu0
    %2046 = vmatprep.mubr.bf16.mxu0 0
    %2047 = vmatmul.mubr.bf16.gmra.mxu0 %v1998
    %v2048 = vpop.f32.mrf.mxu0
    %v2049 = vadd.f32 0.0, %v2048
    %v2050 = vpop.f32.mrf.mxu0
    %v2051 = vpop.f32.mrf.mxu0
    %v2052 = vadd.f32 0.0, %v2051
    %v2053 = vpop.f32.mrf.mxu0
    %2054 = vmatprep.mubr.bf16.mxu0 0
    %2055 = vmatmul.mubr.bf16.gmra.mxu0 %v2001
    %v2056 = vpop.f32.mrf.mxu0
    %v2057 = vadd.f32 0.0, %v2056
    %v2058 = vpop.f32.mrf.mxu0
    %v2059 = vpop.f32.mrf.mxu0
    %v2060 = vadd.f32 0.0, %v2059
    %v2061 = vpop.f32.mrf.mxu0
    %2062 = vmatprep.mubr.bf16.mxu0 0
    %2063 = vmatmul.mubr.bf16.gmra.mxu0 %v2004
    %v2064 = vpop.f32.mrf.mxu0
    %v2065 = vadd.f32 0.0, %v2064
    %v2066 = vpop.f32.mrf.mxu0
    %v2067 = vpop.f32.mrf.mxu0
    %v2068 = vadd.f32 0.0, %v2067
    %v2069 = vpop.f32.mrf.mxu0
    %2070 = vdwg.mxu0
    %v2071 = vpack.c.bf16 %v1955, %v1952
    %v2072 = vpack.c.bf16 %v1963, %v1960
    %v2073 = vpack.c.bf16 %v1971, %v1968
    %v2074 = vpack.c.bf16 %v1979, %v1976
    %v2075 = vpack.c.bf16 %v2044, %v2041
    %v2076 = vpack.c.bf16 %v2052, %v2049
    %v2077 = vpack.c.bf16 %v2060, %v2057
    %v2078 = vpack.c.bf16 %v2068, %v2065
    %v2079 = vld [vmem:[%s8 + $0x4] sm:$0xf]
    %v2081 = vsel %vm923, %v2071, 0
    %v2084 = vsel %vm923, %v2072, 0
    %v2087 = vsel %vm923, %v2073, 0
    %v2090 = vsel %vm923, %v2074, 0
    %v2093 = vsel %vm923, %v2075, 0
    %v2096 = vsel %vm923, %v2076, 0
    %v2099 = vsel %vm923, %v2077, 0
    %v2102 = vsel %vm923, %v2078, 0
    %vm2104 = vcmask 1043456
    %v2106 = vsel %vm2104, %v2079, 0
    %2108 = vmatprep.subr.bf16.mxu0 0
    %2109 = vmatpush1.bf16.msra.mxu0 0
    %2110 = vmatprep.subr.bf16.mxu0 0
    %2111 = vmatpush1.bf16.msra.mxu0 0
    %2112 = vmatprep.subr.bf16.mxu0 0
    %2113 = vmatpush1.bf16.msra.mxu0 0
    %2114 = vmatprep.subr.bf16.mxu0 0
    %2115 = vmatpush1.bf16.msra.mxu0 0
    %2116 = vmatprep.subr.bf16.mxu0 0
    %2117 = vmatpush1.bf16.msra.mxu0 0
    %2118 = vmatprep.subr.bf16.mxu0 0
    %2119 = vmatpush1.bf16.msra.mxu0 0
    %2120 = vmatprep.subr.bf16.mxu0 0
    %2121 = vmatpush1.bf16.msra.mxu0 0
    %2122 = vmatprep.subr.bf16.mxu0 0
    %2123 = vmatpush1.bf16.msra.mxu0 %v2106
    %2124 = vmatprep.subr.bf16.mxu0 0
    %2125 = vmatpush2.bf16.msra.mxu0 0
    %2126 = vmatprep.subr.bf16.mxu0 0
    %2127 = vmatpush2.bf16.msra.mxu0 0
    %2128 = vmatprep.subr.bf16.mxu0 0
    %2129 = vmatpush2.bf16.msra.mxu0 0
    %2130 = vmatprep.subr.bf16.mxu0 0
    %2131 = vmatpush2.bf16.msra.mxu0 0
    %2132 = vmatprep.subr.bf16.mxu0 0
    %2133 = vmatpush2.bf16.msra.mxu0 0
    %2134 = vmatprep.subr.bf16.mxu0 0
    %2135 = vmatpush2.bf16.msra.mxu0 0
    %2136 = vmatprep.subr.bf16.mxu0 0
    %2137 = vmatpush2.bf16.msra.mxu0 0
    %2138 = vmatprep.subr.bf16.mxu0 0
    %2139 = vmatpush2.bf16.msra.mxu0 0
    %2140 = vmatprep.mubr.bf16.mxu0 0
    %2141 = vmatmul.mubr.bf16.gmra.mxu0 %v2081
    %v2142 = vpop.f32.mrf.mxu0
    %v2143 = vadd.f32 0.0, %v2142
    %v2144 = vpop.f32.mrf.mxu0
    %v2145 = vpop.f32.mrf.mxu0
    %v2146 = vadd.f32 0.0, %v2145
    %v2147 = vpop.f32.mrf.mxu0
    %2148 = vmatprep.mubr.bf16.mxu0 0
    %2149 = vmatmul.mubr.bf16.gmra.mxu0 %v2084
    %v2150 = vpop.f32.mrf.mxu0
    %v2151 = vadd.f32 0.0, %v2150
    %v2152 = vpop.f32.mrf.mxu0
    %v2153 = vpop.f32.mrf.mxu0
    %v2154 = vadd.f32 0.0, %v2153
    %v2155 = vpop.f32.mrf.mxu0
    %2156 = vmatprep.mubr.bf16.mxu0 0
    %2157 = vmatmul.mubr.bf16.gmra.mxu0 %v2087
    %v2158 = vpop.f32.mrf.mxu0
    %v2159 = vadd.f32 0.0, %v2158
    %v2160 = vpop.f32.mrf.mxu0
    %v2161 = vpop.f32.mrf.mxu0
    %v2162 = vadd.f32 0.0, %v2161
    %v2163 = vpop.f32.mrf.mxu0
    %2164 = vmatprep.mubr.bf16.mxu0 0
    %2165 = vmatmul.mubr.bf16.gmra.mxu0 %v2090
    %v2166 = vpop.f32.mrf.mxu0
    %v2167 = vadd.f32 0.0, %v2166
    %v2168 = vpop.f32.mrf.mxu0
    %v2169 = vpop.f32.mrf.mxu0
    %v2170 = vadd.f32 0.0, %v2169
    %v2171 = vpop.f32.mrf.mxu0
    %2172 = vmatprep.mubr.bf16.mxu0 0
    %2173 = vmatmul.mubr.bf16.gmra.mxu0 %v2093
    %v2174 = vpop.f32.mrf.mxu0
    %v2175 = vadd.f32 0.0, %v2174
    %v2176 = vpop.f32.mrf.mxu0
    %v2177 = vpop.f32.mrf.mxu0
    %v2178 = vadd.f32 0.0, %v2177
    %v2179 = vpop.f32.mrf.mxu0
    %2180 = vmatprep.mubr.bf16.mxu0 0
    %2181 = vmatmul.mubr.bf16.gmra.mxu0 %v2096
    %v2182 = vpop.f32.mrf.mxu0
    %v2183 = vadd.f32 0.0, %v2182
    %v2184 = vpop.f32.mrf.mxu0
    %v2185 = vpop.f32.mrf.mxu0
    %v2186 = vadd.f32 0.0, %v2185
    %v2187 = vpop.f32.mrf.mxu0
    %2188 = vmatprep.mubr.bf16.mxu0 0
    %2189 = vmatmul.mubr.bf16.gmra.mxu0 %v2099
    %v2190 = vpop.f32.mrf.mxu0
    %v2191 = vadd.f32 0.0, %v2190
    %v2192 = vpop.f32.mrf.mxu0
    %v2193 = vpop.f32.mrf.mxu0
    %v2194 = vadd.f32 0.0, %v2193
    %v2195 = vpop.f32.mrf.mxu0
    %2196 = vmatprep.mubr.bf16.mxu0 0
    %2197 = vmatmul.mubr.bf16.gmra.mxu0 %v2102
    %v2198 = vpop.f32.mrf.mxu0
    %v2199 = vadd.f32 0.0, %v2198
    %v2200 = vpop.f32.mrf.mxu0
    %v2201 = vpop.f32.mrf.mxu0
    %v2202 = vadd.f32 0.0, %v2201
    %v2203 = vpop.f32.mrf.mxu0
    %2204 = vdwg.mxu0
    %v2206 = vsel %vm923, %v1473, 0
    %v2209 = vsel %vm923, %v1474, 0
    %v2212 = vsel %vm923, %v1475, 0
    %v2215 = vsel %vm923, %v1476, 0
    %v2218 = vsel %vm923, %v1477, 0
    %v2221 = vsel %vm923, %v1478, 0
    %v2224 = vsel %vm923, %v1479, 0
    %v2227 = vsel %vm923, %v1480, 0
    %v2230 = vsel %vm2104, %v1481, 0
    %2232 = vmatprep.subr.bf16.mxu0 0
    %2233 = vmatpush1.bf16.msra.mxu0 0
    %2234 = vmatprep.subr.bf16.mxu0 0
    %2235 = vmatpush1.bf16.msra.mxu0 0
    %2236 = vmatprep.subr.bf16.mxu0 0
    %2237 = vmatpush1.bf16.msra.mxu0 0
    %2238 = vmatprep.subr.bf16.mxu0 0
    %2239 = vmatpush1.bf16.msra.mxu0 0
    %2240 = vmatprep.subr.bf16.mxu0 0
    %2241 = vmatpush1.bf16.msra.mxu0 0
    %2242 = vmatprep.subr.bf16.mxu0 0
    %2243 = vmatpush1.bf16.msra.mxu0 0
    %2244 = vmatprep.subr.bf16.mxu0 0
    %2245 = vmatpush1.bf16.msra.mxu0 0
    %2246 = vmatprep.subr.bf16.mxu0 0
    %2247 = vmatpush1.bf16.msra.mxu0 %v2230
    %2248 = vmatprep.subr.bf16.mxu0 0
    %2249 = vmatpush2.bf16.msra.mxu0 0
    %2250 = vmatprep.subr.bf16.mxu0 0
    %2251 = vmatpush2.bf16.msra.mxu0 0
    %2252 = vmatprep.subr.bf16.mxu0 0
    %2253 = vmatpush2.bf16.msra.mxu0 0
    %2254 = vmatprep.subr.bf16.mxu0 0
    %2255 = vmatpush2.bf16.msra.mxu0 0
    %2256 = vmatprep.subr.bf16.mxu0 0
    %2257 = vmatpush2.bf16.msra.mxu0 0
    %2258 = vmatprep.subr.bf16.mxu0 0
    %2259 = vmatpush2.bf16.msra.mxu0 0
    %2260 = vmatprep.subr.bf16.mxu0 0
    %2261 = vmatpush2.bf16.msra.mxu0 0
    %2262 = vmatprep.subr.bf16.mxu0 0
    %2263 = vmatpush2.bf16.msra.mxu0 0
    %2264 = vmatprep.mubr.bf16.mxu0 0
    %2265 = vmatmul.mubr.bf16.gmra.mxu0 %v2206
    %v2266 = vpop.f32.mrf.mxu0
    %v2267 = vadd.f32 %v2143, %v2266
    %v2268 = vpop.f32.mrf.mxu0
    %v2269 = vpop.f32.mrf.mxu0
    %v2270 = vadd.f32 %v2146, %v2269
    %v2271 = vpop.f32.mrf.mxu0
    %2272 = vmatprep.mubr.bf16.mxu0 0
    %2273 = vmatmul.mubr.bf16.gmra.mxu0 %v2209
    %v2274 = vpop.f32.mrf.mxu0
    %v2275 = vadd.f32 %v2151, %v2274
    %v2276 = vpop.f32.mrf.mxu0
    %v2277 = vpop.f32.mrf.mxu0
    %v2278 = vadd.f32 %v2154, %v2277
    %v2279 = vpop.f32.mrf.mxu0
    %2280 = vmatprep.mubr.bf16.mxu0 0
    %2281 = vmatmul.mubr.bf16.gmra.mxu0 %v2212
    %v2282 = vpop.f32.mrf.mxu0
    %v2283 = vadd.f32 %v2159, %v2282
    %v2284 = vpop.f32.mrf.mxu0
    %v2285 = vpop.f32.mrf.mxu0
    %v2286 = vadd.f32 %v2162, %v2285
    %v2287 = vpop.f32.mrf.mxu0
    %2288 = vmatprep.mubr.bf16.mxu0 0
    %2289 = vmatmul.mubr.bf16.gmra.mxu0 %v2215
    %v2290 = vpop.f32.mrf.mxu0
    %v2291 = vadd.f32 %v2167, %v2290
    %v2292 = vpop.f32.mrf.mxu0
    %v2293 = vpop.f32.mrf.mxu0
    %v2294 = vadd.f32 %v2170, %v2293
    %v2295 = vpop.f32.mrf.mxu0
    %2296 = vmatprep.mubr.bf16.mxu0 0
    %2297 = vmatmul.mubr.bf16.gmra.mxu0 %v2218
    %v2298 = vpop.f32.mrf.mxu0
    %v2299 = vadd.f32 %v2175, %v2298
    %v2300 = vpop.f32.mrf.mxu0
    %v2301 = vpop.f32.mrf.mxu0
    %v2302 = vadd.f32 %v2178, %v2301
    %v2303 = vpop.f32.mrf.mxu0
    %2304 = vmatprep.mubr.bf16.mxu0 0
    %2305 = vmatmul.mubr.bf16.gmra.mxu0 %v2221
    %v2306 = vpop.f32.mrf.mxu0
    %v2307 = vadd.f32 %v2183, %v2306
    %v2308 = vpop.f32.mrf.mxu0
    %v2309 = vpop.f32.mrf.mxu0
    %v2310 = vadd.f32 %v2186, %v2309
    %v2311 = vpop.f32.mrf.mxu0
    %2312 = vmatprep.mubr.bf16.mxu0 0
    %2313 = vmatmul.mubr.bf16.gmra.mxu0 %v2224
    %v2314 = vpop.f32.mrf.mxu0
    %v2315 = vadd.f32 %v2191, %v2314
    %v2316 = vpop.f32.mrf.mxu0
    %v2317 = vpop.f32.mrf.mxu0
    %v2318 = vadd.f32 %v2194, %v2317
    %v2319 = vpop.f32.mrf.mxu0
    %2320 = vmatprep.mubr.bf16.mxu0 0
    %2321 = vmatmul.mubr.bf16.gmra.mxu0 %v2227
    %v2322 = vpop.f32.mrf.mxu0
    %v2323 = vadd.f32 %v2199, %v2322
    %v2324 = vpop.f32.mrf.mxu0
    %v2325 = vpop.f32.mrf.mxu0
    %v2326 = vadd.f32 %v2202, %v2325
    %v2327 = vpop.f32.mrf.mxu0
    %2328 = vdwg.mxu0
    %s2329 = scalar_lea.vmem %s10, 128
    %v2330 = vld [vmem:[%s2329] sm:$0xff]
    %v2331 = vld [vmem:[%s2329 + $0x8] sm:$0xff]
    %v2332 = vld [vmem:[%s2329 + $0x10] sm:$0xff]
    %v2333 = vld [vmem:[%s2329 + $0x18] sm:$0xff]
    %v2334 = vld [vmem:[%s2329 + $0x20] sm:$0xff]
    %v2335 = vld [vmem:[%s2329 + $0x28] sm:$0xff]
    %v2336 = vld [vmem:[%s2329 + $0x30] sm:$0xff]
    %v2337 = vld [vmem:[%s2329 + $0x38] sm:$0xff]
    %2338 = vrot.lane.b32.xlu0 %v755, 112
    %v2339 = vpop.permute.xlu0 %2338
    %2340 = vrot.lane.b32.xlu0 %v756, 112
    %v2341 = vpop.permute.xlu0 %2340
    %2342 = vrot.lane.b32.xlu0 %v757, 112
    %v2343 = vpop.permute.xlu0 %2342
    %2344 = vrot.lane.b32.xlu0 %v758, 112
    %v2345 = vpop.permute.xlu0 %2344
    %2346 = vrot.lane.b32.xlu0 %v907, 112
    %v2347 = vpop.permute.xlu0 %2346
    %2348 = vrot.lane.b32.xlu0 %v908, 112
    %v2349 = vpop.permute.xlu0 %2348
    %2350 = vrot.lane.b32.xlu0 %v909, 112
    %v2351 = vpop.permute.xlu0 %2350
    %2352 = vrot.lane.b32.xlu0 %v910, 112
    %v2353 = vpop.permute.xlu0 %2352
    %v2355 = vsel %vm923, %v2339, 0
    %v2358 = vsel %vm923, %v2341, 0
    %v2361 = vsel %vm923, %v2343, 0
    %v2364 = vsel %vm923, %v2345, 0
    %v2367 = vsel %vm923, %v2347, 0
    %v2370 = vsel %vm923, %v2349, 0
    %v2373 = vsel %vm923, %v2351, 0
    %v2376 = vsel %vm923, %v2353, 0
    %2378 = vmatprep.subr.bf16.mxu0 0
    %2379 = vmatpush1.bf16.xpose.msra.mxu0 0
    %2380 = vmatprep.subr.bf16.mxu0 0
    %2381 = vmatpush1.bf16.xpose.msra.mxu0 0
    %2382 = vmatprep.subr.bf16.mxu0 0
    %2383 = vmatpush1.bf16.xpose.msra.mxu0 0
    %2384 = vmatprep.subr.bf16.mxu0 0
    %2385 = vmatpush1.bf16.xpose.msra.mxu0 0
    %2386 = vmatprep.subr.bf16.mxu0 0
    %2387 = vmatpush1.bf16.xpose.msra.mxu0 %v2376
    %2388 = vmatprep.subr.bf16.mxu0 0
    %2389 = vmatpush1.bf16.xpose.msra.mxu0 %v2373
    %2390 = vmatprep.subr.bf16.mxu0 0
    %2391 = vmatpush1.bf16.xpose.msra.mxu0 %v2370
    %2392 = vmatprep.subr.bf16.mxu0 0
    %2393 = vmatpush1.bf16.xpose.msra.mxu0 %v2367
    %2394 = vmatprep.subr.bf16.mxu0 0
    %2395 = vmatpush2.bf16.xpose.msra.mxu0 0
    %2396 = vmatprep.subr.bf16.mxu0 0
    %2397 = vmatpush2.bf16.xpose.msra.mxu0 0
    %2398 = vmatprep.subr.bf16.mxu0 0
    %2399 = vmatpush2.bf16.xpose.msra.mxu0 0
    %2400 = vmatprep.subr.bf16.mxu0 0
    %2401 = vmatpush2.bf16.xpose.msra.mxu0 0
    %2402 = vmatprep.subr.bf16.mxu0 0
    %2403 = vmatpush2.bf16.xpose.msra.mxu0 0
    %2404 = vmatprep.subr.bf16.mxu0 0
    %2405 = vmatpush2.bf16.xpose.msra.mxu0 0
    %2406 = vmatprep.subr.bf16.mxu0 0
    %2407 = vmatpush2.bf16.xpose.msra.mxu0 0
    %2408 = vmatprep.subr.bf16.mxu0 0
    %2409 = vmatpush2.bf16.xpose.msra.mxu0 0
    %2410 = vmatprep.mubr.bf16.mxu0 0
    %2411 = vmatmul.mubr.bf16.gmra.mxu0 %v2355
    %v2412 = vpop.f32.mrf.mxu0
    %v2413 = vadd.f32 %v2330, %v2412
    %v2414 = vpop.f32.mrf.mxu0
    %v2415 = vpop.f32.mrf.mxu0
    %v2416 = vadd.f32 %v2331, %v2415
    %v2417 = vpop.f32.mrf.mxu0
    %2418 = vmatprep.mubr.bf16.mxu0 0
    %2419 = vmatmul.mubr.bf16.gmra.mxu0 %v2358
    %v2420 = vpop.f32.mrf.mxu0
    %v2421 = vadd.f32 %v2332, %v2420
    %v2422 = vpop.f32.mrf.mxu0
    %v2423 = vpop.f32.mrf.mxu0
    %v2424 = vadd.f32 %v2333, %v2423
    %v2425 = vpop.f32.mrf.mxu0
    %2426 = vmatprep.mubr.bf16.mxu0 0
    %2427 = vmatmul.mubr.bf16.gmra.mxu0 %v2361
    %v2428 = vpop.f32.mrf.mxu0
    %v2429 = vadd.f32 %v2334, %v2428
    %v2430 = vpop.f32.mrf.mxu0
    %v2431 = vpop.f32.mrf.mxu0
    %v2432 = vadd.f32 %v2335, %v2431
    %v2433 = vpop.f32.mrf.mxu0
    %2434 = vmatprep.mubr.bf16.mxu0 0
    %2435 = vmatmul.mubr.bf16.gmra.mxu0 %v2364
    %v2436 = vpop.f32.mrf.mxu0
    %v2437 = vadd.f32 %v2336, %v2436
    %v2438 = vpop.f32.mrf.mxu0
    %v2439 = vpop.f32.mrf.mxu0
    %v2440 = vadd.f32 %v2337, %v2439
    %v2441 = vpop.f32.mrf.mxu0
    %2442 = vdwg.mxu0
    %2443 = vrot.lane.b32.xlu0 %v759, 112
    %v2444 = vpop.permute.xlu0 %2443
    %2445 = vrot.lane.b32.xlu0 %v760, 112
    %v2446 = vpop.permute.xlu0 %2445
    %2447 = vrot.lane.b32.xlu0 %v761, 112
    %v2448 = vpop.permute.xlu0 %2447
    %2449 = vrot.lane.b32.xlu0 %v762, 112
    %v2450 = vpop.permute.xlu0 %2449
    %2451 = vrot.lane.b32.xlu0 %v911, 112
    %v2452 = vpop.permute.xlu0 %2451
    %2453 = vrot.lane.b32.xlu0 %v912, 112
    %v2454 = vpop.permute.xlu0 %2453
    %2455 = vrot.lane.b32.xlu0 %v913, 112
    %v2456 = vpop.permute.xlu0 %2455
    %2457 = vrot.lane.b32.xlu0 %v914, 112
    %v2458 = vpop.permute.xlu0 %2457
    %v2460 = vsel %vm923, %v2444, 0
    %v2463 = vsel %vm923, %v2446, 0
    %v2466 = vsel %vm923, %v2448, 0
    %v2469 = vsel %vm923, %v2450, 0
    %v2472 = vsel %vm923, %v2452, 0
    %v2475 = vsel %vm923, %v2454, 0
    %v2478 = vsel %vm923, %v2456, 0
    %v2481 = vsel %vm923, %v2458, 0
    %2483 = vmatprep.subr.bf16.mxu0 0
    %2484 = vmatpush1.bf16.xpose.msra.mxu0 0
    %2485 = vmatprep.subr.bf16.mxu0 0
    %2486 = vmatpush1.bf16.xpose.msra.mxu0 0
    %2487 = vmatprep.subr.bf16.mxu0 0
    %2488 = vmatpush1.bf16.xpose.msra.mxu0 0
    %2489 = vmatprep.subr.bf16.mxu0 0
    %2490 = vmatpush1.bf16.xpose.msra.mxu0 0
    %2491 = vmatprep.subr.bf16.mxu0 0
    %2492 = vmatpush1.bf16.xpose.msra.mxu0 %v2481
    %2493 = vmatprep.subr.bf16.mxu0 0
    %2494 = vmatpush1.bf16.xpose.msra.mxu0 %v2478
    %2495 = vmatprep.subr.bf16.mxu0 0
    %2496 = vmatpush1.bf16.xpose.msra.mxu0 %v2475
    %2497 = vmatprep.subr.bf16.mxu0 0
    %2498 = vmatpush1.bf16.xpose.msra.mxu0 %v2472
    %2499 = vmatprep.subr.bf16.mxu0 0
    %2500 = vmatpush2.bf16.xpose.msra.mxu0 0
    %2501 = vmatprep.subr.bf16.mxu0 0
    %2502 = vmatpush2.bf16.xpose.msra.mxu0 0
    %2503 = vmatprep.subr.bf16.mxu0 0
    %2504 = vmatpush2.bf16.xpose.msra.mxu0 0
    %2505 = vmatprep.subr.bf16.mxu0 0
    %2506 = vmatpush2.bf16.xpose.msra.mxu0 0
    %2507 = vmatprep.subr.bf16.mxu0 0
    %2508 = vmatpush2.bf16.xpose.msra.mxu0 0
    %2509 = vmatprep.subr.bf16.mxu0 0
    %2510 = vmatpush2.bf16.xpose.msra.mxu0 0
    %2511 = vmatprep.subr.bf16.mxu0 0
    %2512 = vmatpush2.bf16.xpose.msra.mxu0 0
    %2513 = vmatprep.subr.bf16.mxu0 0
    %2514 = vmatpush2.bf16.xpose.msra.mxu0 0
    %2515 = vmatprep.mubr.bf16.mxu0 0
    %2516 = vmatmul.mubr.bf16.gmra.mxu0 %v2460
    %v2517 = vpop.f32.mrf.mxu0
    %v2518 = vadd.f32 %v2330, %v2517
    %v2519 = vpop.f32.mrf.mxu0
    %v2520 = vpop.f32.mrf.mxu0
    %v2521 = vadd.f32 %v2331, %v2520
    %v2522 = vpop.f32.mrf.mxu0
    %2523 = vmatprep.mubr.bf16.mxu0 0
    %2524 = vmatmul.mubr.bf16.gmra.mxu0 %v2463
    %v2525 = vpop.f32.mrf.mxu0
    %v2526 = vadd.f32 %v2332, %v2525
    %v2527 = vpop.f32.mrf.mxu0
    %v2528 = vpop.f32.mrf.mxu0
    %v2529 = vadd.f32 %v2333, %v2528
    %v2530 = vpop.f32.mrf.mxu0
    %2531 = vmatprep.mubr.bf16.mxu0 0
    %2532 = vmatmul.mubr.bf16.gmra.mxu0 %v2466
    %v2533 = vpop.f32.mrf.mxu0
    %v2534 = vadd.f32 %v2334, %v2533
    %v2535 = vpop.f32.mrf.mxu0
    %v2536 = vpop.f32.mrf.mxu0
    %v2537 = vadd.f32 %v2335, %v2536
    %v2538 = vpop.f32.mrf.mxu0
    %2539 = vmatprep.mubr.bf16.mxu0 0
    %2540 = vmatmul.mubr.bf16.gmra.mxu0 %v2469
    %v2541 = vpop.f32.mrf.mxu0
    %v2542 = vadd.f32 %v2336, %v2541
    %v2543 = vpop.f32.mrf.mxu0
    %v2544 = vpop.f32.mrf.mxu0
    %v2545 = vadd.f32 %v2337, %v2544
    %v2546 = vpop.f32.mrf.mxu0
    %2547 = vdwg.mxu0
    %v2548 = vsel %vm1102, %v2413, -inf
    %2549 = vmax.xlane.f32.xlu0 %v2548
    %v2550 = vpop.xlane.xlu0 %2549
    %v2551 = vsel %vm1102, %v2416, -inf
    %2552 = vmax.xlane.f32.xlu0 %v2551
    %v2553 = vpop.xlane.xlu0 %2552
    %v2554 = vsel %vm1102, %v2421, -inf
    %2555 = vmax.xlane.f32.xlu0 %v2554
    %v2556 = vpop.xlane.xlu0 %2555
    %v2557 = vsel %vm1102, %v2424, -inf
    %2558 = vmax.xlane.f32.xlu0 %v2557
    %v2559 = vpop.xlane.xlu0 %2558
    %v2560 = vsel %vm1102, %v2429, -inf
    %2561 = vmax.xlane.f32.xlu0 %v2560
    %v2562 = vpop.xlane.xlu0 %2561
    %v2563 = vsel %vm1102, %v2432, -inf
    %2564 = vmax.xlane.f32.xlu0 %v2563
    %v2565 = vpop.xlane.xlu0 %2564
    %v2566 = vsel %vm1102, %v2437, -inf
    %2567 = vmax.xlane.f32.xlu0 %v2566
    %v2568 = vpop.xlane.xlu0 %2567
    %v2569 = vsel %vm1102, %v2440, -inf
    %2570 = vmax.xlane.f32.xlu0 %v2569
    %v2571 = vpop.xlane.xlu0 %2570
    %v2572 = vsel %vm1102, %v2518, -inf
    %2573 = vmax.xlane.f32.xlu0 %v2572
    %v2574 = vpop.xlane.xlu0 %2573
    %v2575 = vsel %vm1102, %v2521, -inf
    %2576 = vmax.xlane.f32.xlu0 %v2575
    %v2577 = vpop.xlane.xlu0 %2576
    %v2578 = vsel %vm1102, %v2526, -inf
    %2579 = vmax.xlane.f32.xlu0 %v2578
    %v2580 = vpop.xlane.xlu0 %2579
    %v2581 = vsel %vm1102, %v2529, -inf
    %2582 = vmax.xlane.f32.xlu0 %v2581
    %v2583 = vpop.xlane.xlu0 %2582
    %v2584 = vsel %vm1102, %v2534, -inf
    %2585 = vmax.xlane.f32.xlu0 %v2584
    %v2586 = vpop.xlane.xlu0 %2585
    %v2587 = vsel %vm1102, %v2537, -inf
    %2588 = vmax.xlane.f32.xlu0 %v2587
    %v2589 = vpop.xlane.xlu0 %2588
    %v2590 = vsel %vm1102, %v2542, -inf
    %2591 = vmax.xlane.f32.xlu0 %v2590
    %v2592 = vpop.xlane.xlu0 %2591
    %v2593 = vsel %vm1102, %v2545, -inf
    %2594 = vmax.xlane.f32.xlu0 %v2593
    %v2595 = vpop.xlane.xlu0 %2594
    %v2596 = vsub.f32 %v2413, %v2550
    %v2597 = vsub.f32 %v2416, %v2553
    %v2598 = vsub.f32 %v2421, %v2556
    %v2599 = vsub.f32 %v2424, %v2559
    %v2600 = vsub.f32 %v2429, %v2562
    %v2601 = vsub.f32 %v2432, %v2565
    %v2602 = vsub.f32 %v2437, %v2568
    %v2603 = vsub.f32 %v2440, %v2571
    %v2604 = vsub.f32 %v2518, %v2574
    %v2605 = vsub.f32 %v2521, %v2577
    %v2606 = vsub.f32 %v2526, %v2580
    %v2607 = vsub.f32 %v2529, %v2583
    %v2608 = vsub.f32 %v2534, %v2586
    %v2609 = vsub.f32 %v2537, %v2589
    %v2610 = vsub.f32 %v2542, %v2592
    %v2611 = vsub.f32 %v2545, %v2595
    %v2612 = vmul.f32 %v2596, 1.442695
    %v2613 = vpow.pop %v2612
    %v2614 = vmul.f32 %v2597, 1.442695
    %v2615 = vpow.pop %v2614
    %v2616 = vmul.f32 %v2598, 1.442695
    %v2617 = vpow.pop %v2616
    %v2618 = vmul.f32 %v2599, 1.442695
    %v2619 = vpow.pop %v2618
    %v2620 = vmul.f32 %v2600, 1.442695
    %v2621 = vpow.pop %v2620
    %v2622 = vmul.f32 %v2601, 1.442695
    %v2623 = vpow.pop %v2622
    %v2624 = vmul.f32 %v2602, 1.442695
    %v2625 = vpow.pop %v2624
    %v2626 = vmul.f32 %v2603, 1.442695
    %v2627 = vpow.pop %v2626
    %v2628 = vmul.f32 %v2604, 1.442695
    %v2629 = vpow.pop %v2628
    %v2630 = vmul.f32 %v2605, 1.442695
    %v2631 = vpow.pop %v2630
    %v2632 = vmul.f32 %v2606, 1.442695
    %v2633 = vpow.pop %v2632
    %v2634 = vmul.f32 %v2607, 1.442695
    %v2635 = vpow.pop %v2634
    %v2636 = vmul.f32 %v2608, 1.442695
    %v2637 = vpow.pop %v2636
    %v2638 = vmul.f32 %v2609, 1.442695
    %v2639 = vpow.pop %v2638
    %v2640 = vmul.f32 %v2610, 1.442695
    %v2641 = vpow.pop %v2640
    %v2642 = vmul.f32 %v2611, 1.442695
    %v2643 = vpow.pop %v2642
    %v2644 = vsel %vm1102, %v2613, 0.0
    %2645 = vadd.xlane.f32.xlu0 %v2644
    %v2646 = vpop.xlane.xlu0 %2645
    %v2647 = vsel %vm1102, %v2615, 0.0
    %2648 = vadd.xlane.f32.xlu0 %v2647
    %v2649 = vpop.xlane.xlu0 %2648
    %v2650 = vsel %vm1102, %v2617, 0.0
    %2651 = vadd.xlane.f32.xlu0 %v2650
    %v2652 = vpop.xlane.xlu0 %2651
    %v2653 = vsel %vm1102, %v2619, 0.0
    %2654 = vadd.xlane.f32.xlu0 %v2653
    %v2655 = vpop.xlane.xlu0 %2654
    %v2656 = vsel %vm1102, %v2621, 0.0
    %2657 = vadd.xlane.f32.xlu0 %v2656
    %v2658 = vpop.xlane.xlu0 %2657
    %v2659 = vsel %vm1102, %v2623, 0.0
    %2660 = vadd.xlane.f32.xlu0 %v2659
    %v2661 = vpop.xlane.xlu0 %2660
    %v2662 = vsel %vm1102, %v2625, 0.0
    %2663 = vadd.xlane.f32.xlu0 %v2662
    %v2664 = vpop.xlane.xlu0 %2663
    %v2665 = vsel %vm1102, %v2627, 0.0
    %2666 = vadd.xlane.f32.xlu0 %v2665
    %v2667 = vpop.xlane.xlu0 %2666
    %v2668 = vsel %vm1102, %v2629, 0.0
    %2669 = vadd.xlane.f32.xlu0 %v2668
    %v2670 = vpop.xlane.xlu0 %2669
    %v2671 = vsel %vm1102, %v2631, 0.0
    %2672 = vadd.xlane.f32.xlu0 %v2671
    %v2673 = vpop.xlane.xlu0 %2672
    %v2674 = vsel %vm1102, %v2633, 0.0
    %2675 = vadd.xlane.f32.xlu0 %v2674
    %v2676 = vpop.xlane.xlu0 %2675
    %v2677 = vsel %vm1102, %v2635, 0.0
    %2678 = vadd.xlane.f32.xlu0 %v2677
    %v2679 = vpop.xlane.xlu0 %2678
    %v2680 = vsel %vm1102, %v2637, 0.0
    %2681 = vadd.xlane.f32.xlu0 %v2680
    %v2682 = vpop.xlane.xlu0 %2681
    %v2683 = vsel %vm1102, %v2639, 0.0
    %2684 = vadd.xlane.f32.xlu0 %v2683
    %v2685 = vpop.xlane.xlu0 %2684
    %v2686 = vsel %vm1102, %v2641, 0.0
    %2687 = vadd.xlane.f32.xlu0 %v2686
    %v2688 = vpop.xlane.xlu0 %2687
    %v2689 = vsel %vm1102, %v2643, 0.0
    %2690 = vadd.xlane.f32.xlu0 %v2689
    %v2691 = vpop.xlane.xlu0 %2690
    %v2692 = vrcp.pop %v2646
    %v2693 = vrcp.pop %v2649
    %v2694 = vrcp.pop %v2652
    %v2695 = vrcp.pop %v2655
    %v2696 = vrcp.pop %v2658
    %v2697 = vrcp.pop %v2661
    %v2698 = vrcp.pop %v2664
    %v2699 = vrcp.pop %v2667
    %v2700 = vrcp.pop %v2670
    %v2701 = vrcp.pop %v2673
    %v2702 = vrcp.pop %v2676
    %v2703 = vrcp.pop %v2679
    %v2704 = vrcp.pop %v2682
    %v2705 = vrcp.pop %v2685
    %v2706 = vrcp.pop %v2688
    %v2707 = vrcp.pop %v2691
    %v2708 = vmul.f32 %v2613, %v2692
    %v2709 = vmul.f32 %v2615, %v2693
    %v2710 = vmul.f32 %v2617, %v2694
    %v2711 = vmul.f32 %v2619, %v2695
    %v2712 = vmul.f32 %v2621, %v2696
    %v2713 = vmul.f32 %v2623, %v2697
    %v2714 = vmul.f32 %v2625, %v2698
    %v2715 = vmul.f32 %v2627, %v2699
    %v2716 = vmul.f32 %v2629, %v2700
    %v2717 = vmul.f32 %v2631, %v2701
    %v2718 = vmul.f32 %v2633, %v2702
    %v2719 = vmul.f32 %v2635, %v2703
    %v2720 = vmul.f32 %v2637, %v2704
    %v2721 = vmul.f32 %v2639, %v2705
    %v2722 = vmul.f32 %v2641, %v2706
    %v2723 = vmul.f32 %v2643, %v2707
    %v2724 = vpack.c.bf16 %v2709, %v2708
    %v2725 = vpack.c.bf16 %v2711, %v2710
    %v2726 = vpack.c.bf16 %v2713, %v2712
    %v2727 = vpack.c.bf16 %v2715, %v2714
    %v2728 = vpack.c.bf16 %v2717, %v2716
    %v2729 = vpack.c.bf16 %v2719, %v2718
    %v2730 = vpack.c.bf16 %v2721, %v2720
    %v2731 = vpack.c.bf16 %v2723, %v2722
    %2732 = vrot.lane.b32.xlu0 %v907, 80
    %v2733 = vpop.permute.xlu0 %2732
    %2734 = vrot.lane.b32.xlu0 %v908, 80
    %v2735 = vpop.permute.xlu0 %2734
    %2736 = vrot.lane.b32.xlu0 %v909, 80
    %v2737 = vpop.permute.xlu0 %2736
    %2738 = vrot.lane.b32.xlu0 %v910, 80
    %v2739 = vpop.permute.xlu0 %2738
    %v2745 = vsel %vm1102, %v2724, 0
    %v2748 = vsel %vm1102, %v2725, 0
    %v2751 = vsel %vm1102, %v2726, 0
    %v2754 = vsel %vm1102, %v2727, 0
    %2756 = vmatprep.subr.bf16.mxu0 0
    %2757 = vmatpush1.bf16.msra.mxu0 0
    %2758 = vmatprep.subr.bf16.mxu0 0
    %2759 = vmatpush1.bf16.msra.mxu0 0
    %2760 = vmatprep.subr.bf16.mxu0 0
    %2761 = vmatpush1.bf16.msra.mxu0 0
    %2762 = vmatprep.subr.bf16.mxu0 0
    %2763 = vmatpush1.bf16.msra.mxu0 0
    %2764 = vmatprep.subr.bf16.mxu0 0
    %2765 = vmatpush1.bf16.msra.mxu0 %v2739
    %2766 = vmatprep.subr.bf16.mxu0 0
    %2767 = vmatpush1.bf16.msra.mxu0 %v2737
    %2768 = vmatprep.subr.bf16.mxu0 0
    %2769 = vmatpush1.bf16.msra.mxu0 %v2735
    %2770 = vmatprep.subr.bf16.mxu0 0
    %2771 = vmatpush1.bf16.msra.mxu0 %v2733
    %2772 = vmatprep.subr.bf16.mxu0 0
    %2773 = vmatpush2.bf16.msra.mxu0 0
    %2774 = vmatprep.subr.bf16.mxu0 0
    %2775 = vmatpush2.bf16.msra.mxu0 0
    %2776 = vmatprep.subr.bf16.mxu0 0
    %2777 = vmatpush2.bf16.msra.mxu0 0
    %2778 = vmatprep.subr.bf16.mxu0 0
    %2779 = vmatpush2.bf16.msra.mxu0 0
    %2780 = vmatprep.subr.bf16.mxu0 0
    %2781 = vmatpush2.bf16.msra.mxu0 0
    %2782 = vmatprep.subr.bf16.mxu0 0
    %2783 = vmatpush2.bf16.msra.mxu0 0
    %2784 = vmatprep.subr.bf16.mxu0 0
    %2785 = vmatpush2.bf16.msra.mxu0 0
    %2786 = vmatprep.subr.bf16.mxu0 0
    %2787 = vmatpush2.bf16.msra.mxu0 0
    %2788 = vmatprep.mubr.bf16.mxu0 0
    %2789 = vmatmul.mubr.bf16.gmra.mxu0 %v2745
    %v2790 = vpop.f32.mrf.mxu0
    %v2791 = vadd.f32 0.0, %v2790
    %v2792 = vpop.f32.mrf.mxu0
    %v2793 = vpop.f32.mrf.mxu0
    %v2794 = vadd.f32 0.0, %v2793
    %v2795 = vpop.f32.mrf.mxu0
    %2796 = vmatprep.mubr.bf16.mxu0 0
    %2797 = vmatmul.mubr.bf16.gmra.mxu0 %v2748
    %v2798 = vpop.f32.mrf.mxu0
    %v2799 = vadd.f32 0.0, %v2798
    %v2800 = vpop.f32.mrf.mxu0
    %v2801 = vpop.f32.mrf.mxu0
    %v2802 = vadd.f32 0.0, %v2801
    %v2803 = vpop.f32.mrf.mxu0
    %2804 = vmatprep.mubr.bf16.mxu0 0
    %2805 = vmatmul.mubr.bf16.gmra.mxu0 %v2751
    %v2806 = vpop.f32.mrf.mxu0
    %v2807 = vadd.f32 0.0, %v2806
    %v2808 = vpop.f32.mrf.mxu0
    %v2809 = vpop.f32.mrf.mxu0
    %v2810 = vadd.f32 0.0, %v2809
    %v2811 = vpop.f32.mrf.mxu0
    %2812 = vmatprep.mubr.bf16.mxu0 0
    %2813 = vmatmul.mubr.bf16.gmra.mxu0 %v2754
    %v2814 = vpop.f32.mrf.mxu0
    %v2815 = vadd.f32 0.0, %v2814
    %v2816 = vpop.f32.mrf.mxu0
    %v2817 = vpop.f32.mrf.mxu0
    %v2818 = vadd.f32 0.0, %v2817
    %v2819 = vpop.f32.mrf.mxu0
    %2820 = vdwg.mxu0
    %2821 = vrot.lane.b32.xlu0 %v911, 80
    %v2822 = vpop.permute.xlu0 %2821
    %2823 = vrot.lane.b32.xlu0 %v912, 80
    %v2824 = vpop.permute.xlu0 %2823
    %2825 = vrot.lane.b32.xlu0 %v913, 80
    %v2826 = vpop.permute.xlu0 %2825
    %2827 = vrot.lane.b32.xlu0 %v914, 80
    %v2828 = vpop.permute.xlu0 %2827
    %v2834 = vsel %vm1102, %v2728, 0
    %v2837 = vsel %vm1102, %v2729, 0
    %v2840 = vsel %vm1102, %v2730, 0
    %v2843 = vsel %vm1102, %v2731, 0
    %2845 = vmatprep.subr.bf16.mxu0 0
    %2846 = vmatpush1.bf16.msra.mxu0 0
    %2847 = vmatprep.subr.bf16.mxu0 0
    %2848 = vmatpush1.bf16.msra.mxu0 0
    %2849 = vmatprep.subr.bf16.mxu0 0
    %2850 = vmatpush1.bf16.msra.mxu0 0
    %2851 = vmatprep.subr.bf16.mxu0 0
    %2852 = vmatpush1.bf16.msra.mxu0 0
    %2853 = vmatprep.subr.bf16.mxu0 0
    %2854 = vmatpush1.bf16.msra.mxu0 %v2828
    %2855 = vmatprep.subr.bf16.mxu0 0
    %2856 = vmatpush1.bf16.msra.mxu0 %v2826
    %2857 = vmatprep.subr.bf16.mxu0 0
    %2858 = vmatpush1.bf16.msra.mxu0 %v2824
    %2859 = vmatprep.subr.bf16.mxu0 0
    %2860 = vmatpush1.bf16.msra.mxu0 %v2822
    %2861 = vmatprep.subr.bf16.mxu0 0
    %2862 = vmatpush2.bf16.msra.mxu0 0
    %2863 = vmatprep.subr.bf16.mxu0 0
    %2864 = vmatpush2.bf16.msra.mxu0 0
    %2865 = vmatprep.subr.bf16.mxu0 0
    %2866 = vmatpush2.bf16.msra.mxu0 0
    %2867 = vmatprep.subr.bf16.mxu0 0
    %2868 = vmatpush2.bf16.msra.mxu0 0
    %2869 = vmatprep.subr.bf16.mxu0 0
    %2870 = vmatpush2.bf16.msra.mxu0 0
    %2871 = vmatprep.subr.bf16.mxu0 0
    %2872 = vmatpush2.bf16.msra.mxu0 0
    %2873 = vmatprep.subr.bf16.mxu0 0
    %2874 = vmatpush2.bf16.msra.mxu0 0
    %2875 = vmatprep.subr.bf16.mxu0 0
    %2876 = vmatpush2.bf16.msra.mxu0 0
    %2877 = vmatprep.mubr.bf16.mxu0 0
    %2878 = vmatmul.mubr.bf16.gmra.mxu0 %v2834
    %v2879 = vpop.f32.mrf.mxu0
    %v2880 = vadd.f32 0.0, %v2879
    %v2881 = vpop.f32.mrf.mxu0
    %v2882 = vpop.f32.mrf.mxu0
    %v2883 = vadd.f32 0.0, %v2882
    %v2884 = vpop.f32.mrf.mxu0
    %2885 = vmatprep.mubr.bf16.mxu0 0
    %2886 = vmatmul.mubr.bf16.gmra.mxu0 %v2837
    %v2887 = vpop.f32.mrf.mxu0
    %v2888 = vadd.f32 0.0, %v2887
    %v2889 = vpop.f32.mrf.mxu0
    %v2890 = vpop.f32.mrf.mxu0
    %v2891 = vadd.f32 0.0, %v2890
    %v2892 = vpop.f32.mrf.mxu0
    %2893 = vmatprep.mubr.bf16.mxu0 0
    %2894 = vmatmul.mubr.bf16.gmra.mxu0 %v2840
    %v2895 = vpop.f32.mrf.mxu0
    %v2896 = vadd.f32 0.0, %v2895
    %v2897 = vpop.f32.mrf.mxu0
    %v2898 = vpop.f32.mrf.mxu0
    %v2899 = vadd.f32 0.0, %v2898
    %v2900 = vpop.f32.mrf.mxu0
    %2901 = vmatprep.mubr.bf16.mxu0 0
    %2902 = vmatmul.mubr.bf16.gmra.mxu0 %v2843
    %v2903 = vpop.f32.mrf.mxu0
    %v2904 = vadd.f32 0.0, %v2903
    %v2905 = vpop.f32.mrf.mxu0
    %v2906 = vpop.f32.mrf.mxu0
    %v2907 = vadd.f32 0.0, %v2906
    %v2908 = vpop.f32.mrf.mxu0
    %2909 = vdwg.mxu0
    %v2910 = vpack.c.bf16 %v2794, %v2791
    %v2911 = vpack.c.bf16 %v2802, %v2799
    %v2912 = vpack.c.bf16 %v2810, %v2807
    %v2913 = vpack.c.bf16 %v2818, %v2815
    %v2914 = vpack.c.bf16 %v2883, %v2880
    %v2915 = vpack.c.bf16 %v2891, %v2888
    %v2916 = vpack.c.bf16 %v2899, %v2896
    %v2917 = vpack.c.bf16 %v2907, %v2904
    %v2918 = vld [vmem:[%s8 + $0x8] sm:$0xf]
    %v2920 = vsel %vm923, %v2910, 0
    %v2923 = vsel %vm923, %v2911, 0
    %v2926 = vsel %vm923, %v2912, 0
    %v2929 = vsel %vm923, %v2913, 0
    %v2932 = vsel %vm923, %v2914, 0
    %v2935 = vsel %vm923, %v2915, 0
    %v2938 = vsel %vm923, %v2916, 0
    %v2941 = vsel %vm923, %v2917, 0
    %v2944 = vsel %vm2104, %v2918, 0
    %2946 = vmatprep.subr.bf16.mxu0 0
    %2947 = vmatpush1.bf16.msra.mxu0 0
    %2948 = vmatprep.subr.bf16.mxu0 0
    %2949 = vmatpush1.bf16.msra.mxu0 0
    %2950 = vmatprep.subr.bf16.mxu0 0
    %2951 = vmatpush1.bf16.msra.mxu0 0
    %2952 = vmatprep.subr.bf16.mxu0 0
    %2953 = vmatpush1.bf16.msra.mxu0 0
    %2954 = vmatprep.subr.bf16.mxu0 0
    %2955 = vmatpush1.bf16.msra.mxu0 0
    %2956 = vmatprep.subr.bf16.mxu0 0
    %2957 = vmatpush1.bf16.msra.mxu0 0
    %2958 = vmatprep.subr.bf16.mxu0 0
    %2959 = vmatpush1.bf16.msra.mxu0 0
    %2960 = vmatprep.subr.bf16.mxu0 0
    %2961 = vmatpush1.bf16.msra.mxu0 %v2944
    %2962 = vmatprep.subr.bf16.mxu0 0
    %2963 = vmatpush2.bf16.msra.mxu0 0
    %2964 = vmatprep.subr.bf16.mxu0 0
    %2965 = vmatpush2.bf16.msra.mxu0 0
    %2966 = vmatprep.subr.bf16.mxu0 0
    %2967 = vmatpush2.bf16.msra.mxu0 0
    %2968 = vmatprep.subr.bf16.mxu0 0
    %2969 = vmatpush2.bf16.msra.mxu0 0
    %2970 = vmatprep.subr.bf16.mxu0 0
    %2971 = vmatpush2.bf16.msra.mxu0 0
    %2972 = vmatprep.subr.bf16.mxu0 0
    %2973 = vmatpush2.bf16.msra.mxu0 0
    %2974 = vmatprep.subr.bf16.mxu0 0
    %2975 = vmatpush2.bf16.msra.mxu0 0
    %2976 = vmatprep.subr.bf16.mxu0 0
    %2977 = vmatpush2.bf16.msra.mxu0 0
    %2978 = vmatprep.mubr.bf16.mxu0 0
    %2979 = vmatmul.mubr.bf16.gmra.mxu0 %v2920
    %v2980 = vpop.f32.mrf.mxu0
    %v2981 = vadd.f32 0.0, %v2980
    %v2982 = vpop.f32.mrf.mxu0
    %v2983 = vpop.f32.mrf.mxu0
    %v2984 = vadd.f32 0.0, %v2983
    %v2985 = vpop.f32.mrf.mxu0
    %2986 = vmatprep.mubr.bf16.mxu0 0
    %2987 = vmatmul.mubr.bf16.gmra.mxu0 %v2923
    %v2988 = vpop.f32.mrf.mxu0
    %v2989 = vadd.f32 0.0, %v2988
    %v2990 = vpop.f32.mrf.mxu0
    %v2991 = vpop.f32.mrf.mxu0
    %v2992 = vadd.f32 0.0, %v2991
    %v2993 = vpop.f32.mrf.mxu0
    %2994 = vmatprep.mubr.bf16.mxu0 0
    %2995 = vmatmul.mubr.bf16.gmra.mxu0 %v2926
    %v2996 = vpop.f32.mrf.mxu0
    %v2997 = vadd.f32 0.0, %v2996
    %v2998 = vpop.f32.mrf.mxu0
    %v2999 = vpop.f32.mrf.mxu0
    %v3000 = vadd.f32 0.0, %v2999
    %v3001 = vpop.f32.mrf.mxu0
    %3002 = vmatprep.mubr.bf16.mxu0 0
    %3003 = vmatmul.mubr.bf16.gmra.mxu0 %v2929
    %v3004 = vpop.f32.mrf.mxu0
    %v3005 = vadd.f32 0.0, %v3004
    %v3006 = vpop.f32.mrf.mxu0
    %v3007 = vpop.f32.mrf.mxu0
    %v3008 = vadd.f32 0.0, %v3007
    %v3009 = vpop.f32.mrf.mxu0
    %3010 = vmatprep.mubr.bf16.mxu0 0
    %3011 = vmatmul.mubr.bf16.gmra.mxu0 %v2932
    %v3012 = vpop.f32.mrf.mxu0
    %v3013 = vadd.f32 0.0, %v3012
    %v3014 = vpop.f32.mrf.mxu0
    %v3015 = vpop.f32.mrf.mxu0
    %v3016 = vadd.f32 0.0, %v3015
    %v3017 = vpop.f32.mrf.mxu0
    %3018 = vmatprep.mubr.bf16.mxu0 0
    %3019 = vmatmul.mubr.bf16.gmra.mxu0 %v2935
    %v3020 = vpop.f32.mrf.mxu0
    %v3021 = vadd.f32 0.0, %v3020
    %v3022 = vpop.f32.mrf.mxu0
    %v3023 = vpop.f32.mrf.mxu0
    %v3024 = vadd.f32 0.0, %v3023
    %v3025 = vpop.f32.mrf.mxu0
    %3026 = vmatprep.mubr.bf16.mxu0 0
    %3027 = vmatmul.mubr.bf16.gmra.mxu0 %v2938
    %v3028 = vpop.f32.mrf.mxu0
    %v3029 = vadd.f32 0.0, %v3028
    %v3030 = vpop.f32.mrf.mxu0
    %v3031 = vpop.f32.mrf.mxu0
    %v3032 = vadd.f32 0.0, %v3031
    %v3033 = vpop.f32.mrf.mxu0
    %3034 = vmatprep.mubr.bf16.mxu0 0
    %3035 = vmatmul.mubr.bf16.gmra.mxu0 %v2941
    %v3036 = vpop.f32.mrf.mxu0
    %v3037 = vadd.f32 0.0, %v3036
    %v3038 = vpop.f32.mrf.mxu0
    %v3039 = vpop.f32.mrf.mxu0
    %v3040 = vadd.f32 0.0, %v3039
    %v3041 = vpop.f32.mrf.mxu0
    %3042 = vdwg.mxu0
    %v3043 = vadd.f32 %v2267, %v2981
    %v3044 = vadd.f32 %v2270, %v2984
    %v3045 = vadd.f32 %v2275, %v2989
    %v3046 = vadd.f32 %v2278, %v2992
    %v3047 = vadd.f32 %v2283, %v2997
    %v3048 = vadd.f32 %v2286, %v3000
    %v3049 = vadd.f32 %v2291, %v3005
    %v3050 = vadd.f32 %v2294, %v3008
    %v3051 = vadd.f32 %v2299, %v3013
    %v3052 = vadd.f32 %v2302, %v3016
    %v3053 = vadd.f32 %v2307, %v3021
    %v3054 = vadd.f32 %v2310, %v3024
    %v3055 = vadd.f32 %v2315, %v3029
    %v3056 = vadd.f32 %v2318, %v3032
    %v3057 = vadd.f32 %v2323, %v3037
    %v3058 = vadd.f32 %v2326, %v3040
    %s3059 = scalar_lea.vmem %s10, 192
    %v3060 = vld [vmem:[%s3059] sm:$0xff]
    %v3061 = vld [vmem:[%s3059 + $0x8] sm:$0xff]
    %v3062 = vld [vmem:[%s3059 + $0x10] sm:$0xff]
    %v3063 = vld [vmem:[%s3059 + $0x18] sm:$0xff]
    %v3064 = vld [vmem:[%s3059 + $0x20] sm:$0xff]
    %v3065 = vld [vmem:[%s3059 + $0x28] sm:$0xff]
    %v3066 = vld [vmem:[%s3059 + $0x30] sm:$0xff]
    %v3067 = vld [vmem:[%s3059 + $0x38] sm:$0xff]
    %3068 = vrot.lane.b32.xlu0 %v755, 104
    %v3069 = vpop.permute.xlu0 %3068
    %3070 = vrot.lane.b32.xlu0 %v756, 104
    %v3071 = vpop.permute.xlu0 %3070
    %3072 = vrot.lane.b32.xlu0 %v757, 104
    %v3073 = vpop.permute.xlu0 %3072
    %3074 = vrot.lane.b32.xlu0 %v758, 104
    %v3075 = vpop.permute.xlu0 %3074
    %3076 = vrot.lane.b32.xlu0 %v907, 104
    %v3077 = vpop.permute.xlu0 %3076
    %3078 = vrot.lane.b32.xlu0 %v908, 104
    %v3079 = vpop.permute.xlu0 %3078
    %3080 = vrot.lane.b32.xlu0 %v909, 104
    %v3081 = vpop.permute.xlu0 %3080
    %3082 = vrot.lane.b32.xlu0 %v910, 104
    %v3083 = vpop.permute.xlu0 %3082
    %v3085 = vsel %vm923, %v3069, 0
    %v3088 = vsel %vm923, %v3071, 0
    %v3091 = vsel %vm923, %v3073, 0
    %v3094 = vsel %vm923, %v3075, 0
    %v3097 = vsel %vm923, %v3077, 0
    %v3100 = vsel %vm923, %v3079, 0
    %v3103 = vsel %vm923, %v3081, 0
    %v3106 = vsel %vm923, %v3083, 0
    %3108 = vmatprep.subr.bf16.mxu0 0
    %3109 = vmatpush1.bf16.xpose.msra.mxu0 0
    %3110 = vmatprep.subr.bf16.mxu0 0
    %3111 = vmatpush1.bf16.xpose.msra.mxu0 0
    %3112 = vmatprep.subr.bf16.mxu0 0
    %3113 = vmatpush1.bf16.xpose.msra.mxu0 0
    %3114 = vmatprep.subr.bf16.mxu0 0
    %3115 = vmatpush1.bf16.xpose.msra.mxu0 0
    %3116 = vmatprep.subr.bf16.mxu0 0
    %3117 = vmatpush1.bf16.xpose.msra.mxu0 %v3106
    %3118 = vmatprep.subr.bf16.mxu0 0
    %3119 = vmatpush1.bf16.xpose.msra.mxu0 %v3103
    %3120 = vmatprep.subr.bf16.mxu0 0
    %3121 = vmatpush1.bf16.xpose.msra.mxu0 %v3100
    %3122 = vmatprep.subr.bf16.mxu0 0
    %3123 = vmatpush1.bf16.xpose.msra.mxu0 %v3097
    %3124 = vmatprep.subr.bf16.mxu0 0
    %3125 = vmatpush2.bf16.xpose.msra.mxu0 0
    %3126 = vmatprep.subr.bf16.mxu0 0
    %3127 = vmatpush2.bf16.xpose.msra.mxu0 0
    %3128 = vmatprep.subr.bf16.mxu0 0
    %3129 = vmatpush2.bf16.xpose.msra.mxu0 0
    %3130 = vmatprep.subr.bf16.mxu0 0
    %3131 = vmatpush2.bf16.xpose.msra.mxu0 0
    %3132 = vmatprep.subr.bf16.mxu0 0
    %3133 = vmatpush2.bf16.xpose.msra.mxu0 0
    %3134 = vmatprep.subr.bf16.mxu0 0
    %3135 = vmatpush2.bf16.xpose.msra.mxu0 0
    %3136 = vmatprep.subr.bf16.mxu0 0
    %3137 = vmatpush2.bf16.xpose.msra.mxu0 0
    %3138 = vmatprep.subr.bf16.mxu0 0
    %3139 = vmatpush2.bf16.xpose.msra.mxu0 0
    %3140 = vmatprep.mubr.bf16.mxu0 0
    %3141 = vmatmul.mubr.bf16.gmra.mxu0 %v3085
    %v3142 = vpop.f32.mrf.mxu0
    %v3143 = vadd.f32 %v3060, %v3142
    %v3144 = vpop.f32.mrf.mxu0
    %v3145 = vpop.f32.mrf.mxu0
    %v3146 = vadd.f32 %v3061, %v3145
    %v3147 = vpop.f32.mrf.mxu0
    %3148 = vmatprep.mubr.bf16.mxu0 0
    %3149 = vmatmul.mubr.bf16.gmra.mxu0 %v3088
    %v3150 = vpop.f32.mrf.mxu0
    %v3151 = vadd.f32 %v3062, %v3150
    %v3152 = vpop.f32.mrf.mxu0
    %v3153 = vpop.f32.mrf.mxu0
    %v3154 = vadd.f32 %v3063, %v3153
    %v3155 = vpop.f32.mrf.mxu0
    %3156 = vmatprep.mubr.bf16.mxu0 0
    %3157 = vmatmul.mubr.bf16.gmra.mxu0 %v3091
    %v3158 = vpop.f32.mrf.mxu0
    %v3159 = vadd.f32 %v3064, %v3158
    %v3160 = vpop.f32.mrf.mxu0
    %v3161 = vpop.f32.mrf.mxu0
    %v3162 = vadd.f32 %v3065, %v3161
    %v3163 = vpop.f32.mrf.mxu0
    %3164 = vmatprep.mubr.bf16.mxu0 0
    %3165 = vmatmul.mubr.bf16.gmra.mxu0 %v3094
    %v3166 = vpop.f32.mrf.mxu0
    %v3167 = vadd.f32 %v3066, %v3166
    %v3168 = vpop.f32.mrf.mxu0
    %v3169 = vpop.f32.mrf.mxu0
    %v3170 = vadd.f32 %v3067, %v3169
    %v3171 = vpop.f32.mrf.mxu0
    %3172 = vdwg.mxu0
    %3173 = vrot.lane.b32.xlu0 %v759, 104
    %v3174 = vpop.permute.xlu0 %3173
    %3175 = vrot.lane.b32.xlu0 %v760, 104
    %v3176 = vpop.permute.xlu0 %3175
    %3177 = vrot.lane.b32.xlu0 %v761, 104
    %v3178 = vpop.permute.xlu0 %3177
    %3179 = vrot.lane.b32.xlu0 %v762, 104
    %v3180 = vpop.permute.xlu0 %3179
    %3181 = vrot.lane.b32.xlu0 %v911, 104
    %v3182 = vpop.permute.xlu0 %3181
    %3183 = vrot.lane.b32.xlu0 %v912, 104
    %v3184 = vpop.permute.xlu0 %3183
    %3185 = vrot.lane.b32.xlu0 %v913, 104
    %v3186 = vpop.permute.xlu0 %3185
    %3187 = vrot.lane.b32.xlu0 %v914, 104
    %v3188 = vpop.permute.xlu0 %3187
    %v3190 = vsel %vm923, %v3174, 0
    %v3193 = vsel %vm923, %v3176, 0
    %v3196 = vsel %vm923, %v3178, 0
    %v3199 = vsel %vm923, %v3180, 0
    %v3202 = vsel %vm923, %v3182, 0
    %v3205 = vsel %vm923, %v3184, 0
    %v3208 = vsel %vm923, %v3186, 0
    %v3211 = vsel %vm923, %v3188, 0
    %3213 = vmatprep.subr.bf16.mxu0 0
    %3214 = vmatpush1.bf16.xpose.msra.mxu0 0
    %3215 = vmatprep.subr.bf16.mxu0 0
    %3216 = vmatpush1.bf16.xpose.msra.mxu0 0
    %3217 = vmatprep.subr.bf16.mxu0 0
    %3218 = vmatpush1.bf16.xpose.msra.mxu0 0
    %3219 = vmatprep.subr.bf16.mxu0 0
    %3220 = vmatpush1.bf16.xpose.msra.mxu0 0
    %3221 = vmatprep.subr.bf16.mxu0 0
    %3222 = vmatpush1.bf16.xpose.msra.mxu0 %v3211
    %3223 = vmatprep.subr.bf16.mxu0 0
    %3224 = vmatpush1.bf16.xpose.msra.mxu0 %v3208
    %3225 = vmatprep.subr.bf16.mxu0 0
    %3226 = vmatpush1.bf16.xpose.msra.mxu0 %v3205
    %3227 = vmatprep.subr.bf16.mxu0 0
    %3228 = vmatpush1.bf16.xpose.msra.mxu0 %v3202
    %3229 = vmatprep.subr.bf16.mxu0 0
    %3230 = vmatpush2.bf16.xpose.msra.mxu0 0
    %3231 = vmatprep.subr.bf16.mxu0 0
    %3232 = vmatpush2.bf16.xpose.msra.mxu0 0
    %3233 = vmatprep.subr.bf16.mxu0 0
    %3234 = vmatpush2.bf16.xpose.msra.mxu0 0
    %3235 = vmatprep.subr.bf16.mxu0 0
    %3236 = vmatpush2.bf16.xpose.msra.mxu0 0
    %3237 = vmatprep.subr.bf16.mxu0 0
    %3238 = vmatpush2.bf16.xpose.msra.mxu0 0
    %3239 = vmatprep.subr.bf16.mxu0 0
    %3240 = vmatpush2.bf16.xpose.msra.mxu0 0
    %3241 = vmatprep.subr.bf16.mxu0 0
    %3242 = vmatpush2.bf16.xpose.msra.mxu0 0
    %3243 = vmatprep.subr.bf16.mxu0 0
    %3244 = vmatpush2.bf16.xpose.msra.mxu0 0
    %3245 = vmatprep.mubr.bf16.mxu0 0
    %3246 = vmatmul.mubr.bf16.gmra.mxu0 %v3190
    %v3247 = vpop.f32.mrf.mxu0
    %v3248 = vadd.f32 %v3060, %v3247
    %v3249 = vpop.f32.mrf.mxu0
    %v3250 = vpop.f32.mrf.mxu0
    %v3251 = vadd.f32 %v3061, %v3250
    %v3252 = vpop.f32.mrf.mxu0
    %3253 = vmatprep.mubr.bf16.mxu0 0
    %3254 = vmatmul.mubr.bf16.gmra.mxu0 %v3193
    %v3255 = vpop.f32.mrf.mxu0
    %v3256 = vadd.f32 %v3062, %v3255
    %v3257 = vpop.f32.mrf.mxu0
    %v3258 = vpop.f32.mrf.mxu0
    %v3259 = vadd.f32 %v3063, %v3258
    %v3260 = vpop.f32.mrf.mxu0
    %3261 = vmatprep.mubr.bf16.mxu0 0
    %3262 = vmatmul.mubr.bf16.gmra.mxu0 %v3196
    %v3263 = vpop.f32.mrf.mxu0
    %v3264 = vadd.f32 %v3064, %v3263
    %v3265 = vpop.f32.mrf.mxu0
    %v3266 = vpop.f32.mrf.mxu0
    %v3267 = vadd.f32 %v3065, %v3266
    %v3268 = vpop.f32.mrf.mxu0
    %3269 = vmatprep.mubr.bf16.mxu0 0
    %3270 = vmatmul.mubr.bf16.gmra.mxu0 %v3199
    %v3271 = vpop.f32.mrf.mxu0
    %v3272 = vadd.f32 %v3066, %v3271
    %v3273 = vpop.f32.mrf.mxu0
    %v3274 = vpop.f32.mrf.mxu0
    %v3275 = vadd.f32 %v3067, %v3274
    %v3276 = vpop.f32.mrf.mxu0
    %3277 = vdwg.mxu0
    %v3278 = vsel %vm1102, %v3143, -inf
    %3279 = vmax.xlane.f32.xlu0 %v3278
    %v3280 = vpop.xlane.xlu0 %3279
    %v3281 = vsel %vm1102, %v3146, -inf
    %3282 = vmax.xlane.f32.xlu0 %v3281
    %v3283 = vpop.xlane.xlu0 %3282
    %v3284 = vsel %vm1102, %v3151, -inf
    %3285 = vmax.xlane.f32.xlu0 %v3284
    %v3286 = vpop.xlane.xlu0 %3285
    %v3287 = vsel %vm1102, %v3154, -inf
    %3288 = vmax.xlane.f32.xlu0 %v3287
    %v3289 = vpop.xlane.xlu0 %3288
    %v3290 = vsel %vm1102, %v3159, -inf
    %3291 = vmax.xlane.f32.xlu0 %v3290
    %v3292 = vpop.xlane.xlu0 %3291
    %v3293 = vsel %vm1102, %v3162, -inf
    %3294 = vmax.xlane.f32.xlu0 %v3293
    %v3295 = vpop.xlane.xlu0 %3294
    %v3296 = vsel %vm1102, %v3167, -inf
    %3297 = vmax.xlane.f32.xlu0 %v3296
    %v3298 = vpop.xlane.xlu0 %3297
    %v3299 = vsel %vm1102, %v3170, -inf
    %3300 = vmax.xlane.f32.xlu0 %v3299
    %v3301 = vpop.xlane.xlu0 %3300
    %v3302 = vsel %vm1102, %v3248, -inf
    %3303 = vmax.xlane.f32.xlu0 %v3302
    %v3304 = vpop.xlane.xlu0 %3303
    %v3305 = vsel %vm1102, %v3251, -inf
    %3306 = vmax.xlane.f32.xlu0 %v3305
    %v3307 = vpop.xlane.xlu0 %3306
    %v3308 = vsel %vm1102, %v3256, -inf
    %3309 = vmax.xlane.f32.xlu0 %v3308
    %v3310 = vpop.xlane.xlu0 %3309
    %v3311 = vsel %vm1102, %v3259, -inf
    %3312 = vmax.xlane.f32.xlu0 %v3311
    %v3313 = vpop.xlane.xlu0 %3312
    %v3314 = vsel %vm1102, %v3264, -inf
    %3315 = vmax.xlane.f32.xlu0 %v3314
    %v3316 = vpop.xlane.xlu0 %3315
    %v3317 = vsel %vm1102, %v3267, -inf
    %3318 = vmax.xlane.f32.xlu0 %v3317
    %v3319 = vpop.xlane.xlu0 %3318
    %v3320 = vsel %vm1102, %v3272, -inf
    %3321 = vmax.xlane.f32.xlu0 %v3320
    %v3322 = vpop.xlane.xlu0 %3321
    %v3323 = vsel %vm1102, %v3275, -inf
    %3324 = vmax.xlane.f32.xlu0 %v3323
    %v3325 = vpop.xlane.xlu0 %3324
    %v3326 = vsub.f32 %v3143, %v3280
    %v3327 = vsub.f32 %v3146, %v3283
    %v3328 = vsub.f32 %v3151, %v3286
    %v3329 = vsub.f32 %v3154, %v3289
    %v3330 = vsub.f32 %v3159, %v3292
    %v3331 = vsub.f32 %v3162, %v3295
    %v3332 = vsub.f32 %v3167, %v3298
    %v3333 = vsub.f32 %v3170, %v3301
    %v3334 = vsub.f32 %v3248, %v3304
    %v3335 = vsub.f32 %v3251, %v3307
    %v3336 = vsub.f32 %v3256, %v3310
    %v3337 = vsub.f32 %v3259, %v3313
    %v3338 = vsub.f32 %v3264, %v3316
    %v3339 = vsub.f32 %v3267, %v3319
    %v3340 = vsub.f32 %v3272, %v3322
    %v3341 = vsub.f32 %v3275, %v3325
    %v3342 = vmul.f32 %v3326, 1.442695
    %v3343 = vpow.pop %v3342
    %v3344 = vmul.f32 %v3327, 1.442695
    %v3345 = vpow.pop %v3344
    %v3346 = vmul.f32 %v3328, 1.442695
    %v3347 = vpow.pop %v3346
    %v3348 = vmul.f32 %v3329, 1.442695
    %v3349 = vpow.pop %v3348
    %v3350 = vmul.f32 %v3330, 1.442695
    %v3351 = vpow.pop %v3350
    %v3352 = vmul.f32 %v3331, 1.442695
    %v3353 = vpow.pop %v3352
    %v3354 = vmul.f32 %v3332, 1.442695
    %v3355 = vpow.pop %v3354
    %v3356 = vmul.f32 %v3333, 1.442695
    %v3357 = vpow.pop %v3356
    %v3358 = vmul.f32 %v3334, 1.442695
    %v3359 = vpow.pop %v3358
    %v3360 = vmul.f32 %v3335, 1.442695
    %v3361 = vpow.pop %v3360
    %v3362 = vmul.f32 %v3336, 1.442695
    %v3363 = vpow.pop %v3362
    %v3364 = vmul.f32 %v3337, 1.442695
    %v3365 = vpow.pop %v3364
    %v3366 = vmul.f32 %v3338, 1.442695
    %v3367 = vpow.pop %v3366
    %v3368 = vmul.f32 %v3339, 1.442695
    %v3369 = vpow.pop %v3368
    %v3370 = vmul.f32 %v3340, 1.442695
    %v3371 = vpow.pop %v3370
    %v3372 = vmul.f32 %v3341, 1.442695
    %v3373 = vpow.pop %v3372
    %v3374 = vsel %vm1102, %v3343, 0.0
    %3375 = vadd.xlane.f32.xlu0 %v3374
    %v3376 = vpop.xlane.xlu0 %3375
    %v3377 = vsel %vm1102, %v3345, 0.0
    %3378 = vadd.xlane.f32.xlu0 %v3377
    %v3379 = vpop.xlane.xlu0 %3378
    %v3380 = vsel %vm1102, %v3347, 0.0
    %3381 = vadd.xlane.f32.xlu0 %v3380
    %v3382 = vpop.xlane.xlu0 %3381
    %v3383 = vsel %vm1102, %v3349, 0.0
    %3384 = vadd.xlane.f32.xlu0 %v3383
    %v3385 = vpop.xlane.xlu0 %3384
    %v3386 = vsel %vm1102, %v3351, 0.0
    %3387 = vadd.xlane.f32.xlu0 %v3386
    %v3388 = vpop.xlane.xlu0 %3387
    %v3389 = vsel %vm1102, %v3353, 0.0
    %3390 = vadd.xlane.f32.xlu0 %v3389
    %v3391 = vpop.xlane.xlu0 %3390
    %v3392 = vsel %vm1102, %v3355, 0.0
    %3393 = vadd.xlane.f32.xlu0 %v3392
    %v3394 = vpop.xlane.xlu0 %3393
    %v3395 = vsel %vm1102, %v3357, 0.0
    %3396 = vadd.xlane.f32.xlu0 %v3395
    %v3397 = vpop.xlane.xlu0 %3396
    %v3398 = vsel %vm1102, %v3359, 0.0
    %3399 = vadd.xlane.f32.xlu0 %v3398
    %v3400 = vpop.xlane.xlu0 %3399
    %v3401 = vsel %vm1102, %v3361, 0.0
    %3402 = vadd.xlane.f32.xlu0 %v3401
    %v3403 = vpop.xlane.xlu0 %3402
    %v3404 = vsel %vm1102, %v3363, 0.0
    %3405 = vadd.xlane.f32.xlu0 %v3404
    %v3406 = vpop.xlane.xlu0 %3405
    %v3407 = vsel %vm1102, %v3365, 0.0
    %3408 = vadd.xlane.f32.xlu0 %v3407
    %v3409 = vpop.xlane.xlu0 %3408
    %v3410 = vsel %vm1102, %v3367, 0.0
    %3411 = vadd.xlane.f32.xlu0 %v3410
    %v3412 = vpop.xlane.xlu0 %3411
    %v3413 = vsel %vm1102, %v3369, 0.0
    %3414 = vadd.xlane.f32.xlu0 %v3413
    %v3415 = vpop.xlane.xlu0 %3414
    %v3416 = vsel %vm1102, %v3371, 0.0
    %3417 = vadd.xlane.f32.xlu0 %v3416
    %v3418 = vpop.xlane.xlu0 %3417
    %v3419 = vsel %vm1102, %v3373, 0.0
    %3420 = vadd.xlane.f32.xlu0 %v3419
    %v3421 = vpop.xlane.xlu0 %3420
    %v3422 = vrcp.pop %v3376
    %v3423 = vrcp.pop %v3379
    %v3424 = vrcp.pop %v3382
    %v3425 = vrcp.pop %v3385
    %v3426 = vrcp.pop %v3388
    %v3427 = vrcp.pop %v3391
    %v3428 = vrcp.pop %v3394
    %v3429 = vrcp.pop %v3397
    %v3430 = vrcp.pop %v3400
    %v3431 = vrcp.pop %v3403
    %v3432 = vrcp.pop %v3406
    %v3433 = vrcp.pop %v3409
    %v3434 = vrcp.pop %v3412
    %v3435 = vrcp.pop %v3415
    %v3436 = vrcp.pop %v3418
    %v3437 = vrcp.pop %v3421
    %v3438 = vmul.f32 %v3343, %v3422
    %v3439 = vmul.f32 %v3345, %v3423
    %v3440 = vmul.f32 %v3347, %v3424
    %v3441 = vmul.f32 %v3349, %v3425
    %v3442 = vmul.f32 %v3351, %v3426
    %v3443 = vmul.f32 %v3353, %v3427
    %v3444 = vmul.f32 %v3355, %v3428
    %v3445 = vmul.f32 %v3357, %v3429
    %v3446 = vmul.f32 %v3359, %v3430
    %v3447 = vmul.f32 %v3361, %v3431
    %v3448 = vmul.f32 %v3363, %v3432
    %v3449 = vmul.f32 %v3365, %v3433
    %v3450 = vmul.f32 %v3367, %v3434
    %v3451 = vmul.f32 %v3369, %v3435
    %v3452 = vmul.f32 %v3371, %v3436
    %v3453 = vmul.f32 %v3373, %v3437
    %v3454 = vpack.c.bf16 %v3439, %v3438
    %v3455 = vpack.c.bf16 %v3441, %v3440
    %v3456 = vpack.c.bf16 %v3443, %v3442
    %v3457 = vpack.c.bf16 %v3445, %v3444
    %v3458 = vpack.c.bf16 %v3447, %v3446
    %v3459 = vpack.c.bf16 %v3449, %v3448
    %v3460 = vpack.c.bf16 %v3451, %v3450
    %v3461 = vpack.c.bf16 %v3453, %v3452
    %3462 = vrot.lane.b32.xlu0 %v907, 72
    %v3463 = vpop.permute.xlu0 %3462
    %3464 = vrot.lane.b32.xlu0 %v908, 72
    %v3465 = vpop.permute.xlu0 %3464
    %3466 = vrot.lane.b32.xlu0 %v909, 72
    %v3467 = vpop.permute.xlu0 %3466
    %3468 = vrot.lane.b32.xlu0 %v910, 72
    %v3469 = vpop.permute.xlu0 %3468
    %v3475 = vsel %vm1102, %v3454, 0
    %v3478 = vsel %vm1102, %v3455, 0
    %v3481 = vsel %vm1102, %v3456, 0
    %v3484 = vsel %vm1102, %v3457, 0
    %3486 = vmatprep.subr.bf16.mxu0 0
    %3487 = vmatpush1.bf16.msra.mxu0 0
    %3488 = vmatprep.subr.bf16.mxu0 0
    %3489 = vmatpush1.bf16.msra.mxu0 0
    %3490 = vmatprep.subr.bf16.mxu0 0
    %3491 = vmatpush1.bf16.msra.mxu0 0
    %3492 = vmatprep.subr.bf16.mxu0 0
    %3493 = vmatpush1.bf16.msra.mxu0 0
    %3494 = vmatprep.subr.bf16.mxu0 0
    %3495 = vmatpush1.bf16.msra.mxu0 %v3469
    %3496 = vmatprep.subr.bf16.mxu0 0
    %3497 = vmatpush1.bf16.msra.mxu0 %v3467
    %3498 = vmatprep.subr.bf16.mxu0 0
    %3499 = vmatpush1.bf16.msra.mxu0 %v3465
    %3500 = vmatprep.subr.bf16.mxu0 0
    %3501 = vmatpush1.bf16.msra.mxu0 %v3463
    %3502 = vmatprep.subr.bf16.mxu0 0
    %3503 = vmatpush2.bf16.msra.mxu0 0
    %3504 = vmatprep.subr.bf16.mxu0 0
    %3505 = vmatpush2.bf16.msra.mxu0 0
    %3506 = vmatprep.subr.bf16.mxu0 0
    %3507 = vmatpush2.bf16.msra.mxu0 0
    %3508 = vmatprep.subr.bf16.mxu0 0
    %3509 = vmatpush2.bf16.msra.mxu0 0
    %3510 = vmatprep.subr.bf16.mxu0 0
    %3511 = vmatpush2.bf16.msra.mxu0 0
    %3512 = vmatprep.subr.bf16.mxu0 0
    %3513 = vmatpush2.bf16.msra.mxu0 0
    %3514 = vmatprep.subr.bf16.mxu0 0
    %3515 = vmatpush2.bf16.msra.mxu0 0
    %3516 = vmatprep.subr.bf16.mxu0 0
    %3517 = vmatpush2.bf16.msra.mxu0 0
    %3518 = vmatprep.mubr.bf16.mxu0 0
    %3519 = vmatmul.mubr.bf16.gmra.mxu0 %v3475
    %v3520 = vpop.f32.mrf.mxu0
    %v3521 = vadd.f32 0.0, %v3520
    %v3522 = vpop.f32.mrf.mxu0
    %v3523 = vpop.f32.mrf.mxu0
    %v3524 = vadd.f32 0.0, %v3523
    %v3525 = vpop.f32.mrf.mxu0
    %3526 = vmatprep.mubr.bf16.mxu0 0
    %3527 = vmatmul.mubr.bf16.gmra.mxu0 %v3478
    %v3528 = vpop.f32.mrf.mxu0
    %v3529 = vadd.f32 0.0, %v3528
    %v3530 = vpop.f32.mrf.mxu0
    %v3531 = vpop.f32.mrf.mxu0
    %v3532 = vadd.f32 0.0, %v3531
    %v3533 = vpop.f32.mrf.mxu0
    %3534 = vmatprep.mubr.bf16.mxu0 0
    %3535 = vmatmul.mubr.bf16.gmra.mxu0 %v3481
    %v3536 = vpop.f32.mrf.mxu0
    %v3537 = vadd.f32 0.0, %v3536
    %v3538 = vpop.f32.mrf.mxu0
    %v3539 = vpop.f32.mrf.mxu0
    %v3540 = vadd.f32 0.0, %v3539
    %v3541 = vpop.f32.mrf.mxu0
    %3542 = vmatprep.mubr.bf16.mxu0 0
    %3543 = vmatmul.mubr.bf16.gmra.mxu0 %v3484
    %v3544 = vpop.f32.mrf.mxu0
    %v3545 = vadd.f32 0.0, %v3544
    %v3546 = vpop.f32.mrf.mxu0
    %v3547 = vpop.f32.mrf.mxu0
    %v3548 = vadd.f32 0.0, %v3547
    %v3549 = vpop.f32.mrf.mxu0
    %3550 = vdwg.mxu0
    %3551 = vrot.lane.b32.xlu0 %v911, 72
    %v3552 = vpop.permute.xlu0 %3551
    %3553 = vrot.lane.b32.xlu0 %v912, 72
    %v3554 = vpop.permute.xlu0 %3553
    %3555 = vrot.lane.b32.xlu0 %v913, 72
    %v3556 = vpop.permute.xlu0 %3555
    %3557 = vrot.lane.b32.xlu0 %v914, 72
    %v3558 = vpop.permute.xlu0 %3557
    %v3564 = vsel %vm1102, %v3458, 0
    %v3567 = vsel %vm1102, %v3459, 0
    %v3570 = vsel %vm1102, %v3460, 0
    %v3573 = vsel %vm1102, %v3461, 0
    %3575 = vmatprep.subr.bf16.mxu0 0
    %3576 = vmatpush1.bf16.msra.mxu0 0
    %3577 = vmatprep.subr.bf16.mxu0 0
    %3578 = vmatpush1.bf16.msra.mxu0 0
    %3579 = vmatprep.subr.bf16.mxu0 0
    %3580 = vmatpush1.bf16.msra.mxu0 0
    %3581 = vmatprep.subr.bf16.mxu0 0
    %3582 = vmatpush1.bf16.msra.mxu0 0
    %3583 = vmatprep.subr.bf16.mxu0 0
    %3584 = vmatpush1.bf16.msra.mxu0 %v3558
    %3585 = vmatprep.subr.bf16.mxu0 0
    %3586 = vmatpush1.bf16.msra.mxu0 %v3556
    %3587 = vmatprep.subr.bf16.mxu0 0
    %3588 = vmatpush1.bf16.msra.mxu0 %v3554
    %3589 = vmatprep.subr.bf16.mxu0 0
    %3590 = vmatpush1.bf16.msra.mxu0 %v3552
    %3591 = vmatprep.subr.bf16.mxu0 0
    %3592 = vmatpush2.bf16.msra.mxu0 0
    %3593 = vmatprep.subr.bf16.mxu0 0
    %3594 = vmatpush2.bf16.msra.mxu0 0
    %3595 = vmatprep.subr.bf16.mxu0 0
    %3596 = vmatpush2.bf16.msra.mxu0 0
    %3597 = vmatprep.subr.bf16.mxu0 0
    %3598 = vmatpush2.bf16.msra.mxu0 0
    %3599 = vmatprep.subr.bf16.mxu0 0
    %3600 = vmatpush2.bf16.msra.mxu0 0
    %3601 = vmatprep.subr.bf16.mxu0 0
    %3602 = vmatpush2.bf16.msra.mxu0 0
    %3603 = vmatprep.subr.bf16.mxu0 0
    %3604 = vmatpush2.bf16.msra.mxu0 0
    %3605 = vmatprep.subr.bf16.mxu0 0
    %3606 = vmatpush2.bf16.msra.mxu0 0
    %3607 = vmatprep.mubr.bf16.mxu0 0
    %3608 = vmatmul.mubr.bf16.gmra.mxu0 %v3564
    %v3609 = vpop.f32.mrf.mxu0
    %v3610 = vadd.f32 0.0, %v3609
    %v3611 = vpop.f32.mrf.mxu0
    %v3612 = vpop.f32.mrf.mxu0
    %v3613 = vadd.f32 0.0, %v3612
    %v3614 = vpop.f32.mrf.mxu0
    %3615 = vmatprep.mubr.bf16.mxu0 0
    %3616 = vmatmul.mubr.bf16.gmra.mxu0 %v3567
    %v3617 = vpop.f32.mrf.mxu0
    %v3618 = vadd.f32 0.0, %v3617
    %v3619 = vpop.f32.mrf.mxu0
    %v3620 = vpop.f32.mrf.mxu0
    %v3621 = vadd.f32 0.0, %v3620
    %v3622 = vpop.f32.mrf.mxu0
    %3623 = vmatprep.mubr.bf16.mxu0 0
    %3624 = vmatmul.mubr.bf16.gmra.mxu0 %v3570
    %v3625 = vpop.f32.mrf.mxu0
    %v3626 = vadd.f32 0.0, %v3625
    %v3627 = vpop.f32.mrf.mxu0
    %v3628 = vpop.f32.mrf.mxu0
    %v3629 = vadd.f32 0.0, %v3628
    %v3630 = vpop.f32.mrf.mxu0
    %3631 = vmatprep.mubr.bf16.mxu0 0
    %3632 = vmatmul.mubr.bf16.gmra.mxu0 %v3573
    %v3633 = vpop.f32.mrf.mxu0
    %v3634 = vadd.f32 0.0, %v3633
    %v3635 = vpop.f32.mrf.mxu0
    %v3636 = vpop.f32.mrf.mxu0
    %v3637 = vadd.f32 0.0, %v3636
    %v3638 = vpop.f32.mrf.mxu0
    %3639 = vdwg.mxu0
    %v3640 = vpack.c.bf16 %v3524, %v3521
    %v3641 = vpack.c.bf16 %v3532, %v3529
    %v3642 = vpack.c.bf16 %v3540, %v3537
    %v3643 = vpack.c.bf16 %v3548, %v3545
    %v3644 = vpack.c.bf16 %v3613, %v3610
    %v3645 = vpack.c.bf16 %v3621, %v3618
    %v3646 = vpack.c.bf16 %v3629, %v3626
    %v3647 = vpack.c.bf16 %v3637, %v3634
    %v3648 = vld [vmem:[%s8 + $0xc] sm:$0xf]
    %v3650 = vsel %vm923, %v3640, 0
    %v3653 = vsel %vm923, %v3641, 0
    %v3656 = vsel %vm923, %v3642, 0
    %v3659 = vsel %vm923, %v3643, 0
    %v3662 = vsel %vm923, %v3644, 0
    %v3665 = vsel %vm923, %v3645, 0
    %v3668 = vsel %vm923, %v3646, 0
    %v3671 = vsel %vm923, %v3647, 0
    %v3674 = vsel %vm2104, %v3648, 0
    %3676 = vmatprep.subr.bf16.mxu0 0
    %3677 = vmatpush1.bf16.msra.mxu0 0
    %3678 = vmatprep.subr.bf16.mxu0 0
    %3679 = vmatpush1.bf16.msra.mxu0 0
    %3680 = vmatprep.subr.bf16.mxu0 0
    %3681 = vmatpush1.bf16.msra.mxu0 0
    %3682 = vmatprep.subr.bf16.mxu0 0
    %3683 = vmatpush1.bf16.msra.mxu0 0
    %3684 = vmatprep.subr.bf16.mxu0 0
    %3685 = vmatpush1.bf16.msra.mxu0 0
    %3686 = vmatprep.subr.bf16.mxu0 0
    %3687 = vmatpush1.bf16.msra.mxu0 0
    %3688 = vmatprep.subr.bf16.mxu0 0
    %3689 = vmatpush1.bf16.msra.mxu0 0
    %3690 = vmatprep.subr.bf16.mxu0 0
    %3691 = vmatpush1.bf16.msra.mxu0 %v3674
    %3692 = vmatprep.subr.bf16.mxu0 0
    %3693 = vmatpush2.bf16.msra.mxu0 0
    %3694 = vmatprep.subr.bf16.mxu0 0
    %3695 = vmatpush2.bf16.msra.mxu0 0
    %3696 = vmatprep.subr.bf16.mxu0 0
    %3697 = vmatpush2.bf16.msra.mxu0 0
    %3698 = vmatprep.subr.bf16.mxu0 0
    %3699 = vmatpush2.bf16.msra.mxu0 0
    %3700 = vmatprep.subr.bf16.mxu0 0
    %3701 = vmatpush2.bf16.msra.mxu0 0
    %3702 = vmatprep.subr.bf16.mxu0 0
    %3703 = vmatpush2.bf16.msra.mxu0 0
    %3704 = vmatprep.subr.bf16.mxu0 0
    %3705 = vmatpush2.bf16.msra.mxu0 0
    %3706 = vmatprep.subr.bf16.mxu0 0
    %3707 = vmatpush2.bf16.msra.mxu0 0
    %3708 = vmatprep.mubr.bf16.mxu0 0
    %3709 = vmatmul.mubr.bf16.gmra.mxu0 %v3650
    %v3710 = vpop.f32.mrf.mxu0
    %v3711 = vadd.f32 0.0, %v3710
    %v3712 = vpop.f32.mrf.mxu0
    %v3713 = vpop.f32.mrf.mxu0
    %v3714 = vadd.f32 0.0, %v3713
    %v3715 = vpop.f32.mrf.mxu0
    %3716 = vmatprep.mubr.bf16.mxu0 0
    %3717 = vmatmul.mubr.bf16.gmra.mxu0 %v3653
    %v3718 = vpop.f32.mrf.mxu0
    %v3719 = vadd.f32 0.0, %v3718
    %v3720 = vpop.f32.mrf.mxu0
    %v3721 = vpop.f32.mrf.mxu0
    %v3722 = vadd.f32 0.0, %v3721
    %v3723 = vpop.f32.mrf.mxu0
    %3724 = vmatprep.mubr.bf16.mxu0 0
    %3725 = vmatmul.mubr.bf16.gmra.mxu0 %v3656
    %v3726 = vpop.f32.mrf.mxu0
    %v3727 = vadd.f32 0.0, %v3726
    %v3728 = vpop.f32.mrf.mxu0
    %v3729 = vpop.f32.mrf.mxu0
    %v3730 = vadd.f32 0.0, %v3729
    %v3731 = vpop.f32.mrf.mxu0
    %3732 = vmatprep.mubr.bf16.mxu0 0
    %3733 = vmatmul.mubr.bf16.gmra.mxu0 %v3659
    %v3734 = vpop.f32.mrf.mxu0
    %v3735 = vadd.f32 0.0, %v3734
    %v3736 = vpop.f32.mrf.mxu0
    %v3737 = vpop.f32.mrf.mxu0
    %v3738 = vadd.f32 0.0, %v3737
    %v3739 = vpop.f32.mrf.mxu0
    %3740 = vmatprep.mubr.bf16.mxu0 0
    %3741 = vmatmul.mubr.bf16.gmra.mxu0 %v3662
    %v3742 = vpop.f32.mrf.mxu0
    %v3743 = vadd.f32 0.0, %v3742
    %v3744 = vpop.f32.mrf.mxu0
    %v3745 = vpop.f32.mrf.mxu0
    %v3746 = vadd.f32 0.0, %v3745
    %v3747 = vpop.f32.mrf.mxu0
    %3748 = vmatprep.mubr.bf16.mxu0 0
    %3749 = vmatmul.mubr.bf16.gmra.mxu0 %v3665
    %v3750 = vpop.f32.mrf.mxu0
    %v3751 = vadd.f32 0.0, %v3750
    %v3752 = vpop.f32.mrf.mxu0
    %v3753 = vpop.f32.mrf.mxu0
    %v3754 = vadd.f32 0.0, %v3753
    %v3755 = vpop.f32.mrf.mxu0
    %3756 = vmatprep.mubr.bf16.mxu0 0
    %3757 = vmatmul.mubr.bf16.gmra.mxu0 %v3668
    %v3758 = vpop.f32.mrf.mxu0
    %v3759 = vadd.f32 0.0, %v3758
    %v3760 = vpop.f32.mrf.mxu0
    %v3761 = vpop.f32.mrf.mxu0
    %v3762 = vadd.f32 0.0, %v3761
    %v3763 = vpop.f32.mrf.mxu0
    %3764 = vmatprep.mubr.bf16.mxu0 0
    %3765 = vmatmul.mubr.bf16.gmra.mxu0 %v3671
    %v3766 = vpop.f32.mrf.mxu0
    %v3767 = vadd.f32 0.0, %v3766
    %v3768 = vpop.f32.mrf.mxu0
    %v3769 = vpop.f32.mrf.mxu0
    %v3770 = vadd.f32 0.0, %v3769
    %v3771 = vpop.f32.mrf.mxu0
    %3772 = vdwg.mxu0
    %v3773 = vadd.f32 %v3043, %v3711
    %v3774 = vadd.f32 %v3044, %v3714
    %v3775 = vadd.f32 %v3045, %v3719
    %v3776 = vadd.f32 %v3046, %v3722
    %v3777 = vadd.f32 %v3047, %v3727
    %v3778 = vadd.f32 %v3048, %v3730
    %v3779 = vadd.f32 %v3049, %v3735
    %v3780 = vadd.f32 %v3050, %v3738
    %v3781 = vadd.f32 %v3051, %v3743
    %v3782 = vadd.f32 %v3052, %v3746
    %v3783 = vadd.f32 %v3053, %v3751
    %v3784 = vadd.f32 %v3054, %v3754
    %v3785 = vadd.f32 %v3055, %v3759
    %v3786 = vadd.f32 %v3056, %v3762
    %v3787 = vadd.f32 %v3057, %v3767
    %v3788 = vadd.f32 %v3058, %v3770
    %v3789 = vld [vmem:[%s9] sm:$0x1]
    %v3791 = vlaneseq
    %v3792 = vshrl.u32 %v3791, 7
    %v3793 = vsub.s32 0, %v3792
    %v3794 = vrot.slane %v3789, %v3793
    %v3796 = vadd.f32 %v3773, %v3794
    %v3797 = vadd.f32 %v3774, %v3794
    %v3798 = vadd.f32 %v3775, %v3794
    %v3799 = vadd.f32 %v3776, %v3794
    %v3800 = vadd.f32 %v3777, %v3794
    %v3801 = vadd.f32 %v3778, %v3794
    %v3802 = vadd.f32 %v3779, %v3794
    %v3803 = vadd.f32 %v3780, %v3794
    %v3804 = vadd.f32 %v3781, %v3794
    %v3805 = vadd.f32 %v3782, %v3794
    %v3806 = vadd.f32 %v3783, %v3794
    %v3807 = vadd.f32 %v3784, %v3794
    %v3808 = vadd.f32 %v3785, %v3794
    %v3809 = vadd.f32 %v3786, %v3794
    %v3810 = vadd.f32 %v3787, %v3794
    %v3811 = vadd.f32 %v3788, %v3794
    %v3812 = vld [vmem:[%s67] sm:$0xff]
    %v3813 = vld [vmem:[%s67 + $0x8] sm:$0xff]
    %v3814 = vld [vmem:[%s67 + $0x10] sm:$0xff]
    %v3815 = vld [vmem:[%s67 + $0x18] sm:$0xff]
    %v3816 = vld [vmem:[%s67 + $0x20] sm:$0xff]
    %v3817 = vld [vmem:[%s67 + $0x28] sm:$0xff]
    %v3818 = vld [vmem:[%s67 + $0x30] sm:$0xff]
    %v3819 = vld [vmem:[%s67 + $0x38] sm:$0xff]
    %v3820 = vld [vmem:[%s67 + $0x40] sm:$0xff]
    %v3821 = vld [vmem:[%s67 + $0x48] sm:$0xff]
    %v3822 = vld [vmem:[%s67 + $0x50] sm:$0xff]
    %v3823 = vld [vmem:[%s67 + $0x58] sm:$0xff]
    %v3824 = vld [vmem:[%s67 + $0x60] sm:$0xff]
    %v3825 = vld [vmem:[%s67 + $0x68] sm:$0xff]
    %v3826 = vld [vmem:[%s67 + $0x70] sm:$0xff]
    %v3827 = vld [vmem:[%s67 + $0x78] sm:$0xff]
    %v3828 = vadd.f32 %v3812, %v3796
    %v3829 = vadd.f32 %v3813, %v3797
    %v3830 = vadd.f32 %v3814, %v3798
    %v3831 = vadd.f32 %v3815, %v3799
    %v3832 = vadd.f32 %v3816, %v3800
    %v3833 = vadd.f32 %v3817, %v3801
    %v3834 = vadd.f32 %v3818, %v3802
    %v3835 = vadd.f32 %v3819, %v3803
    %v3836 = vadd.f32 %v3820, %v3804
    %v3837 = vadd.f32 %v3821, %v3805
    %v3838 = vadd.f32 %v3822, %v3806
    %v3839 = vadd.f32 %v3823, %v3807
    %v3840 = vadd.f32 %v3824, %v3808
    %v3841 = vadd.f32 %v3825, %v3809
    %v3842 = vadd.f32 %v3826, %v3810
    %v3843 = vadd.f32 %v3827, %v3811
    %v3844 = vld [vmem:[%s11] sm:$0x1]
    %v3845 = vld [vmem:[%s12] sm:$0x1]
    %v3846 = vsel %vm84, %v3828, 0.0
    %3847 = vadd.xlane.f32.xlu0 %v3846
    %v3848 = vpop.xlane.xlu0 %3847
    %v3849 = vsel %vm84, %v3829, 0.0
    %3850 = vadd.xlane.f32.xlu0 %v3849
    %v3851 = vpop.xlane.xlu0 %3850
    %v3852 = vsel %vm84, %v3830, 0.0
    %3853 = vadd.xlane.f32.xlu0 %v3852
    %v3854 = vpop.xlane.xlu0 %3853
    %v3855 = vsel %vm84, %v3831, 0.0
    %3856 = vadd.xlane.f32.xlu0 %v3855
    %v3857 = vpop.xlane.xlu0 %3856
    %v3858 = vsel %vm84, %v3832, 0.0
    %3859 = vadd.xlane.f32.xlu0 %v3858
    %v3860 = vpop.xlane.xlu0 %3859
    %v3861 = vsel %vm84, %v3833, 0.0
    %3862 = vadd.xlane.f32.xlu0 %v3861
    %v3863 = vpop.xlane.xlu0 %3862
    %v3864 = vsel %vm84, %v3834, 0.0
    %3865 = vadd.xlane.f32.xlu0 %v3864
    %v3866 = vpop.xlane.xlu0 %3865
    %v3867 = vsel %vm84, %v3835, 0.0
    %3868 = vadd.xlane.f32.xlu0 %v3867
    %v3869 = vpop.xlane.xlu0 %3868
    %v3870 = vsel %vm84, %v3836, 0.0
    %3871 = vadd.xlane.f32.xlu0 %v3870
    %v3872 = vpop.xlane.xlu0 %3871
    %v3873 = vsel %vm84, %v3837, 0.0
    %3874 = vadd.xlane.f32.xlu0 %v3873
    %v3875 = vpop.xlane.xlu0 %3874
    %v3876 = vsel %vm84, %v3838, 0.0
    %3877 = vadd.xlane.f32.xlu0 %v3876
    %v3878 = vpop.xlane.xlu0 %3877
    %v3879 = vsel %vm84, %v3839, 0.0
    %3880 = vadd.xlane.f32.xlu0 %v3879
    %v3881 = vpop.xlane.xlu0 %3880
    %v3882 = vsel %vm84, %v3840, 0.0
    %3883 = vadd.xlane.f32.xlu0 %v3882
    %v3884 = vpop.xlane.xlu0 %3883
    %v3885 = vsel %vm84, %v3841, 0.0
    %3886 = vadd.xlane.f32.xlu0 %v3885
    %v3887 = vpop.xlane.xlu0 %3886
    %v3888 = vsel %vm84, %v3842, 0.0
    %3889 = vadd.xlane.f32.xlu0 %v3888
    %v3890 = vpop.xlane.xlu0 %3889
    %v3891 = vsel %vm84, %v3843, 0.0
    %3892 = vadd.xlane.f32.xlu0 %v3891
    %v3893 = vpop.xlane.xlu0 %3892
    %v3894 = vmul.f32 %v3848, %v133
    %v3895 = vmul.f32 %v3851, %v133
    %v3896 = vmul.f32 %v3854, %v133
    %v3897 = vmul.f32 %v3857, %v133
    %v3898 = vmul.f32 %v3860, %v133
    %v3899 = vmul.f32 %v3863, %v133
    %v3900 = vmul.f32 %v3866, %v133
    %v3901 = vmul.f32 %v3869, %v133
    %v3902 = vmul.f32 %v3872, %v133
    %v3903 = vmul.f32 %v3875, %v133
    %v3904 = vmul.f32 %v3878, %v133
    %v3905 = vmul.f32 %v3881, %v133
    %v3906 = vmul.f32 %v3884, %v133
    %v3907 = vmul.f32 %v3887, %v133
    %v3908 = vmul.f32 %v3890, %v133
    %v3909 = vmul.f32 %v3893, %v133
    %v3910 = vsub.f32 %v3828, %v3894
    %v3911 = vsub.f32 %v3829, %v3895
    %v3912 = vsub.f32 %v3830, %v3896
    %v3913 = vsub.f32 %v3831, %v3897
    %v3914 = vsub.f32 %v3832, %v3898
    %v3915 = vsub.f32 %v3833, %v3899
    %v3916 = vsub.f32 %v3834, %v3900
    %v3917 = vsub.f32 %v3835, %v3901
    %v3918 = vsub.f32 %v3836, %v3902
    %v3919 = vsub.f32 %v3837, %v3903
    %v3920 = vsub.f32 %v3838, %v3904
    %v3921 = vsub.f32 %v3839, %v3905
    %v3922 = vsub.f32 %v3840, %v3906
    %v3923 = vsub.f32 %v3841, %v3907
    %v3924 = vsub.f32 %v3842, %v3908
    %v3925 = vsub.f32 %v3843, %v3909
    %v3926 = vmul.f32 %v3910, %v3910
    %v3927 = vmul.f32 %v3911, %v3911
    %v3928 = vmul.f32 %v3912, %v3912
    %v3929 = vmul.f32 %v3913, %v3913
    %v3930 = vmul.f32 %v3914, %v3914
    %v3931 = vmul.f32 %v3915, %v3915
    %v3932 = vmul.f32 %v3916, %v3916
    %v3933 = vmul.f32 %v3917, %v3917
    %v3934 = vmul.f32 %v3918, %v3918
    %v3935 = vmul.f32 %v3919, %v3919
    %v3936 = vmul.f32 %v3920, %v3920
    %v3937 = vmul.f32 %v3921, %v3921
    %v3938 = vmul.f32 %v3922, %v3922
    %v3939 = vmul.f32 %v3923, %v3923
    %v3940 = vmul.f32 %v3924, %v3924
    %v3941 = vmul.f32 %v3925, %v3925
    %v3942 = vsel %vm84, %v3926, 0.0
    %3943 = vadd.xlane.f32.xlu0 %v3942
    %v3944 = vpop.xlane.xlu0 %3943
    %v3945 = vsel %vm84, %v3927, 0.0
    %3946 = vadd.xlane.f32.xlu0 %v3945
    %v3947 = vpop.xlane.xlu0 %3946
    %v3948 = vsel %vm84, %v3928, 0.0
    %3949 = vadd.xlane.f32.xlu0 %v3948
    %v3950 = vpop.xlane.xlu0 %3949
    %v3951 = vsel %vm84, %v3929, 0.0
    %3952 = vadd.xlane.f32.xlu0 %v3951
    %v3953 = vpop.xlane.xlu0 %3952
    %v3954 = vsel %vm84, %v3930, 0.0
    %3955 = vadd.xlane.f32.xlu0 %v3954
    %v3956 = vpop.xlane.xlu0 %3955
    %v3957 = vsel %vm84, %v3931, 0.0
    %3958 = vadd.xlane.f32.xlu0 %v3957
    %v3959 = vpop.xlane.xlu0 %3958
    %v3960 = vsel %vm84, %v3932, 0.0
    %3961 = vadd.xlane.f32.xlu0 %v3960
    %v3962 = vpop.xlane.xlu0 %3961
    %v3963 = vsel %vm84, %v3933, 0.0
    %3964 = vadd.xlane.f32.xlu0 %v3963
    %v3965 = vpop.xlane.xlu0 %3964
    %v3966 = vsel %vm84, %v3934, 0.0
    %3967 = vadd.xlane.f32.xlu0 %v3966
    %v3968 = vpop.xlane.xlu0 %3967
    %v3969 = vsel %vm84, %v3935, 0.0
    %3970 = vadd.xlane.f32.xlu0 %v3969
    %v3971 = vpop.xlane.xlu0 %3970
    %v3972 = vsel %vm84, %v3936, 0.0
    %3973 = vadd.xlane.f32.xlu0 %v3972
    %v3974 = vpop.xlane.xlu0 %3973
    %v3975 = vsel %vm84, %v3937, 0.0
    %3976 = vadd.xlane.f32.xlu0 %v3975
    %v3977 = vpop.xlane.xlu0 %3976
    %v3978 = vsel %vm84, %v3938, 0.0
    %3979 = vadd.xlane.f32.xlu0 %v3978
    %v3980 = vpop.xlane.xlu0 %3979
    %v3981 = vsel %vm84, %v3939, 0.0
    %3982 = vadd.xlane.f32.xlu0 %v3981
    %v3983 = vpop.xlane.xlu0 %3982
    %v3984 = vsel %vm84, %v3940, 0.0
    %3985 = vadd.xlane.f32.xlu0 %v3984
    %v3986 = vpop.xlane.xlu0 %3985
    %v3987 = vsel %vm84, %v3941, 0.0
    %3988 = vadd.xlane.f32.xlu0 %v3987
    %v3989 = vpop.xlane.xlu0 %3988
    %v3990 = vmul.f32 %v3944, %v133
    %v3991 = vmul.f32 %v3947, %v133
    %v3992 = vmul.f32 %v3950, %v133
    %v3993 = vmul.f32 %v3953, %v133
    %v3994 = vmul.f32 %v3956, %v133
    %v3995 = vmul.f32 %v3959, %v133
    %v3996 = vmul.f32 %v3962, %v133
    %v3997 = vmul.f32 %v3965, %v133
    %v3998 = vmul.f32 %v3968, %v133
    %v3999 = vmul.f32 %v3971, %v133
    %v4000 = vmul.f32 %v3974, %v133
    %v4001 = vmul.f32 %v3977, %v133
    %v4002 = vmul.f32 %v3980, %v133
    %v4003 = vmul.f32 %v3983, %v133
    %v4004 = vmul.f32 %v3986, %v133
    %v4005 = vmul.f32 %v3989, %v133
    %v4006 = vadd.f32 %v3990, 1e-05
    %v4007 = vadd.f32 %v3991, 1e-05
    %v4008 = vadd.f32 %v3992, 1e-05
    %v4009 = vadd.f32 %v3993, 1e-05
    %v4010 = vadd.f32 %v3994, 1e-05
    %v4011 = vadd.f32 %v3995, 1e-05
    %v4012 = vadd.f32 %v3996, 1e-05
    %v4013 = vadd.f32 %v3997, 1e-05
    %v4014 = vadd.f32 %v3998, 1e-05
    %v4015 = vadd.f32 %v3999, 1e-05
    %v4016 = vadd.f32 %v4000, 1e-05
    %v4017 = vadd.f32 %v4001, 1e-05
    %v4018 = vadd.f32 %v4002, 1e-05
    %v4019 = vadd.f32 %v4003, 1e-05
    %v4020 = vadd.f32 %v4004, 1e-05
    %v4021 = vadd.f32 %v4005, 1e-05
    %v4022 = vrsqrt.pop %v4006
    %v4023 = vrsqrt.pop %v4007
    %v4024 = vrsqrt.pop %v4008
    %v4025 = vrsqrt.pop %v4009
    %v4026 = vrsqrt.pop %v4010
    %v4027 = vrsqrt.pop %v4011
    %v4028 = vrsqrt.pop %v4012
    %v4029 = vrsqrt.pop %v4013
    %v4030 = vrsqrt.pop %v4014
    %v4031 = vrsqrt.pop %v4015
    %v4032 = vrsqrt.pop %v4016
    %v4033 = vrsqrt.pop %v4017
    %v4034 = vrsqrt.pop %v4018
    %v4035 = vrsqrt.pop %v4019
    %v4036 = vrsqrt.pop %v4020
    %v4037 = vrsqrt.pop %v4021
    %v4038 = vmul.f32 %v3910, %v4022
    %v4039 = vmul.f32 %v3911, %v4023
    %v4040 = vmul.f32 %v3912, %v4024
    %v4041 = vmul.f32 %v3913, %v4025
    %v4042 = vmul.f32 %v3914, %v4026
    %v4043 = vmul.f32 %v3915, %v4027
    %v4044 = vmul.f32 %v3916, %v4028
    %v4045 = vmul.f32 %v3917, %v4029
    %v4046 = vmul.f32 %v3918, %v4030
    %v4047 = vmul.f32 %v3919, %v4031
    %v4048 = vmul.f32 %v3920, %v4032
    %v4049 = vmul.f32 %v3921, %v4033
    %v4050 = vmul.f32 %v3922, %v4034
    %v4051 = vmul.f32 %v3923, %v4035
    %v4052 = vmul.f32 %v3924, %v4036
    %v4053 = vmul.f32 %v3925, %v4037
    %v4055 = vlaneseq
    %v4056 = vshrl.u32 %v4055, 7
    %v4057 = vsub.s32 0, %v4056
    %v4058 = vrot.slane %v3844, %v4057
    %v4060 = vmul.f32 %v4038, %v4058
    %v4061 = vmul.f32 %v4039, %v4058
    %v4062 = vmul.f32 %v4040, %v4058
    %v4063 = vmul.f32 %v4041, %v4058
    %v4064 = vmul.f32 %v4042, %v4058
    %v4065 = vmul.f32 %v4043, %v4058
    %v4066 = vmul.f32 %v4044, %v4058
    %v4067 = vmul.f32 %v4045, %v4058
    %v4068 = vmul.f32 %v4046, %v4058
    %v4069 = vmul.f32 %v4047, %v4058
    %v4070 = vmul.f32 %v4048, %v4058
    %v4071 = vmul.f32 %v4049, %v4058
    %v4072 = vmul.f32 %v4050, %v4058
    %v4073 = vmul.f32 %v4051, %v4058
    %v4074 = vmul.f32 %v4052, %v4058
    %v4075 = vmul.f32 %v4053, %v4058
    %v4077 = vlaneseq
    %v4078 = vshrl.u32 %v4077, 7
    %v4079 = vsub.s32 0, %v4078
    %v4080 = vrot.slane %v3845, %v4079
    %v4082 = vadd.f32 %v4060, %v4080
    %v4083 = vadd.f32 %v4061, %v4080
    %v4084 = vadd.f32 %v4062, %v4080
    %v4085 = vadd.f32 %v4063, %v4080
    %v4086 = vadd.f32 %v4064, %v4080
    %v4087 = vadd.f32 %v4065, %v4080
    %v4088 = vadd.f32 %v4066, %v4080
    %v4089 = vadd.f32 %v4067, %v4080
    %v4090 = vadd.f32 %v4068, %v4080
    %v4091 = vadd.f32 %v4069, %v4080
    %v4092 = vadd.f32 %v4070, %v4080
    %v4093 = vadd.f32 %v4071, %v4080
    %v4094 = vadd.f32 %v4072, %v4080
    %v4095 = vadd.f32 %v4073, %v4080
    %v4096 = vadd.f32 %v4074, %v4080
    %v4097 = vadd.f32 %v4075, %v4080
    %v4098 = vpack.c.bf16 %v4083, %v4082
    %v4099 = vpack.c.bf16 %v4085, %v4084
    %v4100 = vpack.c.bf16 %v4087, %v4086
    %v4101 = vpack.c.bf16 %v4089, %v4088
    %v4102 = vpack.c.bf16 %v4091, %v4090
    %v4103 = vpack.c.bf16 %v4093, %v4092
    %v4104 = vpack.c.bf16 %v4095, %v4094
    %v4105 = vpack.c.bf16 %v4097, %v4096
    %v4106 = vld [vmem:[%s13] sm:$0xf]
    %v4107 = vld [vmem:[%s13 + $0x4] sm:$0xf]
    %v4108 = vld [vmem:[%s13 + $0x8] sm:$0xf]
    %v4109 = vld [vmem:[%s13 + $0xc] sm:$0xf]
    %v4110 = vld [vmem:[%s14] sm:$0x1]
    %v4112 = vlaneseq
    %v4113 = vshrl.u32 %v4112, 7
    %v4114 = vsub.s32 0, %v4113
    %v4115 = vrot.slane %v4110, %v4114
    %v4121 = vunpack.c.l.b16 %v4106
    %v4122 = vunpack.c.l.b16 %v4107
    %v4123 = vunpack.c.l.b16 %v4108
    %v4124 = vunpack.c.l.b16 %v4109
    %v4125 = vpack.c.b16 %v4122, %v4121
    %v4126 = vpack.c.b16 %v4124, %v4123
    %v4130 = vsel %vm84, %v4098, 0
    %v4133 = vsel %vm84, %v4099, 0
    %v4136 = vsel %vm84, %v4100, 0
    %v4139 = vsel %vm84, %v4101, 0
    %v4142 = vsel %vm84, %v4102, 0
    %v4145 = vsel %vm84, %v4103, 0
    %v4148 = vsel %vm84, %v4104, 0
    %v4151 = vsel %vm84, %v4105, 0
    %4153 = vmatprep.subr.bf16.mxu0 0
    %4154 = vmatpush1.bf16.msra.mxu0 0
    %4155 = vmatprep.subr.bf16.mxu0 0
    %4156 = vmatpush1.bf16.msra.mxu0 0
    %4157 = vmatprep.subr.bf16.mxu0 0
    %4158 = vmatpush1.bf16.msra.mxu0 0
    %4159 = vmatprep.subr.bf16.mxu0 0
    %4160 = vmatpush1.bf16.msra.mxu0 0
    %4161 = vmatprep.subr.bf16.mxu0 0
    %4162 = vmatpush1.bf16.msra.mxu0 0
    %4163 = vmatprep.subr.bf16.mxu0 0
    %4164 = vmatpush1.bf16.msra.mxu0 0
    %4165 = vmatprep.subr.bf16.mxu0 0
    %4166 = vmatpush1.bf16.msra.mxu0 %v4126
    %4167 = vmatprep.subr.bf16.mxu0 0
    %4168 = vmatpush1.bf16.msra.mxu0 %v4125
    %4169 = vmatprep.subr.bf16.mxu0 0
    %4170 = vmatpush2.bf16.msra.mxu0 0
    %4171 = vmatprep.subr.bf16.mxu0 0
    %4172 = vmatpush2.bf16.msra.mxu0 0
    %4173 = vmatprep.subr.bf16.mxu0 0
    %4174 = vmatpush2.bf16.msra.mxu0 0
    %4175 = vmatprep.subr.bf16.mxu0 0
    %4176 = vmatpush2.bf16.msra.mxu0 0
    %4177 = vmatprep.subr.bf16.mxu0 0
    %4178 = vmatpush2.bf16.msra.mxu0 0
    %4179 = vmatprep.subr.bf16.mxu0 0
    %4180 = vmatpush2.bf16.msra.mxu0 0
    %4181 = vmatprep.subr.bf16.mxu0 0
    %4182 = vmatpush2.bf16.msra.mxu0 0
    %4183 = vmatprep.subr.bf16.mxu0 0
    %4184 = vmatpush2.bf16.msra.mxu0 0
    %4185 = vmatprep.mubr.bf16.mxu0 0
    %4186 = vmatmul.mubr.bf16.gmra.mxu0 %v4130
    %v4187 = vpop.f32.mrf.mxu0
    %v4188 = vadd.f32 %v4115, %v4187
    %v4189 = vpop.f32.mrf.mxu0
    %v4190 = vpop.f32.mrf.mxu0
    %v4191 = vadd.f32 %v4115, %v4190
    %v4192 = vpop.f32.mrf.mxu0
    %4193 = vmatprep.mubr.bf16.mxu0 0
    %4194 = vmatmul.mubr.bf16.gmra.mxu0 %v4133
    %v4195 = vpop.f32.mrf.mxu0
    %v4196 = vadd.f32 %v4115, %v4195
    %v4197 = vpop.f32.mrf.mxu0
    %v4198 = vpop.f32.mrf.mxu0
    %v4199 = vadd.f32 %v4115, %v4198
    %v4200 = vpop.f32.mrf.mxu0
    %4201 = vmatprep.mubr.bf16.mxu0 0
    %4202 = vmatmul.mubr.bf16.gmra.mxu0 %v4136
    %v4203 = vpop.f32.mrf.mxu0
    %v4204 = vadd.f32 %v4115, %v4203
    %v4205 = vpop.f32.mrf.mxu0
    %v4206 = vpop.f32.mrf.mxu0
    %v4207 = vadd.f32 %v4115, %v4206
    %v4208 = vpop.f32.mrf.mxu0
    %4209 = vmatprep.mubr.bf16.mxu0 0
    %4210 = vmatmul.mubr.bf16.gmra.mxu0 %v4139
    %v4211 = vpop.f32.mrf.mxu0
    %v4212 = vadd.f32 %v4115, %v4211
    %v4213 = vpop.f32.mrf.mxu0
    %v4214 = vpop.f32.mrf.mxu0
    %v4215 = vadd.f32 %v4115, %v4214
    %v4216 = vpop.f32.mrf.mxu0
    %4217 = vmatprep.mubr.bf16.mxu0 0
    %4218 = vmatmul.mubr.bf16.gmra.mxu0 %v4142
    %v4219 = vpop.f32.mrf.mxu0
    %v4220 = vadd.f32 %v4115, %v4219
    %v4221 = vpop.f32.mrf.mxu0
    %v4222 = vpop.f32.mrf.mxu0
    %v4223 = vadd.f32 %v4115, %v4222
    %v4224 = vpop.f32.mrf.mxu0
    %4225 = vmatprep.mubr.bf16.mxu0 0
    %4226 = vmatmul.mubr.bf16.gmra.mxu0 %v4145
    %v4227 = vpop.f32.mrf.mxu0
    %v4228 = vadd.f32 %v4115, %v4227
    %v4229 = vpop.f32.mrf.mxu0
    %v4230 = vpop.f32.mrf.mxu0
    %v4231 = vadd.f32 %v4115, %v4230
    %v4232 = vpop.f32.mrf.mxu0
    %4233 = vmatprep.mubr.bf16.mxu0 0
    %4234 = vmatmul.mubr.bf16.gmra.mxu0 %v4148
    %v4235 = vpop.f32.mrf.mxu0
    %v4236 = vadd.f32 %v4115, %v4235
    %v4237 = vpop.f32.mrf.mxu0
    %v4238 = vpop.f32.mrf.mxu0
    %v4239 = vadd.f32 %v4115, %v4238
    %v4240 = vpop.f32.mrf.mxu0
    %4241 = vmatprep.mubr.bf16.mxu0 0
    %4242 = vmatmul.mubr.bf16.gmra.mxu0 %v4151
    %v4243 = vpop.f32.mrf.mxu0
    %v4244 = vadd.f32 %v4115, %v4243
    %v4245 = vpop.f32.mrf.mxu0
    %v4246 = vpop.f32.mrf.mxu0
    %v4247 = vadd.f32 %v4115, %v4246
    %v4248 = vpop.f32.mrf.mxu0
    %4249 = vdwg.mxu0
    %v4250 = vmul.f32 %v4188, 0.5
    %v4251 = vmul.f32 %v4191, 0.5
    %v4252 = vmul.f32 %v4196, 0.5
    %v4253 = vmul.f32 %v4199, 0.5
    %v4254 = vmul.f32 %v4204, 0.5
    %v4255 = vmul.f32 %v4207, 0.5
    %v4256 = vmul.f32 %v4212, 0.5
    %v4257 = vmul.f32 %v4215, 0.5
    %v4258 = vmul.f32 %v4220, 0.5
    %v4259 = vmul.f32 %v4223, 0.5
    %v4260 = vmul.f32 %v4228, 0.5
    %v4261 = vmul.f32 %v4231, 0.5
    %v4262 = vmul.f32 %v4236, 0.5
    %v4263 = vmul.f32 %v4239, 0.5
    %v4264 = vmul.f32 %v4244, 0.5
    %v4265 = vmul.f32 %v4247, 0.5
    %v4266 = vmul.f32 %v4188, 0.70710677
    %v4267 = vmul.f32 %v4191, 0.70710677
    %v4268 = vmul.f32 %v4196, 0.70710677
    %v4269 = vmul.f32 %v4199, 0.70710677
    %v4270 = vmul.f32 %v4204, 0.70710677
    %v4271 = vmul.f32 %v4207, 0.70710677
    %v4272 = vmul.f32 %v4212, 0.70710677
    %v4273 = vmul.f32 %v4215, 0.70710677
    %v4274 = vmul.f32 %v4220, 0.70710677
    %v4275 = vmul.f32 %v4223, 0.70710677
    %v4276 = vmul.f32 %v4228, 0.70710677
    %v4277 = vmul.f32 %v4231, 0.70710677
    %v4278 = vmul.f32 %v4236, 0.70710677
    %v4279 = vmul.f32 %v4239, 0.70710677
    %v4280 = vmul.f32 %v4244, 0.70710677
    %v4281 = vmul.f32 %v4247, 0.70710677
    %v4282 = verf.f32.pop %v4266
    %v4283 = verf.f32.pop %v4267
    %v4284 = verf.f32.pop %v4268
    %v4285 = verf.f32.pop %v4269
    %v4286 = verf.f32.pop %v4270
    %v4287 = verf.f32.pop %v4271
    %v4288 = verf.f32.pop %v4272
    %v4289 = verf.f32.pop %v4273
    %v4290 = verf.f32.pop %v4274
    %v4291 = verf.f32.pop %v4275
    %v4292 = verf.f32.pop %v4276
    %v4293 = verf.f32.pop %v4277
    %v4294 = verf.f32.pop %v4278
    %v4295 = verf.f32.pop %v4279
    %v4296 = verf.f32.pop %v4280
    %v4297 = verf.f32.pop %v4281
    %v4298 = vadd.f32 %v4282, 1.0
    %v4299 = vadd.f32 %v4283, 1.0
    %v4300 = vadd.f32 %v4284, 1.0
    %v4301 = vadd.f32 %v4285, 1.0
    %v4302 = vadd.f32 %v4286, 1.0
    %v4303 = vadd.f32 %v4287, 1.0
    %v4304 = vadd.f32 %v4288, 1.0
    %v4305 = vadd.f32 %v4289, 1.0
    %v4306 = vadd.f32 %v4290, 1.0
    %v4307 = vadd.f32 %v4291, 1.0
    %v4308 = vadd.f32 %v4292, 1.0
    %v4309 = vadd.f32 %v4293, 1.0
    %v4310 = vadd.f32 %v4294, 1.0
    %v4311 = vadd.f32 %v4295, 1.0
    %v4312 = vadd.f32 %v4296, 1.0
    %v4313 = vadd.f32 %v4297, 1.0
    %v4314 = vmul.f32 %v4250, %v4298
    %v4315 = vmul.f32 %v4251, %v4299
    %v4316 = vmul.f32 %v4252, %v4300
    %v4317 = vmul.f32 %v4253, %v4301
    %v4318 = vmul.f32 %v4254, %v4302
    %v4319 = vmul.f32 %v4255, %v4303
    %v4320 = vmul.f32 %v4256, %v4304
    %v4321 = vmul.f32 %v4257, %v4305
    %v4322 = vmul.f32 %v4258, %v4306
    %v4323 = vmul.f32 %v4259, %v4307
    %v4324 = vmul.f32 %v4260, %v4308
    %v4325 = vmul.f32 %v4261, %v4309
    %v4326 = vmul.f32 %v4262, %v4310
    %v4327 = vmul.f32 %v4263, %v4311
    %v4328 = vmul.f32 %v4264, %v4312
    %v4329 = vmul.f32 %v4265, %v4313
    %v4330 = vpack.c.bf16 %v4315, %v4314
    %v4331 = vpack.c.bf16 %v4317, %v4316
    %v4332 = vpack.c.bf16 %v4319, %v4318
    %v4333 = vpack.c.bf16 %v4321, %v4320
    %v4334 = vpack.c.bf16 %v4323, %v4322
    %v4335 = vpack.c.bf16 %v4325, %v4324
    %v4336 = vpack.c.bf16 %v4327, %v4326
    %v4337 = vpack.c.bf16 %v4329, %v4328
    %v4338 = vld [vmem:[%s15] sm:$0xf]
    %v4339 = vld [vmem:[%s15 + $0x4] sm:$0xf]
    %v4340 = vld [vmem:[%s15 + $0x8] sm:$0xf]
    %v4341 = vld [vmem:[%s15 + $0xc] sm:$0xf]
    %v4342 = vld [vmem:[%s15 + $0x10] sm:$0xf]
    %v4343 = vld [vmem:[%s15 + $0x14] sm:$0xf]
    %v4344 = vld [vmem:[%s15 + $0x18] sm:$0xf]
    %v4345 = vld [vmem:[%s15 + $0x1c] sm:$0xf]
    %v4346 = vld [vmem:[%s15 + $0x20] sm:$0xf]
    %v4347 = vld [vmem:[%s15 + $0x24] sm:$0xf]
    %v4348 = vld [vmem:[%s15 + $0x28] sm:$0xf]
    %v4349 = vld [vmem:[%s15 + $0x2c] sm:$0xf]
    %v4350 = vld [vmem:[%s15 + $0x30] sm:$0xf]
    %v4351 = vld [vmem:[%s15 + $0x34] sm:$0xf]
    %v4352 = vld [vmem:[%s15 + $0x38] sm:$0xf]
    %v4353 = vld [vmem:[%s15 + $0x3c] sm:$0xf]
    %v4354 = vld [vmem:[%s16] sm:$0x1]
    %v4356 = vlaneseq
    %v4357 = vshrl.u32 %v4356, 7
    %v4358 = vsub.s32 0, %v4357
    %v4359 = vrot.slane %v4354, %v4358
    %v4377 = vunpack.c.l.b16 %v4338
    %v4378 = vunpack.c.l.b16 %v4339
    %v4379 = vunpack.c.l.b16 %v4340
    %v4380 = vunpack.c.l.b16 %v4341
    %v4381 = vunpack.c.l.b16 %v4342
    %v4382 = vunpack.c.l.b16 %v4343
    %v4383 = vunpack.c.l.b16 %v4344
    %v4384 = vunpack.c.l.b16 %v4345
    %v4385 = vunpack.c.l.b16 %v4346
    %v4386 = vunpack.c.l.b16 %v4347
    %v4387 = vunpack.c.l.b16 %v4348
    %v4388 = vunpack.c.l.b16 %v4349
    %v4389 = vunpack.c.l.b16 %v4350
    %v4390 = vunpack.c.l.b16 %v4351
    %v4391 = vunpack.c.l.b16 %v4352
    %v4392 = vunpack.c.l.b16 %v4353
    %v4393 = vpack.c.b16 %v4378, %v4377
    %v4394 = vpack.c.b16 %v4380, %v4379
    %v4395 = vpack.c.b16 %v4382, %v4381
    %v4396 = vpack.c.b16 %v4384, %v4383
    %v4397 = vpack.c.b16 %v4386, %v4385
    %v4398 = vpack.c.b16 %v4388, %v4387
    %v4399 = vpack.c.b16 %v4390, %v4389
    %v4400 = vpack.c.b16 %v4392, %v4391
    %4409 = vmatprep.subr.bf16.mxu0 0
    %4410 = vmatpush1.bf16.msra.mxu0 %v4400
    %4411 = vmatprep.subr.bf16.mxu0 0
    %4412 = vmatpush1.bf16.msra.mxu0 %v4399
    %4413 = vmatprep.subr.bf16.mxu0 0
    %4414 = vmatpush1.bf16.msra.mxu0 %v4398
    %4415 = vmatprep.subr.bf16.mxu0 0
    %4416 = vmatpush1.bf16.msra.mxu0 %v4397
    %4417 = vmatprep.subr.bf16.mxu0 0
    %4418 = vmatpush1.bf16.msra.mxu0 %v4396
    %4419 = vmatprep.subr.bf16.mxu0 0
    %4420 = vmatpush1.bf16.msra.mxu0 %v4395
    %4421 = vmatprep.subr.bf16.mxu0 0
    %4422 = vmatpush1.bf16.msra.mxu0 %v4394
    %4423 = vmatprep.subr.bf16.mxu0 0
    %4424 = vmatpush1.bf16.msra.mxu0 %v4393
    %4425 = vmatprep.subr.bf16.mxu0 0
    %4426 = vmatpush2.bf16.msra.mxu0 0
    %4427 = vmatprep.subr.bf16.mxu0 0
    %4428 = vmatpush2.bf16.msra.mxu0 0
    %4429 = vmatprep.subr.bf16.mxu0 0
    %4430 = vmatpush2.bf16.msra.mxu0 0
    %4431 = vmatprep.subr.bf16.mxu0 0
    %4432 = vmatpush2.bf16.msra.mxu0 0
    %4433 = vmatprep.subr.bf16.mxu0 0
    %4434 = vmatpush2.bf16.msra.mxu0 0
    %4435 = vmatprep.subr.bf16.mxu0 0
    %4436 = vmatpush2.bf16.msra.mxu0 0
    %4437 = vmatprep.subr.bf16.mxu0 0
    %4438 = vmatpush2.bf16.msra.mxu0 0
    %4439 = vmatprep.subr.bf16.mxu0 0
    %4440 = vmatpush2.bf16.msra.mxu0 0
    %4441 = vmatprep.mubr.bf16.mxu0 0
    %4442 = vmatmul.mubr.bf16.gmra.mxu0 %v4330
    %v4443 = vpop.f32.mrf.mxu0
    %v4444 = vadd.f32 %v4359, %v4443
    %v4445 = vpop.f32.mrf.mxu0
    %v4446 = vpop.f32.mrf.mxu0
    %v4447 = vadd.f32 %v4359, %v4446
    %v4448 = vpop.f32.mrf.mxu0
    %4449 = vmatprep.mubr.bf16.mxu0 0
    %4450 = vmatmul.mubr.bf16.gmra.mxu0 %v4331
    %v4451 = vpop.f32.mrf.mxu0
    %v4452 = vadd.f32 %v4359, %v4451
    %v4453 = vpop.f32.mrf.mxu0
    %v4454 = vpop.f32.mrf.mxu0
    %v4455 = vadd.f32 %v4359, %v4454
    %v4456 = vpop.f32.mrf.mxu0
    %4457 = vmatprep.mubr.bf16.mxu0 0
    %4458 = vmatmul.mubr.bf16.gmra.mxu0 %v4332
    %v4459 = vpop.f32.mrf.mxu0
    %v4460 = vadd.f32 %v4359, %v4459
    %v4461 = vpop.f32.mrf.mxu0
    %v4462 = vpop.f32.mrf.mxu0
    %v4463 = vadd.f32 %v4359, %v4462
    %v4464 = vpop.f32.mrf.mxu0
    %4465 = vmatprep.mubr.bf16.mxu0 0
    %4466 = vmatmul.mubr.bf16.gmra.mxu0 %v4333
    %v4467 = vpop.f32.mrf.mxu0
    %v4468 = vadd.f32 %v4359, %v4467
    %v4469 = vpop.f32.mrf.mxu0
    %v4470 = vpop.f32.mrf.mxu0
    %v4471 = vadd.f32 %v4359, %v4470
    %v4472 = vpop.f32.mrf.mxu0
    %4473 = vmatprep.mubr.bf16.mxu0 0
    %4474 = vmatmul.mubr.bf16.gmra.mxu0 %v4334
    %v4475 = vpop.f32.mrf.mxu0
    %v4476 = vadd.f32 %v4359, %v4475
    %v4477 = vpop.f32.mrf.mxu0
    %v4478 = vpop.f32.mrf.mxu0
    %v4479 = vadd.f32 %v4359, %v4478
    %v4480 = vpop.f32.mrf.mxu0
    %4481 = vmatprep.mubr.bf16.mxu0 0
    %4482 = vmatmul.mubr.bf16.gmra.mxu0 %v4335
    %v4483 = vpop.f32.mrf.mxu0
    %v4484 = vadd.f32 %v4359, %v4483
    %v4485 = vpop.f32.mrf.mxu0
    %v4486 = vpop.f32.mrf.mxu0
    %v4487 = vadd.f32 %v4359, %v4486
    %v4488 = vpop.f32.mrf.mxu0
    %4489 = vmatprep.mubr.bf16.mxu0 0
    %4490 = vmatmul.mubr.bf16.gmra.mxu0 %v4336
    %v4491 = vpop.f32.mrf.mxu0
    %v4492 = vadd.f32 %v4359, %v4491
    %v4493 = vpop.f32.mrf.mxu0
    %v4494 = vpop.f32.mrf.mxu0
    %v4495 = vadd.f32 %v4359, %v4494
    %v4496 = vpop.f32.mrf.mxu0
    %4497 = vmatprep.mubr.bf16.mxu0 0
    %4498 = vmatmul.mubr.bf16.gmra.mxu0 %v4337
    %v4499 = vpop.f32.mrf.mxu0
    %v4500 = vadd.f32 %v4359, %v4499
    %v4501 = vpop.f32.mrf.mxu0
    %v4502 = vpop.f32.mrf.mxu0
    %v4503 = vadd.f32 %v4359, %v4502
    %v4504 = vpop.f32.mrf.mxu0
    %4505 = vdwg.mxu0
    %v4506 = vadd.f32 %v3828, %v4444
    %v4507 = vadd.f32 %v3829, %v4447
    %v4508 = vadd.f32 %v3830, %v4452
    %v4509 = vadd.f32 %v3831, %v4455
    %v4510 = vadd.f32 %v3832, %v4460
    %v4511 = vadd.f32 %v3833, %v4463
    %v4512 = vadd.f32 %v3834, %v4468
    %v4513 = vadd.f32 %v3835, %v4471
    %v4514 = vadd.f32 %v3836, %v4476
    %v4515 = vadd.f32 %v3837, %v4479
    %v4516 = vadd.f32 %v3838, %v4484
    %v4517 = vadd.f32 %v3839, %v4487
    %v4518 = vadd.f32 %v3840, %v4492
    %v4519 = vadd.f32 %v3841, %v4495
    %v4520 = vadd.f32 %v3842, %v4500
    %v4521 = vadd.f32 %v3843, %v4503
    %s4522 = scalar_lea.vmem %s17, %s66
    %4523 = vst.msk [vmem:[%s4522] sm:$0xff] %vm84, %v4506
    %4524 = vst.msk [vmem:[%s4522 + $0x8] sm:$0xff] %vm84, %v4507
    %4525 = vst.msk [vmem:[%s4522 + $0x10] sm:$0xff] %vm84, %v4508
    %4526 = vst.msk [vmem:[%s4522 + $0x18] sm:$0xff] %vm84, %v4509
    %4527 = vst.msk [vmem:[%s4522 + $0x20] sm:$0xff] %vm84, %v4510
    %4528 = vst.msk [vmem:[%s4522 + $0x28] sm:$0xff] %vm84, %v4511
    %4529 = vst.msk [vmem:[%s4522 + $0x30] sm:$0xff] %vm84, %v4512
    %4530 = vst.msk [vmem:[%s4522 + $0x38] sm:$0xff] %vm84, %v4513
    %4531 = vst.msk [vmem:[%s4522 + $0x40] sm:$0xff] %vm84, %v4514
    %4532 = vst.msk [vmem:[%s4522 + $0x48] sm:$0xff] %vm84, %v4515
    %4533 = vst.msk [vmem:[%s4522 + $0x50] sm:$0xff] %vm84, %v4516
    %4534 = vst.msk [vmem:[%s4522 + $0x58] sm:$0xff] %vm84, %v4517
    %4535 = vst.msk [vmem:[%s4522 + $0x60] sm:$0xff] %vm84, %v4518
    %4536 = vst.msk [vmem:[%s4522 + $0x68] sm:$0xff] %vm84, %v4519
    %4537 = vst.msk [vmem:[%s4522 + $0x70] sm:$0xff] %vm84, %v4520
    %4538 = vst.msk [vmem:[%s4522 + $0x78] sm:$0xff] %vm84, %v4521
  $region74: #{cross_transformer_block_forward.1} parent=0 // loop_footer
    %s62 = sadd.s32 1, %s58
  $region75: #{cross_transformer_block_forward.1} parent=0 // loop_footer_branch
    %57 = sbr.rel target = $region71
  $region76: #{cross_transformer_block_forward.1} parent=0 // loop_exit
    _
  // Predicated region
  $region77: #{cross_transformer_block_forward.1} parent=0 // pred_check
    _
  $region78: #{cross_transformer_block_forward.1} parent=0 // pred_check_branch
    %4540 = sbr.rel (0) target = $region80
  $region79: #{cross_transformer_block_forward.1} parent=0 // pred_region
    _
  $region80: #{cross_transformer_block_forward.1} parent=0 // pred_fallthru
    _
  // Predicated region
  $region81: #{cross_transformer_block_forward.1} parent=0 // pred_check
    _
  $region82: #{cross_transformer_block_forward.1} parent=0 // pred_check_branch
    %4542 = sbr.rel (0) target = $region84
  $region83: #{cross_transformer_block_forward.1} parent=0 // pred_region
    _
  $region84: #{cross_transformer_block_forward.1} parent=0 // pred_fallthru
    _

</llo_original>
